<compile_context>
chip_gen: v5e
topology: v5e:2x2
jax: 0.10.0
libtpu: 0.0.40
codegen_flags: <defaults>
</compile_context>

<pallas_src>
import jax
import jax.numpy as jnp
from jax.experimental import pallas as pl
from jax.experimental.pallas import tpu as pltpu


def _round_up(v: int, m: int) -> int:
    return (v + m - 1) // m * m


# ----------------------------------------------------------------------------
# Kernel
# ----------------------------------------------------------------------------
def _make_gen_kernel(n_layers: int, residual: bool):
    """Builds the fused MLP kernel.

    Ref order: x_ref, (w0, b0, ..., w_L, b_L), out_ref.
    Layers 0..L-1 are hidden (Linear + ReLU), layer L is the output Linear
    followed by Tanh (+ optional residual).
    Weights are bf16, biases/activations f32; all dots accumulate in f32.
    """

    def kernel(x_ref, *refs):
        out_ref = refs[-1]
        params = refs[:-1]

        x = x_ref[...]                                  # (tile_b, n_in_p) f32
        h = x
        # hidden layers: Linear -> ReLU  (norm == 'none')
        for i in range(n_layers):
            w = params[2 * i][...]                      # (in_p, hid_p) bf16
            b = params[2 * i + 1][...]                  # (1, hid_p)    f32
            h = jnp.dot(h.astype(jnp.bfloat16), w,
                        preferred_element_type=jnp.float32) + b
            h = jnp.maximum(h, 0.0)                     # ReLU in f32
        # output layer: Linear -> Tanh
        w = params[2 * n_layers][...]                   # (hid_p, in_p) bf16
        b = params[2 * n_layers + 1][...]               # (1, in_p)     f32
        y = jnp.tanh(jnp.dot(h.astype(jnp.bfloat16), w,
                             preferred_element_type=jnp.float32) + b)

        if residual:
            # 2*output + clamp(input, -1, 1); elementwise, so the flat view is
            # equivalent to applying it on the original NCHW shape.  Padded
            # feature columns stay exactly 0 (zero weights/bias, clip(0)=0).
            y = 2.0 * y + jnp.clip(x, -1.0, 1.0)

        out_ref[...] = y

    return kernel


# ----------------------------------------------------------------------------
# Wrapper
# ----------------------------------------------------------------------------
def gen_forward(x, params, *, n_layers: int, residual: bool, tile_b: int = 128):
    """Runs the GEN forward pass.

    x:       (B, ...) — flattened per-sample, like input.view(B, -1).
    params:  [(W0, b0), ..., (W_L, b_L)] with W_i of shape (in, out)
             (PyTorch weight transposed) and b_i of shape (out,).
    """
    orig_shape = x.shape
    B = orig_shape[0]
    x_flat = x.reshape(B, -1).astype(jnp.float32)
    n_input = x_flat.shape[1]
    n_hidden = params[0][0].shape[1]

    # ---- lane-dense feature padding (multiples of 128) ---------------------
    n_in_p = _round_up(n_input, 128)
    n_hid_p = _round_up(n_hidden, 128)

    # ---- batch tiling: tile_b multiple of 8, batch padded to tile_b --------
    tile_b = max(8, min(_round_up(tile_b, 8), _round_up(B, 8)))
    B_p = _round_up(B, tile_b)

    if (B_p, n_in_p) != (B, n_input):
        x_flat = jnp.pad(x_flat, ((0, B_p - B), (0, n_in_p - n_input)))

    # ---- pad parameters with zeros; weights -> bf16, biases -> f32 ---------
    def pad_wb(w, b, in_p, out_p):
        w = w.astype(jnp.float32)
        b = b.astype(jnp.float32)
        w = jnp.pad(w, ((0, in_p - w.shape[0]), (0, out_p - w.shape[1])))
        b = jnp.pad(b, ((0, out_p - b.shape[0]),))
        return w.astype(jnp.bfloat16), b.reshape(1, -1)

    flat_params = []
    in_p = n_in_p
    for i in range(n_layers):
        w, b = pad_wb(params[i][0], params[i][1], in_p, n_hid_p)
        flat_params += [w, b]
        in_p = n_hid_p
    w, b = pad_wb(params[n_layers][0], params[n_layers][1], n_hid_p, n_in_p)
    flat_params += [w, b]

    kernel = _make_gen_kernel(n_layers, residual)

    # BlockSpecs: x / out tiled over batch; parameters are whole-array blocks
    # with a constant index_map, so they stay VMEM-resident across the grid.
    # TODO(synk): for very large n_hidden/n_layers, stream weight tiles over an
    # extra 'arbitrary' grid axis instead of keeping everything resident.
    x_spec = pl.BlockSpec((tile_b, n_in_p), lambda i: (i, 0))
    out_spec = pl.BlockSpec((tile_b, n_in_p), lambda i: (i, 0))
    param_specs = [pl.BlockSpec(p.shape, lambda i: (0, 0)) for p in flat_params]

    out_flat = pl.pallas_call(
        kernel,
        out_shape=jax.ShapeDtypeStruct((B_p, n_in_p), jnp.float32),
        grid_spec=pltpu.PrefetchScalarGridSpec(
            num_scalar_prefetch=0,
            grid=(B_p // tile_b,),
            in_specs=[x_spec] + param_specs,
            out_specs=out_spec,
        ),
        compiler_params=pltpu.CompilerParams(
            dimension_semantics=("parallel",),
            vmem_limit_bytes=64 * 1024 * 1024,
        ),
    )(x_flat, *flat_params)

    # slice off batch / feature padding and restore the original shape
    out = out_flat[:B, :n_input]
    return out.reshape(orig_shape)


# ----------------------------------------------------------------------------
# Deterministic parameter init (mirrors nn.Linear default init shapes)
# ----------------------------------------------------------------------------
def init_gen_params(key, n_input: int, n_hidden: int, n_layers: int):
    params = []
    in_h = n_input
    for _ in range(n_layers):
        key, kw, kb = jax.random.split(key, 3)
        bound = 1.0 / jnp.sqrt(in_h)
        # stored as (in, out) == PyTorch weight (out, in) transposed
        w = jax.random.uniform(kw, (in_h, n_hidden), jnp.float32, -bound, bound)
        b = jax.random.uniform(kb, (n_hidden,), jnp.float32, -bound, bound)
        params.append((w, b))
        in_h = n_hidden
    key, kw, kb = jax.random.split(key, 3)
    bound = 1.0 / jnp.sqrt(n_hidden)
    w = jax.random.uniform(kw, (n_hidden, n_input), jnp.float32, -bound, bound)
    b = jax.random.uniform(kb, (n_input,), jnp.float32, -bound, bound)
    params.append((w, b))
    return params


# ----------------------------------------------------------------------------
# Pure-JAX reference (mirrors the kernel's bf16 dot operands, f32 accumulate)
# ----------------------------------------------------------------------------
def gen_forward_ref(x, params, *, n_layers: int, residual: bool):
    orig_shape = x.shape
    h = x.reshape(x.shape[0], -1).astype(jnp.float32)
    x_flat = h

    def bdot(a, w):
        return jnp.dot(a.astype(jnp.bfloat16), w.astype(jnp.bfloat16),
                       preferred_element_type=jnp.float32)

    for i in range(n_layers):
        w, b = params[i]
        h = jnp.maximum(bdot(h, w) + b, 0.0)
    w, b = params[n_layers]
    y = jnp.tanh(bdot(h, w) + b)
    if residual:
        y = 2.0 * y + jnp.clip(x_flat, -1.0, 1.0)
    return y.reshape(orig_shape)


if __name__ == "__main__":
    # batch=256 so that grid = 2 at tile_b=128 (feeds both v7x TensorCores);
    # input image 4x16x16 -> n_input = 1024 (already a multiple of 128).
    B, C, H, W = 256, 4, 16, 16
    n_input = C * H * W
    n_hidden = 256
    n_layers = 2
    residual = True

    key = jax.random.PRNGKey(0)
    key, kx = jax.random.split(key)
    x = jax.random.normal(kx, (B, C, H, W), jnp.float32) * 2.0

    params = init_gen_params(key, n_input, n_hidden, n_layers)

    out = gen_forward(x, params, n_layers=n_layers, residual=residual,
                      tile_b=128)
    out = jax.block_until_ready(out)

    ref = gen_forward_ref(x, params, n_layers=n_layers, residual=residual)
    assert out.shape == x.shape
    assert bool(jnp.all(jnp.isfinite(out)))
    assert jnp.allclose(out, ref, atol=5e-3, rtol=0.0), "mismatch vs reference"

    print("KERNEL_OK")
</pallas_src>

<mosaic_0001>
module attributes {stable_mosaic.version = 11 : i64} {
  func.func @kernel(%arg0: i32, %arg1: memref<128x1024xf32, #tpu.memory_space<vmem>>, %arg2: memref<1024x256xbf16, #tpu.memory_space<vmem>>, %arg3: memref<1x256xf32, #tpu.memory_space<vmem>>, %arg4: memref<256x256xbf16, #tpu.memory_space<vmem>>, %arg5: memref<1x256xf32, #tpu.memory_space<vmem>>, %arg6: memref<256x1024xbf16, #tpu.memory_space<vmem>>, %arg7: memref<1x1024xf32, #tpu.memory_space<vmem>>, %arg8: memref<128x1024xf32, #tpu.memory_space<vmem>>) attributes {dimension_semantics = [#tpu.dimension_semantics<parallel>], iteration_bounds = array<i64: 2>, scalar_prefetch = 0 : i64, scratch_operands = 0 : i64, tpu.core_type = #tpu.core_type<tc>, window_params = [{transform_indices = @transform_0, window_bounds = array<i64: 128, 1024>}, {pipeline_mode = #tpu.pipeline_mode<synchronous>, transform_indices = @transform_1, window_bounds = array<i64: 1024, 256>}, {pipeline_mode = #tpu.pipeline_mode<synchronous>, transform_indices = @transform_2, window_bounds = array<i64: 1, 256>}, {pipeline_mode = #tpu.pipeline_mode<synchronous>, transform_indices = @transform_3, window_bounds = array<i64: 256, 256>}, {pipeline_mode = #tpu.pipeline_mode<synchronous>, transform_indices = @transform_4, window_bounds = array<i64: 1, 256>}, {pipeline_mode = #tpu.pipeline_mode<synchronous>, transform_indices = @transform_5, window_bounds = array<i64: 256, 1024>}, {pipeline_mode = #tpu.pipeline_mode<synchronous>, transform_indices = @transform_6, window_bounds = array<i64: 1, 1024>}, {transform_indices = @transform_7, window_bounds = array<i64: 128, 1024>}]} {
    %c0 = arith.constant 0 : index
    %c0_0 = arith.constant 0 : index
    %0 = vector.load %arg1[%c0, %c0_0] : memref<128x1024xf32, #tpu.memory_space<vmem>>, vector<128x1024xf32>
    %c0_1 = arith.constant 0 : index
    %c0_2 = arith.constant 0 : index
    %1 = vector.load %arg2[%c0_1, %c0_2] : memref<1024x256xbf16, #tpu.memory_space<vmem>>, vector<1024x256xbf16>
    %c0_3 = arith.constant 0 : index
    %c0_4 = arith.constant 0 : index
    %2 = vector.load %arg3[%c0_3, %c0_4] : memref<1x256xf32, #tpu.memory_space<vmem>>, vector<1x256xf32>
    %3 = arith.truncf %0 : vector<128x1024xf32> to vector<128x1024xbf16>
    %cst = arith.constant dense<0.000000e+00> : vector<128x256xf32>
    %4 = tpu.matmul %3, %1, %cst {dimension_numbers = #tpu.dot_dimension_numbers<[1], [0], [0], [1], [0, 0, 1, 1], [], []>} : vector<128x1024xbf16>, vector<1024x256xbf16>, vector<128x256xf32> -> vector<128x256xf32>
    %5 = vector.broadcast %2 : vector<1x256xf32> to vector<128x256xf32>
    %6 = arith.addf %4, %5 : vector<128x256xf32>
    %cst_5 = arith.constant 0.000000e+00 : f32
    %7 = vector.broadcast %cst_5 : f32 to vector<128x256xf32>
    %8 = arith.maximumf %6, %7 : vector<128x256xf32>
    %c0_6 = arith.constant 0 : index
    %c0_7 = arith.constant 0 : index
    %9 = vector.load %arg4[%c0_6, %c0_7] : memref<256x256xbf16, #tpu.memory_space<vmem>>, vector<256x256xbf16>
    %c0_8 = arith.constant 0 : index
    %c0_9 = arith.constant 0 : index
    %10 = vector.load %arg5[%c0_8, %c0_9] : memref<1x256xf32, #tpu.memory_space<vmem>>, vector<1x256xf32>
    %11 = arith.truncf %8 : vector<128x256xf32> to vector<128x256xbf16>
    %cst_10 = arith.constant dense<0.000000e+00> : vector<128x256xf32>
    %12 = tpu.matmul %11, %9, %cst_10 {dimension_numbers = #tpu.dot_dimension_numbers<[1], [0], [0], [1], [0, 0, 1, 1], [], []>} : vector<128x256xbf16>, vector<256x256xbf16>, vector<128x256xf32> -> vector<128x256xf32>
    %13 = vector.broadcast %10 : vector<1x256xf32> to vector<128x256xf32>
    %14 = arith.addf %12, %13 : vector<128x256xf32>
    %cst_11 = arith.constant 0.000000e+00 : f32
    %15 = vector.broadcast %cst_11 : f32 to vector<128x256xf32>
    %16 = arith.maximumf %14, %15 : vector<128x256xf32>
    %c0_12 = arith.constant 0 : index
    %c0_13 = arith.constant 0 : index
    %17 = vector.load %arg6[%c0_12, %c0_13] : memref<256x1024xbf16, #tpu.memory_space<vmem>>, vector<256x1024xbf16>
    %c0_14 = arith.constant 0 : index
    %c0_15 = arith.constant 0 : index
    %18 = vector.load %arg7[%c0_14, %c0_15] : memref<1x1024xf32, #tpu.memory_space<vmem>>, vector<1x1024xf32>
    %19 = arith.truncf %16 : vector<128x256xf32> to vector<128x256xbf16>
    %cst_16 = arith.constant dense<0.000000e+00> : vector<128x1024xf32>
    %20 = tpu.matmul %19, %17, %cst_16 {dimension_numbers = #tpu.dot_dimension_numbers<[1], [0], [0], [1], [0, 0, 1, 1], [], []>} : vector<128x256xbf16>, vector<256x1024xbf16>, vector<128x1024xf32> -> vector<128x1024xf32>
    %21 = vector.broadcast %18 : vector<1x1024xf32> to vector<128x1024xf32>
    %22 = arith.addf %20, %21 : vector<128x1024xf32>
    %23 = math.tanh %22 : vector<128x1024xf32>
    %cst_17 = arith.constant 2.000000e+00 : f32
    %24 = vector.broadcast %cst_17 : f32 to vector<128x1024xf32>
    %25 = arith.mulf %24, %23 : vector<128x1024xf32>
    %cst_18 = arith.constant -1.000000e+00 : f32
    %cst_19 = arith.constant 1.000000e+00 : f32
    %26 = vector.broadcast %cst_18 : f32 to vector<128x1024xf32>
    %27 = arith.maximumf %26, %0 : vector<128x1024xf32>
    %28 = vector.broadcast %cst_19 : f32 to vector<128x1024xf32>
    %29 = arith.minimumf %28, %27 : vector<128x1024xf32>
    %30 = arith.addf %25, %29 : vector<128x1024xf32>
    %c0_20 = arith.constant 0 : index
    %c0_21 = arith.constant 0 : index
    %31 = vector.load %arg8[%c0_20, %c0_21] : memref<128x1024xf32, #tpu.memory_space<vmem>>, vector<128x1024xf32>
    tpu.vector_store %arg8[%c0_20, %c0_21], %30 {strides = array<i32>} : memref<128x1024xf32, #tpu.memory_space<vmem>>, vector<128x1024xf32>,
    return
  }
  func.func @transform_0(%arg0: i32) -> (i32, i32) {
    %c0_i32 = arith.constant 0 : i32
    %c0_i32_0 = arith.constant 0 : i32
    return %arg0, %c0_i32 : i32, i32
  }
  func.func @transform_1(%arg0: i32) -> (i32, i32) {
    %c0_i32 = arith.constant 0 : i32
    %c0_i32_0 = arith.constant 0 : i32
    %c0_i32_1 = arith.constant 0 : i32
    return %c0_i32, %c0_i32_0 : i32, i32
  }
  func.func @transform_2(%arg0: i32) -> (i32, i32) {
    %c0_i32 = arith.constant 0 : i32
    %c0_i32_0 = arith.constant 0 : i32
    %c0_i32_1 = arith.constant 0 : i32
    return %c0_i32, %c0_i32_0 : i32, i32
  }
  func.func @transform_3(%arg0: i32) -> (i32, i32) {
    %c0_i32 = arith.constant 0 : i32
    %c0_i32_0 = arith.constant 0 : i32
    %c0_i32_1 = arith.constant 0 : i32
    return %c0_i32, %c0_i32_0 : i32, i32
  }
  func.func @transform_4(%arg0: i32) -> (i32, i32) {
    %c0_i32 = arith.constant 0 : i32
    %c0_i32_0 = arith.constant 0 : i32
    %c0_i32_1 = arith.constant 0 : i32
    return %c0_i32, %c0_i32_0 : i32, i32
  }
  func.func @transform_5(%arg0: i32) -> (i32, i32) {
    %c0_i32 = arith.constant 0 : i32
    %c0_i32_0 = arith.constant 0 : i32
    %c0_i32_1 = arith.constant 0 : i32
    return %c0_i32, %c0_i32_0 : i32, i32
  }
  func.func @transform_6(%arg0: i32) -> (i32, i32) {
    %c0_i32 = arith.constant 0 : i32
    %c0_i32_0 = arith.constant 0 : i32
    %c0_i32_1 = arith.constant 0 : i32
    return %c0_i32, %c0_i32_0 : i32, i32
  }
  func.func @transform_7(%arg0: i32) -> (i32, i32) {
    %c0_i32 = arith.constant 0 : i32
    %c0_i32_0 = arith.constant 0 : i32
    return %arg0, %c0_i32 : i32, i32
  }
}

</mosaic_0001>

<llo_original>
// kernel: tpu_custom_call.1
$region0: #{tpu_custom_call.1}
  #allocation0 [shape = 'u32[]', space=smem, size = 0x4, offset = 0x4, fixed_abs, tag = 'smem constant byte address 0x4 - core index']
  #allocation1 [shape = 'u32[72,128]{1,0:T(1,128)}', space=vmem, size = 0x9000, scoped, tag = 'internal scratch']
  %s0 = inlined_call_operand.hbm [shape: f32[256,1024], index: 0, kind: input, shape index: {}]
  %s1 = inlined_call_operand.hbm [shape: bf16[1024,256], index: 1, kind: input, shape index: {}]
  %s2 = inlined_call_operand.hbm [shape: f32[1,256], index: 2, kind: input, shape index: {}]
  %s3 = inlined_call_operand.hbm [shape: bf16[256,256], index: 3, kind: input, shape index: {}]
  %s4 = inlined_call_operand.vmem [shape: f32[1,256], index: 4, kind: input, shape index: {}]
  %s5 = inlined_call_operand.hbm [shape: bf16[256,1024], index: 5, kind: input, shape index: {}]
  %s6 = inlined_call_operand.hbm [shape: f32[1,1024], index: 6, kind: input, shape index: {}]
  %s7 = inlined_call_operand.hbm [shape: f32[256,1024], index: 7, kind: output, shape index: {}]
  %s8 = sld [smem:[#allocation0]]
  $region85: #{tpu_custom_call.1} parent=0
    _
  %s10 = ssub.s32 1, %s8
  %s11 = scalar_select 0, %s10, %s8
  $region1: #{tpu_custom_call.1} parent=0
    #allocation2 [shape = 'u8[1048576]{0}', space=vmem, size = 0x100000, scoped, tag = 'input window, operand 0']
    #allocation3 [shape = 's32[2]{0}', space=sflag, size = 0x8, scoped, tag = 'scoped memory for tpu_custom_call.1']
    #allocation4 [shape = 's32[2]{0}', space=sflag, size = 0x8, scoped, tag = 'scoped memory for tpu_custom_call.1']
    #allocation5 [shape = 'u8[524288]{0}', space=vmem, size = 0x80000, scoped, tag = 'input window, operand 1, single buffered']
    #allocation6 [shape = 's32[1]{0}', space=sflag, size = 0x4, scoped, tag = 'scoped memory for tpu_custom_call.1']
    #allocation7 [shape = 'u8[1024]{0}', space=vmem, size = 0x400, scoped, tag = 'input window, operand 2, single buffered']
    #allocation8 [shape = 'u8[131072]{0}', space=vmem, size = 0x20000, scoped, tag = 'input window, operand 3, single buffered']
    #allocation9 [shape = 's32[1]{0}', space=sflag, size = 0x4, scoped, tag = 'scoped memory for tpu_custom_call.1']
    #allocation10 [shape = 'u8[524288]{0}', space=vmem, size = 0x80000, scoped, tag = 'input window, operand 5, single buffered']
    #allocation11 [shape = 'u8[4096]{0}', space=vmem, size = 0x1000, scoped, tag = 'input window, operand 6, single buffered']
    #allocation12 [shape = 's32[1]{0}', space=sflag, size = 0x4, scoped, tag = 'scoped memory for tpu_custom_call.1']
    #allocation13 [shape = 'u8[1048576]{0}', space=vmem, size = 0x100000, scoped, tag = 'output window, operand 0']
    %12 = vsyncpa [#allocation3], 0
    %s13 = scalar_lea.sflag [#allocation3], 1
    %14 = vsyncpa %s13, 0
    %15 = vsyncpa [#allocation6], 0
    %16 = vsyncpa [#allocation9], 0
    %17 = vsyncpa [#allocation12], 0
    %18 = vsyncpa [#allocation4], 0
    %s19 = scalar_lea.sflag [#allocation4], 1
    %20 = vsyncpa %s19, 0
    loop: start=0, step=1, limit=4
    $region2: #{tpu_custom_call.1} parent=1 // loop_pre_header
      _
    $region3: #{tpu_custom_call.1} parent=1 // loop_header
      %s22 = sphi 0, %s26
      %p23 = scmp.ge.s32.totalorder %s22, 4
      %s32 = sphi 0, %s34
      %s35 = sphi 0, %s32
      %s36 = sphi 0, %s35
      %s52 = sphi 0, %s36
      %s56 = sphi 0, %s56
      %s58 = sphi 0, %s56
      %s59 = sphi 0, %s58
      %s73 = sphi 0, %s59
      %s77 = sphi 0, %s77
      %s79 = sphi 0, %s77
      %s80 = sphi 0, %s79
      %s94 = sphi 0, %s80
      %s98 = sphi 0, %s98
      %s100 = sphi 0, %s98
      %s101 = sphi 0, %s100
      %s115 = sphi 0, %s101
      %s119 = sphi 0, %s119
      %s121 = sphi 0, %s119
      %s122 = sphi 0, %s121
      %s136 = sphi 0, %s122
      %s140 = sphi 0, %s140
      %s142 = sphi 0, %s140
      %s143 = sphi 0, %s142
      %s157 = sphi 0, %s143
      %s161 = sphi 0, %s161
      %s163 = sphi 0, %s161
      %s164 = sphi 0, %s163
      %s178 = sphi 0, %s164
      %s184 = sphi 0, %s186
      %s187 = sphi 0, %s184
      %s188 = sphi 0, %s187
      %s204 = sphi 0, %s188
    $region4: #{tpu_custom_call.1} parent=1 // loop_header_branch
      %25 = sbr.rel (%p23) target = $region8
    $region5: #{tpu_custom_call.1} parent=1 // loop_body
      %s27 = ssub.s32 %s22, 1
      %s28 = ssub.s32 %s22, 2
      %s29 = sadd.s32 %s22, 1
      %s30 = ssub.s32 %s22, %s29
      %p31 = scmp.eq.s32.totalorder %s30, 0
      %s33 = sadd.s32 %s32, 1
      %s34 = scalar_select %p31, %s32, %s33
      %p37 = pneg %p31
      %p38 = scmp.eq.s32.totalorder %s22, 1
      %p39 = por %p37, %p38
      %p40 = scmp.ne.s32.totalorder %s32, %s35
      %p41 = scmp.eq.s32.totalorder %s22, 0
      %p42 = por %p40, %p41
      %p43 = scmp.ne.s32.totalorder %s32, %s35
      %p44 = scmp.eq.s32.totalorder %s27, 1
      %p45 = por %p43, %p44
      %p46 = scmp.ne.s32.totalorder %s35, %s36
      %p47 = scmp.eq.s32.totalorder %s27, 0
      %p48 = por %p46, %p47
      %p49 = scmp.ne.s32.totalorder %s35, %s36
      %p50 = scmp.eq.s32.totalorder %s28, 1
      %p51 = por %p49, %p50
      %p53 = scmp.ne.s32.totalorder %s36, %s52
      %p54 = scmp.eq.s32.totalorder %s28, 0
      %p55 = por %p53, %p54
      %s57 = sadd.s32 %s56, 1
      %p60 = scmp.eq.s32.totalorder %s22, 1
      %p61 = scmp.ne.s32.totalorder %s56, %s58
      %p62 = scmp.eq.s32.totalorder %s22, 0
      %p63 = por %p61, %p62
      %p64 = scmp.ne.s32.totalorder %s56, %s58
      %p65 = scmp.eq.s32.totalorder %s27, 1
      %p66 = por %p64, %p65
      %p67 = scmp.ne.s32.totalorder %s58, %s59
      %p68 = scmp.eq.s32.totalorder %s27, 0
      %p69 = por %p67, %p68
      %p70 = scmp.ne.s32.totalorder %s58, %s59
      %p71 = scmp.eq.s32.totalorder %s28, 1
      %p72 = por %p70, %p71
      %p74 = scmp.ne.s32.totalorder %s59, %s73
      %p75 = scmp.eq.s32.totalorder %s28, 0
      %p76 = por %p74, %p75
      %s78 = sadd.s32 %s77, 1
      %p81 = scmp.eq.s32.totalorder %s22, 1
      %p82 = scmp.ne.s32.totalorder %s77, %s79
      %p83 = scmp.eq.s32.totalorder %s22, 0
      %p84 = por %p82, %p83
      %p85 = scmp.ne.s32.totalorder %s77, %s79
      %p86 = scmp.eq.s32.totalorder %s27, 1
      %p87 = por %p85, %p86
      %p88 = scmp.ne.s32.totalorder %s79, %s80
      %p89 = scmp.eq.s32.totalorder %s27, 0
      %p90 = por %p88, %p89
      %p91 = scmp.ne.s32.totalorder %s79, %s80
      %p92 = scmp.eq.s32.totalorder %s28, 1
      %p93 = por %p91, %p92
      %p95 = scmp.ne.s32.totalorder %s80, %s94
      %p96 = scmp.eq.s32.totalorder %s28, 0
      %p97 = por %p95, %p96
      %s99 = sadd.s32 %s98, 1
      %p102 = scmp.eq.s32.totalorder %s22, 1
      %p103 = scmp.ne.s32.totalorder %s98, %s100
      %p104 = scmp.eq.s32.totalorder %s22, 0
      %p105 = por %p103, %p104
      %p106 = scmp.ne.s32.totalorder %s98, %s100
      %p107 = scmp.eq.s32.totalorder %s27, 1
      %p108 = por %p106, %p107
      %p109 = scmp.ne.s32.totalorder %s100, %s101
      %p110 = scmp.eq.s32.totalorder %s27, 0
      %p111 = por %p109, %p110
      %p112 = scmp.ne.s32.totalorder %s100, %s101
      %p113 = scmp.eq.s32.totalorder %s28, 1
      %p114 = por %p112, %p113
      %p116 = scmp.ne.s32.totalorder %s101, %s115
      %p117 = scmp.eq.s32.totalorder %s28, 0
      %p118 = por %p116, %p117
      %s120 = sadd.s32 %s119, 1
      %p123 = scmp.eq.s32.totalorder %s22, 1
      %p124 = scmp.ne.s32.totalorder %s119, %s121
      %p125 = scmp.eq.s32.totalorder %s22, 0
      %p126 = por %p124, %p125
      %p127 = scmp.ne.s32.totalorder %s119, %s121
      %p128 = scmp.eq.s32.totalorder %s27, 1
      %p129 = por %p127, %p128
      %p130 = scmp.ne.s32.totalorder %s121, %s122
      %p131 = scmp.eq.s32.totalorder %s27, 0
      %p132 = por %p130, %p131
      %p133 = scmp.ne.s32.totalorder %s121, %s122
      %p134 = scmp.eq.s32.totalorder %s28, 1
      %p135 = por %p133, %p134
      %p137 = scmp.ne.s32.totalorder %s122, %s136
      %p138 = scmp.eq.s32.totalorder %s28, 0
      %p139 = por %p137, %p138
      %s141 = sadd.s32 %s140, 1
      %p144 = scmp.eq.s32.totalorder %s22, 1
      %p145 = scmp.ne.s32.totalorder %s140, %s142
      %p146 = scmp.eq.s32.totalorder %s22, 0
      %p147 = por %p145, %p146
      %p148 = scmp.ne.s32.totalorder %s140, %s142
      %p149 = scmp.eq.s32.totalorder %s27, 1
      %p150 = por %p148, %p149
      %p151 = scmp.ne.s32.totalorder %s142, %s143
      %p152 = scmp.eq.s32.totalorder %s27, 0
      %p153 = por %p151, %p152
      %p154 = scmp.ne.s32.totalorder %s142, %s143
      %p155 = scmp.eq.s32.totalorder %s28, 1
      %p156 = por %p154, %p155
      %p158 = scmp.ne.s32.totalorder %s143, %s157
      %p159 = scmp.eq.s32.totalorder %s28, 0
      %p160 = por %p158, %p159
      %s162 = sadd.s32 %s161, 1
      %p165 = scmp.eq.s32.totalorder %s22, 1
      %p166 = scmp.ne.s32.totalorder %s161, %s163
      %p167 = scmp.eq.s32.totalorder %s22, 0
      %p168 = por %p166, %p167
      %p169 = scmp.ne.s32.totalorder %s161, %s163
      %p170 = scmp.eq.s32.totalorder %s27, 1
      %p171 = por %p169, %p170
      %p172 = scmp.ne.s32.totalorder %s163, %s164
      %p173 = scmp.eq.s32.totalorder %s27, 0
      %p174 = por %p172, %p173
      %p175 = scmp.ne.s32.totalorder %s163, %s164
      %p176 = scmp.eq.s32.totalorder %s28, 1
      %p177 = por %p175, %p176
      %p179 = scmp.ne.s32.totalorder %s164, %s178
      %p180 = scmp.eq.s32.totalorder %s28, 0
      %p181 = por %p179, %p180
      %s182 = ssub.s32 %s22, %s29
      %p183 = scmp.eq.s32.totalorder %s182, 0
      %s185 = sadd.s32 %s184, 1
      %s186 = scalar_select %p183, %s184, %s185
      %p189 = pneg %p183
      %p190 = scmp.eq.s32.totalorder %s22, 1
      %p191 = por %p189, %p190
      %p192 = scmp.ne.s32.totalorder %s184, %s187
      %p193 = scmp.eq.s32.totalorder %s22, 0
      %p194 = por %p192, %p193
      %p195 = scmp.ne.s32.totalorder %s184, %s187
      %p196 = scmp.eq.s32.totalorder %s27, 1
      %p197 = por %p195, %p196
      %p198 = scmp.ne.s32.totalorder %s187, %s188
      %p199 = scmp.eq.s32.totalorder %s27, 0
      %p200 = por %p198, %p199
      %p201 = scmp.ne.s32.totalorder %s187, %s188
      %p202 = scmp.eq.s32.totalorder %s28, 1
      %p203 = por %p201, %p202
      %p205 = scmp.ne.s32.totalorder %s188, %s204
      %p206 = scmp.eq.s32.totalorder %s28, 0
      %p207 = por %p205, %p206
      %p208 = scmp.le.s32.totalorder 1, %s22
      %p209 = scmp.lt.s32.totalorder %s22, 3
      %p210 = pnand %p208, %p209
      %p211 = pneg %p210
      // Predicated region
      $region9: #{tpu_custom_call.1} parent=5 // pred_check
        _
      $region10: #{tpu_custom_call.1} parent=5 // pred_check_branch
        %213 = sbr.rel (%p210) target = $region12
      $region11: #{tpu_custom_call.1} parent=5 // pred_region
        %s214 = ssub.s32 %s22, 1
        // Predicated region
        $region13: #{tpu_custom_call.1} parent=11 // pred_check
          %p215 = pneg %p69
        $region14: #{tpu_custom_call.1} parent=11 // pred_check_branch
          %217 = sbr.rel (%p215) target = $region16
        $region15: #{tpu_custom_call.1} parent=11 // pred_region
          %219 = vsyncadd [#allocation6], 0
          %s220 = sshll.u32 %s1, 4
          %s221 = int_to_ptr.hbm [resolvable:$true] %s220
          %s222 = sshll.u32 [#allocation5], 4
          %s223 = int_to_ptr.vmem [resolvable:$true] %s222
          %228 = dma.hbm_to_vmem [thread:$0]  %s221, 16384, %s223, [#allocation6], 128, 128, 8
        $region16: #{tpu_custom_call.1} parent=11 // pred_fallthru
          _
        // Predicated region
        $region17: #{tpu_custom_call.1} parent=11 // pred_check
          %p229 = pneg %p90
        $region18: #{tpu_custom_call.1} parent=11 // pred_check_branch
          %231 = sbr.rel (%p229) target = $region20
        $region19: #{tpu_custom_call.1} parent=11 // pred_region
          %233 = vsyncadd [#allocation6], 0
          %s235 = sshll.u32 %s2, 4
          %s236 = int_to_ptr.hbm [resolvable:$true] %s235
          %s237 = sshll.u32 [#allocation7], 4
          %s238 = int_to_ptr.vmem [resolvable:$true] %s237
          %240 = dma.hbm_to_vmem [thread:$0]  %s236, 32, %s238, [#allocation6]
        $region20: #{tpu_custom_call.1} parent=11 // pred_fallthru
          _
        // Predicated region
        $region21: #{tpu_custom_call.1} parent=11 // pred_check
          %p241 = pneg %p111
        $region22: #{tpu_custom_call.1} parent=11 // pred_check_branch
          %243 = sbr.rel (%p241) target = $region24
        $region23: #{tpu_custom_call.1} parent=11 // pred_region
          %245 = vsyncadd [#allocation9], 0
          %s246 = sshll.u32 %s3, 4
          %s247 = int_to_ptr.hbm [resolvable:$true] %s246
          %s248 = sshll.u32 [#allocation8], 4
          %s249 = int_to_ptr.vmem [resolvable:$true] %s248
          %254 = dma.hbm_to_vmem [thread:$0]  %s247, 4096, %s249, [#allocation9], 128, 128, 8
        $region24: #{tpu_custom_call.1} parent=11 // pred_fallthru
          _
        // Predicated region
        $region25: #{tpu_custom_call.1} parent=11 // pred_check
          %p255 = pneg %p132
        $region26: #{tpu_custom_call.1} parent=11 // pred_check_branch
          %257 = sbr.rel (%p255) target = $region28
        $region27: #{tpu_custom_call.1} parent=11 // pred_region
          _
        $region28: #{tpu_custom_call.1} parent=11 // pred_fallthru
          _
        // Predicated region
        $region29: #{tpu_custom_call.1} parent=11 // pred_check
          %p258 = pneg %p153
        $region30: #{tpu_custom_call.1} parent=11 // pred_check_branch
          %260 = sbr.rel (%p258) target = $region32
        $region31: #{tpu_custom_call.1} parent=11 // pred_region
          %262 = vsyncadd [#allocation9], 0
          %s263 = sshll.u32 %s5, 4
          %s264 = int_to_ptr.hbm [resolvable:$true] %s263
          %s265 = sshll.u32 [#allocation10], 4
          %s266 = int_to_ptr.vmem [resolvable:$true] %s265
          %271 = dma.hbm_to_vmem [thread:$0]  %s264, 16384, %s266, [#allocation9], 512, 512, 32
        $region32: #{tpu_custom_call.1} parent=11 // pred_fallthru
          _
        // Predicated region
        $region33: #{tpu_custom_call.1} parent=11 // pred_check
          %p272 = pneg %p174
        $region34: #{tpu_custom_call.1} parent=11 // pred_check_branch
          %274 = sbr.rel (%p272) target = $region36
        $region35: #{tpu_custom_call.1} parent=11 // pred_region
          %276 = vsyncadd [#allocation12], 0
          %s278 = sshll.u32 %s6, 4
          %s279 = int_to_ptr.hbm [resolvable:$true] %s278
          %s280 = sshll.u32 [#allocation11], 4
          %s281 = int_to_ptr.vmem [resolvable:$true] %s280
          %283 = dma.hbm_to_vmem [thread:$0]  %s279, 128, %s281, [#allocation12]
        $region36: #{tpu_custom_call.1} parent=11 // pred_fallthru
          _
      $region12: #{tpu_custom_call.1} parent=5 // pred_fallthru
        _
      %p284 = scmp.lt.s32.totalorder %s22, 2
      // Predicated region
      $region37: #{tpu_custom_call.1} parent=5 // pred_check
        %p285 = pneg %p284
      $region38: #{tpu_custom_call.1} parent=5 // pred_check_branch
        %287 = sbr.rel (%p285) target = $region40
      $region39: #{tpu_custom_call.1} parent=5 // pred_region
        // Predicated region
        $region41: #{tpu_custom_call.1} parent=39 // pred_check
          %p288 = pneg %p42
        $region42: #{tpu_custom_call.1} parent=39 // pred_check_branch
          %290 = sbr.rel (%p288) target = $region44
        $region43: #{tpu_custom_call.1} parent=39 // pred_region
          %s291 = sand.u32 %s32, 1
          %s292 = scalar_lea.sflag [#allocation3], %s291
          %s293 = sand.u32 %s32, 1
          %s294 = smul.addr %s293, 1024
          %s295 = scalar_lea.vmem [#allocation2], %s294
          %s296 = smul.u32 16, %s22
          %298 = vsyncadd %s292, 0
          %s299 = smul.addr %s296, 8
          %s300 = smul.addr %s299, 8
          %s301 = scalar_lea.hbm %s0, %s300
          %s302 = sshll.u32 %s301, 4
          %s303 = int_to_ptr.hbm [resolvable:$true] %s302
          %s304 = sshll.u32 %s295, 4
          %s305 = int_to_ptr.vmem [resolvable:$true] %s304
          %310 = dma.hbm_to_vmem [thread:$0]  %s303, 16384, %s305, %s292, 1024, 1024, 64
        $region44: #{tpu_custom_call.1} parent=39 // pred_fallthru
          _
      $region40: #{tpu_custom_call.1} parent=5 // pred_fallthru
        _
      %p311 = scmp.le.s32.totalorder 1, %s22
      %p312 = scmp.lt.s32.totalorder %s22, 3
      %p313 = pnand %p311, %p312
      %p314 = pneg %p313
      // Predicated region
      $region45: #{tpu_custom_call.1} parent=5 // pred_check
        _
      $region46: #{tpu_custom_call.1} parent=5 // pred_check_branch
        %316 = sbr.rel (%p313) target = $region48
      $region47: #{tpu_custom_call.1} parent=5 // pred_region
        %s317 = ssub.s32 %s22, 1
        %s318 = sand.u32 %s35, 1
        %s319 = scalar_lea.sflag [#allocation3], %s318
        %s320 = sand.u32 %s35, 1
        %s321 = smul.addr %s320, 1024
        %s322 = scalar_lea.vmem [#allocation2], %s321
        // Predicated region
        $region49: #{tpu_custom_call.1} parent=47 // pred_check
          %p323 = pneg %p48
        $region50: #{tpu_custom_call.1} parent=47 // pred_check_branch
          %325 = sbr.rel (%p323) target = $region52
        $region51: #{tpu_custom_call.1} parent=47 // pred_region
          %327 = dma.done %s319, 16384
        $region52: #{tpu_custom_call.1} parent=47 // pred_fallthru
          _
        // Predicated region
        $region53: #{tpu_custom_call.1} parent=47 // pred_check
          %p328 = pneg %p69
        $region54: #{tpu_custom_call.1} parent=47 // pred_check_branch
          %330 = sbr.rel (%p328) target = $region56
        $region55: #{tpu_custom_call.1} parent=47 // pred_region
          %332 = dma.done [#allocation6], 16384
        $region56: #{tpu_custom_call.1} parent=47 // pred_fallthru
          _
        // Predicated region
        $region57: #{tpu_custom_call.1} parent=47 // pred_check
          %p333 = pneg %p90
        $region58: #{tpu_custom_call.1} parent=47 // pred_check_branch
          %335 = sbr.rel (%p333) target = $region60
        $region59: #{tpu_custom_call.1} parent=47 // pred_region
          %337 = dma.done [#allocation6], 32
        $region60: #{tpu_custom_call.1} parent=47 // pred_fallthru
          _
        // Predicated region
        $region61: #{tpu_custom_call.1} parent=47 // pred_check
          %p338 = pneg %p111
        $region62: #{tpu_custom_call.1} parent=47 // pred_check_branch
          %340 = sbr.rel (%p338) target = $region64
        $region63: #{tpu_custom_call.1} parent=47 // pred_region
          %342 = dma.done [#allocation9], 4096
        $region64: #{tpu_custom_call.1} parent=47 // pred_fallthru
          _
        // Predicated region
        $region65: #{tpu_custom_call.1} parent=47 // pred_check
          %p343 = pneg %p153
        $region66: #{tpu_custom_call.1} parent=47 // pred_check_branch
          %345 = sbr.rel (%p343) target = $region68
        $region67: #{tpu_custom_call.1} parent=47 // pred_region
          %347 = dma.done [#allocation9], 16384
        $region68: #{tpu_custom_call.1} parent=47 // pred_fallthru
          _
        // Predicated region
        $region69: #{tpu_custom_call.1} parent=47 // pred_check
          %p348 = pneg %p174
        $region70: #{tpu_custom_call.1} parent=47 // pred_check_branch
          %350 = sbr.rel (%p348) target = $region72
        $region71: #{tpu_custom_call.1} parent=47 // pred_region
          %352 = dma.done [#allocation12], 128
        $region72: #{tpu_custom_call.1} parent=47 // pred_fallthru
          _
        %s353 = sand.u32 %s35, 1
        %s354 = scalar_lea.sflag [#allocation3], %s353
        %s355 = sand.u32 %s35, 1
        %s356 = smul.addr %s355, 1024
        %s357 = scalar_lea.vmem [#allocation2], %s356
        %p358 = pneg %p48
        %p359 = pneg %p45
        %p360 = pneg %p69
        %p361 = pneg %p66
        %p362 = pneg %p90
        %p363 = pneg %p87
        %p364 = pneg %p111
        %p365 = pneg %p108
        %p366 = pneg %p132
        %p367 = pneg %p129
        %p368 = pneg %p153
        %p369 = pneg %p150
        %p370 = pneg %p174
        %p371 = pneg %p171
        %p372 = pneg %p200
        %p373 = pneg %p197
        %s374 = sand.u32 %s187, 1
        %s375 = scalar_lea.sflag [#allocation4], %s374
        %s376 = sand.u32 %s187, 1
        %s377 = smul.addr %s376, 1024
        %s378 = scalar_lea.vmem [#allocation13], %s377
        %s379 = smul.u32 16, %s27
        %s380 = smul.u32 16, %s27
        %v381 = vld [vmem:[%s322] sm:$0xff]
        %v382 = vld [vmem:[%s322 + $0x8] sm:$0xff]
        %v383 = vld [vmem:[%s322 + $0x10] sm:$0xff]
        %v384 = vld [vmem:[%s322 + $0x18] sm:$0xff]
        %v385 = vld [vmem:[%s322 + $0x20] sm:$0xff]
        %v386 = vld [vmem:[%s322 + $0x28] sm:$0xff]
        %v387 = vld [vmem:[%s322 + $0x30] sm:$0xff]
        %v388 = vld [vmem:[%s322 + $0x38] sm:$0xff]
        %v389 = vld [vmem:[%s322 + $0x40] sm:$0xff]
        %v390 = vld [vmem:[%s322 + $0x48] sm:$0xff]
        %v391 = vld [vmem:[%s322 + $0x50] sm:$0xff]
        %v392 = vld [vmem:[%s322 + $0x58] sm:$0xff]
        %v393 = vld [vmem:[%s322 + $0x60] sm:$0xff]
        %v394 = vld [vmem:[%s322 + $0x68] sm:$0xff]
        %v395 = vld [vmem:[%s322 + $0x70] sm:$0xff]
        %v396 = vld [vmem:[%s322 + $0x78] sm:$0xff]
        %v397 = vld [vmem:[%s322 + $0x80] sm:$0xff]
        %v398 = vld [vmem:[%s322 + $0x88] sm:$0xff]
        %v399 = vld [vmem:[%s322 + $0x90] sm:$0xff]
        %v400 = vld [vmem:[%s322 + $0x98] sm:$0xff]
        %v401 = vld [vmem:[%s322 + $0xa0] sm:$0xff]
        %v402 = vld [vmem:[%s322 + $0xa8] sm:$0xff]
        %v403 = vld [vmem:[%s322 + $0xb0] sm:$0xff]
        %v404 = vld [vmem:[%s322 + $0xb8] sm:$0xff]
        %v405 = vld [vmem:[%s322 + $0xc0] sm:$0xff]
        %v406 = vld [vmem:[%s322 + $0xc8] sm:$0xff]
        %v407 = vld [vmem:[%s322 + $0xd0] sm:$0xff]
        %v408 = vld [vmem:[%s322 + $0xd8] sm:$0xff]
        %v409 = vld [vmem:[%s322 + $0xe0] sm:$0xff]
        %v410 = vld [vmem:[%s322 + $0xe8] sm:$0xff]
        %v411 = vld [vmem:[%s322 + $0xf0] sm:$0xff]
        %v412 = vld [vmem:[%s322 + $0xf8] sm:$0xff]
        %v413 = vld [vmem:[%s322 + $0x100] sm:$0xff]
        %v414 = vld [vmem:[%s322 + $0x108] sm:$0xff]
        %v415 = vld [vmem:[%s322 + $0x110] sm:$0xff]
        %v416 = vld [vmem:[%s322 + $0x118] sm:$0xff]
        %v417 = vld [vmem:[%s322 + $0x120] sm:$0xff]
        %v418 = vld [vmem:[%s322 + $0x128] sm:$0xff]
        %v419 = vld [vmem:[%s322 + $0x130] sm:$0xff]
        %v420 = vld [vmem:[%s322 + $0x138] sm:$0xff]
        %v421 = vld [vmem:[%s322 + $0x140] sm:$0xff]
        %v422 = vld [vmem:[%s322 + $0x148] sm:$0xff]
        %v423 = vld [vmem:[%s322 + $0x150] sm:$0xff]
        %v424 = vld [vmem:[%s322 + $0x158] sm:$0xff]
        %v425 = vld [vmem:[%s322 + $0x160] sm:$0xff]
        %v426 = vld [vmem:[%s322 + $0x168] sm:$0xff]
        %v427 = vld [vmem:[%s322 + $0x170] sm:$0xff]
        %v428 = vld [vmem:[%s322 + $0x178] sm:$0xff]
        %v429 = vld [vmem:[%s322 + $0x180] sm:$0xff]
        %v430 = vld [vmem:[%s322 + $0x188] sm:$0xff]
        %v431 = vld [vmem:[%s322 + $0x190] sm:$0xff]
        %v432 = vld [vmem:[%s322 + $0x198] sm:$0xff]
        %v433 = vld [vmem:[%s322 + $0x1a0] sm:$0xff]
        %v434 = vld [vmem:[%s322 + $0x1a8] sm:$0xff]
        %v435 = vld [vmem:[%s322 + $0x1b0] sm:$0xff]
        %v436 = vld [vmem:[%s322 + $0x1b8] sm:$0xff]
        %v437 = vld [vmem:[%s322 + $0x1c0] sm:$0xff]
        %v438 = vld [vmem:[%s322 + $0x1c8] sm:$0xff]
        %v439 = vld [vmem:[%s322 + $0x1d0] sm:$0xff]
        %v440 = vld [vmem:[%s322 + $0x1d8] sm:$0xff]
        %v441 = vld [vmem:[%s322 + $0x1e0] sm:$0xff]
        %v442 = vld [vmem:[%s322 + $0x1e8] sm:$0xff]
        %v443 = vld [vmem:[%s322 + $0x1f0] sm:$0xff]
        %v444 = vld [vmem:[%s322 + $0x1f8] sm:$0xff]
        %v445 = vld [vmem:[%s322 + $0x200] sm:$0xff]
        %v446 = vld [vmem:[%s322 + $0x208] sm:$0xff]
        %v447 = vld [vmem:[%s322 + $0x210] sm:$0xff]
        %v448 = vld [vmem:[%s322 + $0x218] sm:$0xff]
        %v449 = vld [vmem:[%s322 + $0x220] sm:$0xff]
        %v450 = vld [vmem:[%s322 + $0x228] sm:$0xff]
        %v451 = vld [vmem:[%s322 + $0x230] sm:$0xff]
        %v452 = vld [vmem:[%s322 + $0x238] sm:$0xff]
        %v453 = vld [vmem:[%s322 + $0x240] sm:$0xff]
        %v454 = vld [vmem:[%s322 + $0x248] sm:$0xff]
        %v455 = vld [vmem:[%s322 + $0x250] sm:$0xff]
        %v456 = vld [vmem:[%s322 + $0x258] sm:$0xff]
        %v457 = vld [vmem:[%s322 + $0x260] sm:$0xff]
        %v458 = vld [vmem:[%s322 + $0x268] sm:$0xff]
        %v459 = vld [vmem:[%s322 + $0x270] sm:$0xff]
        %v460 = vld [vmem:[%s322 + $0x278] sm:$0xff]
        %v461 = vld [vmem:[%s322 + $0x280] sm:$0xff]
        %v462 = vld [vmem:[%s322 + $0x288] sm:$0xff]
        %v463 = vld [vmem:[%s322 + $0x290] sm:$0xff]
        %v464 = vld [vmem:[%s322 + $0x298] sm:$0xff]
        %v465 = vld [vmem:[%s322 + $0x2a0] sm:$0xff]
        %v466 = vld [vmem:[%s322 + $0x2a8] sm:$0xff]
        %v467 = vld [vmem:[%s322 + $0x2b0] sm:$0xff]
        %v468 = vld [vmem:[%s322 + $0x2b8] sm:$0xff]
        %v469 = vld [vmem:[%s322 + $0x2c0] sm:$0xff]
        %v470 = vld [vmem:[%s322 + $0x2c8] sm:$0xff]
        %v471 = vld [vmem:[%s322 + $0x2d0] sm:$0xff]
        %v472 = vld [vmem:[%s322 + $0x2d8] sm:$0xff]
        %v473 = vld [vmem:[%s322 + $0x2e0] sm:$0xff]
        %v474 = vld [vmem:[%s322 + $0x2e8] sm:$0xff]
        %v475 = vld [vmem:[%s322 + $0x2f0] sm:$0xff]
        %v476 = vld [vmem:[%s322 + $0x2f8] sm:$0xff]
        %v477 = vld [vmem:[%s322 + $0x300] sm:$0xff]
        %v478 = vld [vmem:[%s322 + $0x308] sm:$0xff]
        %v479 = vld [vmem:[%s322 + $0x310] sm:$0xff]
        %v480 = vld [vmem:[%s322 + $0x318] sm:$0xff]
        %v481 = vld [vmem:[%s322 + $0x320] sm:$0xff]
        %v482 = vld [vmem:[%s322 + $0x328] sm:$0xff]
        %v483 = vld [vmem:[%s322 + $0x330] sm:$0xff]
        %v484 = vld [vmem:[%s322 + $0x338] sm:$0xff]
        %v485 = vld [vmem:[%s322 + $0x340] sm:$0xff]
        %v486 = vld [vmem:[%s322 + $0x348] sm:$0xff]
        %v487 = vld [vmem:[%s322 + $0x350] sm:$0xff]
        %v488 = vld [vmem:[%s322 + $0x358] sm:$0xff]
        %v489 = vld [vmem:[%s322 + $0x360] sm:$0xff]
        %v490 = vld [vmem:[%s322 + $0x368] sm:$0xff]
        %v491 = vld [vmem:[%s322 + $0x370] sm:$0xff]
        %v492 = vld [vmem:[%s322 + $0x378] sm:$0xff]
        %v493 = vld [vmem:[%s322 + $0x380] sm:$0xff]
        %v494 = vld [vmem:[%s322 + $0x388] sm:$0xff]
        %v495 = vld [vmem:[%s322 + $0x390] sm:$0xff]
        %v496 = vld [vmem:[%s322 + $0x398] sm:$0xff]
        %v497 = vld [vmem:[%s322 + $0x3a0] sm:$0xff]
        %v498 = vld [vmem:[%s322 + $0x3a8] sm:$0xff]
        %v499 = vld [vmem:[%s322 + $0x3b0] sm:$0xff]
        %v500 = vld [vmem:[%s322 + $0x3b8] sm:$0xff]
        %v501 = vld [vmem:[%s322 + $0x3c0] sm:$0xff]
        %v502 = vld [vmem:[%s322 + $0x3c8] sm:$0xff]
        %v503 = vld [vmem:[%s322 + $0x3d0] sm:$0xff]
        %v504 = vld [vmem:[%s322 + $0x3d8] sm:$0xff]
        %v505 = vld [vmem:[%s322 + $0x3e0] sm:$0xff]
        %v506 = vld [vmem:[%s322 + $0x3e8] sm:$0xff]
        %v507 = vld [vmem:[%s322 + $0x3f0] sm:$0xff]
        %v508 = vld [vmem:[%s322 + $0x3f8] sm:$0xff]
        %v509 = vld [vmem:[#allocation5] sm:$0xff]
        %v510 = vld [vmem:[#allocation5 + $0x8] sm:$0xff]
        %v511 = vld [vmem:[#allocation5 + $0x10] sm:$0xff]
        %v512 = vld [vmem:[#allocation5 + $0x18] sm:$0xff]
        %v513 = vld [vmem:[#allocation5 + $0x20] sm:$0xff]
        %v514 = vld [vmem:[#allocation5 + $0x28] sm:$0xff]
        %v515 = vld [vmem:[#allocation5 + $0x30] sm:$0xff]
        %v516 = vld [vmem:[#allocation5 + $0x38] sm:$0xff]
        %v517 = vld [vmem:[#allocation5 + $0x40] sm:$0xff]
        %v518 = vld [vmem:[#allocation5 + $0x48] sm:$0xff]
        %v519 = vld [vmem:[#allocation5 + $0x50] sm:$0xff]
        %v520 = vld [vmem:[#allocation5 + $0x58] sm:$0xff]
        %v521 = vld [vmem:[#allocation5 + $0x60] sm:$0xff]
        %v522 = vld [vmem:[#allocation5 + $0x68] sm:$0xff]
        %v523 = vld [vmem:[#allocation5 + $0x70] sm:$0xff]
        %v524 = vld [vmem:[#allocation5 + $0x78] sm:$0xff]
        %v525 = vld [vmem:[#allocation5 + $0x80] sm:$0xff]
        %v526 = vld [vmem:[#allocation5 + $0x88] sm:$0xff]
        %v527 = vld [vmem:[#allocation5 + $0x90] sm:$0xff]
        %v528 = vld [vmem:[#allocation5 + $0x98] sm:$0xff]
        %v529 = vld [vmem:[#allocation5 + $0xa0] sm:$0xff]
        %v530 = vld [vmem:[#allocation5 + $0xa8] sm:$0xff]
        %v531 = vld [vmem:[#allocation5 + $0xb0] sm:$0xff]
        %v532 = vld [vmem:[#allocation5 + $0xb8] sm:$0xff]
        %v533 = vld [vmem:[#allocation5 + $0xc0] sm:$0xff]
        %v534 = vld [vmem:[#allocation5 + $0xc8] sm:$0xff]
        %v535 = vld [vmem:[#allocation5 + $0xd0] sm:$0xff]
        %v536 = vld [vmem:[#allocation5 + $0xd8] sm:$0xff]
        %v537 = vld [vmem:[#allocation5 + $0xe0] sm:$0xff]
        %v538 = vld [vmem:[#allocation5 + $0xe8] sm:$0xff]
        %v539 = vld [vmem:[#allocation5 + $0xf0] sm:$0xff]
        %v540 = vld [vmem:[#allocation5 + $0xf8] sm:$0xff]
        %v541 = vld [vmem:[#allocation5 + $0x100] sm:$0xff]
        %v542 = vld [vmem:[#allocation5 + $0x108] sm:$0xff]
        %v543 = vld [vmem:[#allocation5 + $0x110] sm:$0xff]
        %v544 = vld [vmem:[#allocation5 + $0x118] sm:$0xff]
        %v545 = vld [vmem:[#allocation5 + $0x120] sm:$0xff]
        %v546 = vld [vmem:[#allocation5 + $0x128] sm:$0xff]
        %v547 = vld [vmem:[#allocation5 + $0x130] sm:$0xff]
        %v548 = vld [vmem:[#allocation5 + $0x138] sm:$0xff]
        %v549 = vld [vmem:[#allocation5 + $0x140] sm:$0xff]
        %v550 = vld [vmem:[#allocation5 + $0x148] sm:$0xff]
        %v551 = vld [vmem:[#allocation5 + $0x150] sm:$0xff]
        %v552 = vld [vmem:[#allocation5 + $0x158] sm:$0xff]
        %v553 = vld [vmem:[#allocation5 + $0x160] sm:$0xff]
        %v554 = vld [vmem:[#allocation5 + $0x168] sm:$0xff]
        %v555 = vld [vmem:[#allocation5 + $0x170] sm:$0xff]
        %v556 = vld [vmem:[#allocation5 + $0x178] sm:$0xff]
        %v557 = vld [vmem:[#allocation5 + $0x180] sm:$0xff]
        %v558 = vld [vmem:[#allocation5 + $0x188] sm:$0xff]
        %v559 = vld [vmem:[#allocation5 + $0x190] sm:$0xff]
        %v560 = vld [vmem:[#allocation5 + $0x198] sm:$0xff]
        %v561 = vld [vmem:[#allocation5 + $0x1a0] sm:$0xff]
        %v562 = vld [vmem:[#allocation5 + $0x1a8] sm:$0xff]
        %v563 = vld [vmem:[#allocation5 + $0x1b0] sm:$0xff]
        %v564 = vld [vmem:[#allocation5 + $0x1b8] sm:$0xff]
        %v565 = vld [vmem:[#allocation5 + $0x1c0] sm:$0xff]
        %v566 = vld [vmem:[#allocation5 + $0x1c8] sm:$0xff]
        %v567 = vld [vmem:[#allocation5 + $0x1d0] sm:$0xff]
        %v568 = vld [vmem:[#allocation5 + $0x1d8] sm:$0xff]
        %v569 = vld [vmem:[#allocation5 + $0x1e0] sm:$0xff]
        %v570 = vld [vmem:[#allocation5 + $0x1e8] sm:$0xff]
        %v571 = vld [vmem:[#allocation5 + $0x1f0] sm:$0xff]
        %v572 = vld [vmem:[#allocation5 + $0x1f8] sm:$0xff]
        %v573 = vld [vmem:[#allocation5 + $0x200] sm:$0xff]
        %v574 = vld [vmem:[#allocation5 + $0x208] sm:$0xff]
        %v575 = vld [vmem:[#allocation5 + $0x210] sm:$0xff]
        %v576 = vld [vmem:[#allocation5 + $0x218] sm:$0xff]
        %v577 = vld [vmem:[#allocation5 + $0x220] sm:$0xff]
        %v578 = vld [vmem:[#allocation5 + $0x228] sm:$0xff]
        %v579 = vld [vmem:[#allocation5 + $0x230] sm:$0xff]
        %v580 = vld [vmem:[#allocation5 + $0x238] sm:$0xff]
        %v581 = vld [vmem:[#allocation5 + $0x240] sm:$0xff]
        %v582 = vld [vmem:[#allocation5 + $0x248] sm:$0xff]
        %v583 = vld [vmem:[#allocation5 + $0x250] sm:$0xff]
        %v584 = vld [vmem:[#allocation5 + $0x258] sm:$0xff]
        %v585 = vld [vmem:[#allocation5 + $0x260] sm:$0xff]
        %v586 = vld [vmem:[#allocation5 + $0x268] sm:$0xff]
        %v587 = vld [vmem:[#allocation5 + $0x270] sm:$0xff]
        %v588 = vld [vmem:[#allocation5 + $0x278] sm:$0xff]
        %v589 = vld [vmem:[#allocation5 + $0x280] sm:$0xff]
        %v590 = vld [vmem:[#allocation5 + $0x288] sm:$0xff]
        %v591 = vld [vmem:[#allocation5 + $0x290] sm:$0xff]
        %v592 = vld [vmem:[#allocation5 + $0x298] sm:$0xff]
        %v593 = vld [vmem:[#allocation5 + $0x2a0] sm:$0xff]
        %v594 = vld [vmem:[#allocation5 + $0x2a8] sm:$0xff]
        %v595 = vld [vmem:[#allocation5 + $0x2b0] sm:$0xff]
        %v596 = vld [vmem:[#allocation5 + $0x2b8] sm:$0xff]
        %v597 = vld [vmem:[#allocation5 + $0x2c0] sm:$0xff]
        %v598 = vld [vmem:[#allocation5 + $0x2c8] sm:$0xff]
        %v599 = vld [vmem:[#allocation5 + $0x2d0] sm:$0xff]
        %v600 = vld [vmem:[#allocation5 + $0x2d8] sm:$0xff]
        %v601 = vld [vmem:[#allocation5 + $0x2e0] sm:$0xff]
        %v602 = vld [vmem:[#allocation5 + $0x2e8] sm:$0xff]
        %v603 = vld [vmem:[#allocation5 + $0x2f0] sm:$0xff]
        %v604 = vld [vmem:[#allocation5 + $0x2f8] sm:$0xff]
        %v605 = vld [vmem:[#allocation5 + $0x300] sm:$0xff]
        %v606 = vld [vmem:[#allocation5 + $0x308] sm:$0xff]
        %v607 = vld [vmem:[#allocation5 + $0x310] sm:$0xff]
        %v608 = vld [vmem:[#allocation5 + $0x318] sm:$0xff]
        %v609 = vld [vmem:[#allocation5 + $0x320] sm:$0xff]
        %v610 = vld [vmem:[#allocation5 + $0x328] sm:$0xff]
        %v611 = vld [vmem:[#allocation5 + $0x330] sm:$0xff]
        %v612 = vld [vmem:[#allocation5 + $0x338] sm:$0xff]
        %v613 = vld [vmem:[#allocation5 + $0x340] sm:$0xff]
        %v614 = vld [vmem:[#allocation5 + $0x348] sm:$0xff]
        %v615 = vld [vmem:[#allocation5 + $0x350] sm:$0xff]
        %v616 = vld [vmem:[#allocation5 + $0x358] sm:$0xff]
        %v617 = vld [vmem:[#allocation5 + $0x360] sm:$0xff]
        %v618 = vld [vmem:[#allocation5 + $0x368] sm:$0xff]
        %v619 = vld [vmem:[#allocation5 + $0x370] sm:$0xff]
        %v620 = vld [vmem:[#allocation5 + $0x378] sm:$0xff]
        %v621 = vld [vmem:[#allocation5 + $0x380] sm:$0xff]
        %v622 = vld [vmem:[#allocation5 + $0x388] sm:$0xff]
        %v623 = vld [vmem:[#allocation5 + $0x390] sm:$0xff]
        %v624 = vld [vmem:[#allocation5 + $0x398] sm:$0xff]
        %v625 = vld [vmem:[#allocation5 + $0x3a0] sm:$0xff]
        %v626 = vld [vmem:[#allocation5 + $0x3a8] sm:$0xff]
        %v627 = vld [vmem:[#allocation5 + $0x3b0] sm:$0xff]
        %v628 = vld [vmem:[#allocation5 + $0x3b8] sm:$0xff]
        %v629 = vld [vmem:[#allocation5 + $0x3c0] sm:$0xff]
        %v630 = vld [vmem:[#allocation5 + $0x3c8] sm:$0xff]
        %v631 = vld [vmem:[#allocation5 + $0x3d0] sm:$0xff]
        %v632 = vld [vmem:[#allocation5 + $0x3d8] sm:$0xff]
        %v633 = vld [vmem:[#allocation5 + $0x3e0] sm:$0xff]
        %v634 = vld [vmem:[#allocation5 + $0x3e8] sm:$0xff]
        %v635 = vld [vmem:[#allocation5 + $0x3f0] sm:$0xff]
        %v636 = vld [vmem:[#allocation5 + $0x3f8] sm:$0xff]
        %v637 = vld [vmem:[#allocation7] sm:$0x3]
        %v638 = vpack.c.bf16 %v389, %v381
        %v639 = vpack.c.bf16 %v390, %v382
        %v640 = vpack.c.bf16 %v391, %v383
        %v641 = vpack.c.bf16 %v392, %v384
        %v642 = vpack.c.bf16 %v393, %v385
        %v643 = vpack.c.bf16 %v394, %v386
        %v644 = vpack.c.bf16 %v395, %v387
        %v645 = vpack.c.bf16 %v396, %v388
        %v646 = vpack.c.bf16 %v405, %v397
        %v647 = vpack.c.bf16 %v406, %v398
        %v648 = vpack.c.bf16 %v407, %v399
        %v649 = vpack.c.bf16 %v408, %v400
        %v650 = vpack.c.bf16 %v409, %v401
        %v651 = vpack.c.bf16 %v410, %v402
        %v652 = vpack.c.bf16 %v411, %v403
        %v653 = vpack.c.bf16 %v412, %v404
        %v654 = vpack.c.bf16 %v421, %v413
        %v655 = vpack.c.bf16 %v422, %v414
        %v656 = vpack.c.bf16 %v423, %v415
        %v657 = vpack.c.bf16 %v424, %v416
        %v658 = vpack.c.bf16 %v425, %v417
        %v659 = vpack.c.bf16 %v426, %v418
        %v660 = vpack.c.bf16 %v427, %v419
        %v661 = vpack.c.bf16 %v428, %v420
        %v662 = vpack.c.bf16 %v437, %v429
        %v663 = vpack.c.bf16 %v438, %v430
        %v664 = vpack.c.bf16 %v439, %v431
        %v665 = vpack.c.bf16 %v440, %v432
        %v666 = vpack.c.bf16 %v441, %v433
        %v667 = vpack.c.bf16 %v442, %v434
        %v668 = vpack.c.bf16 %v443, %v435
        %v669 = vpack.c.bf16 %v444, %v436
        %v670 = vpack.c.bf16 %v453, %v445
        %v671 = vpack.c.bf16 %v454, %v446
        %v672 = vpack.c.bf16 %v455, %v447
        %v673 = vpack.c.bf16 %v456, %v448
        %v674 = vpack.c.bf16 %v457, %v449
        %v675 = vpack.c.bf16 %v458, %v450
        %v676 = vpack.c.bf16 %v459, %v451
        %v677 = vpack.c.bf16 %v460, %v452
        %v678 = vpack.c.bf16 %v469, %v461
        %v679 = vpack.c.bf16 %v470, %v462
        %v680 = vpack.c.bf16 %v471, %v463
        %v681 = vpack.c.bf16 %v472, %v464
        %v682 = vpack.c.bf16 %v473, %v465
        %v683 = vpack.c.bf16 %v474, %v466
        %v684 = vpack.c.bf16 %v475, %v467
        %v685 = vpack.c.bf16 %v476, %v468
        %v686 = vpack.c.bf16 %v485, %v477
        %v687 = vpack.c.bf16 %v486, %v478
        %v688 = vpack.c.bf16 %v487, %v479
        %v689 = vpack.c.bf16 %v488, %v480
        %v690 = vpack.c.bf16 %v489, %v481
        %v691 = vpack.c.bf16 %v490, %v482
        %v692 = vpack.c.bf16 %v491, %v483
        %v693 = vpack.c.bf16 %v492, %v484
        %v694 = vpack.c.bf16 %v501, %v493
        %v695 = vpack.c.bf16 %v502, %v494
        %v696 = vpack.c.bf16 %v503, %v495
        %v697 = vpack.c.bf16 %v504, %v496
        %v698 = vpack.c.bf16 %v505, %v497
        %v699 = vpack.c.bf16 %v506, %v498
        %v700 = vpack.c.bf16 %v507, %v499
        %v701 = vpack.c.bf16 %v508, %v500
        %v703 = vperm.slane %v637, 0
        %v704 = vperm.slane %v637, 1
        %v835 = vunpack.c.l.b16 %v509
        %v836 = vunpack.c.h.b16 %v509
        %v837 = vunpack.c.l.b16 %v510
        %v838 = vunpack.c.h.b16 %v510
        %v839 = vunpack.c.l.b16 %v511
        %v840 = vunpack.c.h.b16 %v511
        %v841 = vunpack.c.l.b16 %v512
        %v842 = vunpack.c.h.b16 %v512
        %v843 = vunpack.c.l.b16 %v513
        %v844 = vunpack.c.h.b16 %v513
        %v845 = vunpack.c.l.b16 %v514
        %v846 = vunpack.c.h.b16 %v514
        %v847 = vunpack.c.l.b16 %v515
        %v848 = vunpack.c.h.b16 %v515
        %v849 = vunpack.c.l.b16 %v516
        %v850 = vunpack.c.h.b16 %v516
        %v851 = vunpack.c.l.b16 %v517
        %v852 = vunpack.c.h.b16 %v517
        %v853 = vunpack.c.l.b16 %v518
        %v854 = vunpack.c.h.b16 %v518
        %v855 = vunpack.c.l.b16 %v519
        %v856 = vunpack.c.h.b16 %v519
        %v857 = vunpack.c.l.b16 %v520
        %v858 = vunpack.c.h.b16 %v520
        %v859 = vunpack.c.l.b16 %v521
        %v860 = vunpack.c.h.b16 %v521
        %v861 = vunpack.c.l.b16 %v522
        %v862 = vunpack.c.h.b16 %v522
        %v863 = vunpack.c.l.b16 %v523
        %v864 = vunpack.c.h.b16 %v523
        %v865 = vunpack.c.l.b16 %v524
        %v866 = vunpack.c.h.b16 %v524
        %v867 = vunpack.c.l.b16 %v525
        %v868 = vunpack.c.h.b16 %v525
        %v869 = vunpack.c.l.b16 %v526
        %v870 = vunpack.c.h.b16 %v526
        %v871 = vunpack.c.l.b16 %v527
        %v872 = vunpack.c.h.b16 %v527
        %v873 = vunpack.c.l.b16 %v528
        %v874 = vunpack.c.h.b16 %v528
        %v875 = vunpack.c.l.b16 %v529
        %v876 = vunpack.c.h.b16 %v529
        %v877 = vunpack.c.l.b16 %v530
        %v878 = vunpack.c.h.b16 %v530
        %v879 = vunpack.c.l.b16 %v531
        %v880 = vunpack.c.h.b16 %v531
        %v881 = vunpack.c.l.b16 %v532
        %v882 = vunpack.c.h.b16 %v532
        %v883 = vunpack.c.l.b16 %v533
        %v884 = vunpack.c.h.b16 %v533
        %v885 = vunpack.c.l.b16 %v534
        %v886 = vunpack.c.h.b16 %v534
        %v887 = vunpack.c.l.b16 %v535
        %v888 = vunpack.c.h.b16 %v535
        %v889 = vunpack.c.l.b16 %v536
        %v890 = vunpack.c.h.b16 %v536
        %v891 = vunpack.c.l.b16 %v537
        %v892 = vunpack.c.h.b16 %v537
        %v893 = vunpack.c.l.b16 %v538
        %v894 = vunpack.c.h.b16 %v538
        %v895 = vunpack.c.l.b16 %v539
        %v896 = vunpack.c.h.b16 %v539
        %v897 = vunpack.c.l.b16 %v540
        %v898 = vunpack.c.h.b16 %v540
        %v899 = vunpack.c.l.b16 %v541
        %v900 = vunpack.c.h.b16 %v541
        %v901 = vunpack.c.l.b16 %v542
        %v902 = vunpack.c.h.b16 %v542
        %v903 = vunpack.c.l.b16 %v543
        %v904 = vunpack.c.h.b16 %v543
        %v905 = vunpack.c.l.b16 %v544
        %v906 = vunpack.c.h.b16 %v544
        %v907 = vunpack.c.l.b16 %v545
        %v908 = vunpack.c.h.b16 %v545
        %v909 = vunpack.c.l.b16 %v546
        %v910 = vunpack.c.h.b16 %v546
        %v911 = vunpack.c.l.b16 %v547
        %v912 = vunpack.c.h.b16 %v547
        %v913 = vunpack.c.l.b16 %v548
        %v914 = vunpack.c.h.b16 %v548
        %v915 = vunpack.c.l.b16 %v549
        %v916 = vunpack.c.h.b16 %v549
        %v917 = vunpack.c.l.b16 %v550
        %v918 = vunpack.c.h.b16 %v550
        %v919 = vunpack.c.l.b16 %v551
        %v920 = vunpack.c.h.b16 %v551
        %v921 = vunpack.c.l.b16 %v552
        %v922 = vunpack.c.h.b16 %v552
        %v923 = vunpack.c.l.b16 %v553
        %v924 = vunpack.c.h.b16 %v553
        %v925 = vunpack.c.l.b16 %v554
        %v926 = vunpack.c.h.b16 %v554
        %v927 = vunpack.c.l.b16 %v555
        %v928 = vunpack.c.h.b16 %v555
        %v929 = vunpack.c.l.b16 %v556
        %v930 = vunpack.c.h.b16 %v556
        %v931 = vunpack.c.l.b16 %v557
        %v932 = vunpack.c.h.b16 %v557
        %v933 = vunpack.c.l.b16 %v558
        %v934 = vunpack.c.h.b16 %v558
        %v935 = vunpack.c.l.b16 %v559
        %v936 = vunpack.c.h.b16 %v559
        %v937 = vunpack.c.l.b16 %v560
        %v938 = vunpack.c.h.b16 %v560
        %v939 = vunpack.c.l.b16 %v561
        %v940 = vunpack.c.h.b16 %v561
        %v941 = vunpack.c.l.b16 %v562
        %v942 = vunpack.c.h.b16 %v562
        %v943 = vunpack.c.l.b16 %v563
        %v944 = vunpack.c.h.b16 %v563
        %v945 = vunpack.c.l.b16 %v564
        %v946 = vunpack.c.h.b16 %v564
        %v947 = vunpack.c.l.b16 %v565
        %v948 = vunpack.c.h.b16 %v565
        %v949 = vunpack.c.l.b16 %v566
        %v950 = vunpack.c.h.b16 %v566
        %v951 = vunpack.c.l.b16 %v567
        %v952 = vunpack.c.h.b16 %v567
        %v953 = vunpack.c.l.b16 %v568
        %v954 = vunpack.c.h.b16 %v568
        %v955 = vunpack.c.l.b16 %v569
        %v956 = vunpack.c.h.b16 %v569
        %v957 = vunpack.c.l.b16 %v570
        %v958 = vunpack.c.h.b16 %v570
        %v959 = vunpack.c.l.b16 %v571
        %v960 = vunpack.c.h.b16 %v571
        %v961 = vunpack.c.l.b16 %v572
        %v962 = vunpack.c.h.b16 %v572
        %v963 = vunpack.c.l.b16 %v573
        %v964 = vunpack.c.h.b16 %v573
        %v965 = vunpack.c.l.b16 %v574
        %v966 = vunpack.c.h.b16 %v574
        %v967 = vunpack.c.l.b16 %v575
        %v968 = vunpack.c.h.b16 %v575
        %v969 = vunpack.c.l.b16 %v576
        %v970 = vunpack.c.h.b16 %v576
        %v971 = vunpack.c.l.b16 %v577
        %v972 = vunpack.c.h.b16 %v577
        %v973 = vunpack.c.l.b16 %v578
        %v974 = vunpack.c.h.b16 %v578
        %v975 = vunpack.c.l.b16 %v579
        %v976 = vunpack.c.h.b16 %v579
        %v977 = vunpack.c.l.b16 %v580
        %v978 = vunpack.c.h.b16 %v580
        %v979 = vunpack.c.l.b16 %v581
        %v980 = vunpack.c.h.b16 %v581
        %v981 = vunpack.c.l.b16 %v582
        %v982 = vunpack.c.h.b16 %v582
        %v983 = vunpack.c.l.b16 %v583
        %v984 = vunpack.c.h.b16 %v583
        %v985 = vunpack.c.l.b16 %v584
        %v986 = vunpack.c.h.b16 %v584
        %v987 = vunpack.c.l.b16 %v585
        %v988 = vunpack.c.h.b16 %v585
        %v989 = vunpack.c.l.b16 %v586
        %v990 = vunpack.c.h.b16 %v586
        %v991 = vunpack.c.l.b16 %v587
        %v992 = vunpack.c.h.b16 %v587
        %v993 = vunpack.c.l.b16 %v588
        %v994 = vunpack.c.h.b16 %v588
        %v995 = vunpack.c.l.b16 %v589
        %v996 = vunpack.c.h.b16 %v589
        %v997 = vunpack.c.l.b16 %v590
        %v998 = vunpack.c.h.b16 %v590
        %v999 = vunpack.c.l.b16 %v591
        %v1000 = vunpack.c.h.b16 %v591
        %v1001 = vunpack.c.l.b16 %v592
        %v1002 = vunpack.c.h.b16 %v592
        %v1003 = vunpack.c.l.b16 %v593
        %v1004 = vunpack.c.h.b16 %v593
        %v1005 = vunpack.c.l.b16 %v594
        %v1006 = vunpack.c.h.b16 %v594
        %v1007 = vunpack.c.l.b16 %v595
        %v1008 = vunpack.c.h.b16 %v595
        %v1009 = vunpack.c.l.b16 %v596
        %v1010 = vunpack.c.h.b16 %v596
        %v1011 = vunpack.c.l.b16 %v597
        %v1012 = vunpack.c.h.b16 %v597
        %v1013 = vunpack.c.l.b16 %v598
        %v1014 = vunpack.c.h.b16 %v598
        %v1015 = vunpack.c.l.b16 %v599
        %v1016 = vunpack.c.h.b16 %v599
        %v1017 = vunpack.c.l.b16 %v600
        %v1018 = vunpack.c.h.b16 %v600
        %v1019 = vunpack.c.l.b16 %v601
        %v1020 = vunpack.c.h.b16 %v601
        %v1021 = vunpack.c.l.b16 %v602
        %v1022 = vunpack.c.h.b16 %v602
        %v1023 = vunpack.c.l.b16 %v603
        %v1024 = vunpack.c.h.b16 %v603
        %v1025 = vunpack.c.l.b16 %v604
        %v1026 = vunpack.c.h.b16 %v604
        %v1027 = vunpack.c.l.b16 %v605
        %v1028 = vunpack.c.h.b16 %v605
        %v1029 = vunpack.c.l.b16 %v606
        %v1030 = vunpack.c.h.b16 %v606
        %v1031 = vunpack.c.l.b16 %v607
        %v1032 = vunpack.c.h.b16 %v607
        %v1033 = vunpack.c.l.b16 %v608
        %v1034 = vunpack.c.h.b16 %v608
        %v1035 = vunpack.c.l.b16 %v609
        %v1036 = vunpack.c.h.b16 %v609
        %v1037 = vunpack.c.l.b16 %v610
        %v1038 = vunpack.c.h.b16 %v610
        %v1039 = vunpack.c.l.b16 %v611
        %v1040 = vunpack.c.h.b16 %v611
        %v1041 = vunpack.c.l.b16 %v612
        %v1042 = vunpack.c.h.b16 %v612
        %v1043 = vunpack.c.l.b16 %v613
        %v1044 = vunpack.c.h.b16 %v613
        %v1045 = vunpack.c.l.b16 %v614
        %v1046 = vunpack.c.h.b16 %v614
        %v1047 = vunpack.c.l.b16 %v615
        %v1048 = vunpack.c.h.b16 %v615
        %v1049 = vunpack.c.l.b16 %v616
        %v1050 = vunpack.c.h.b16 %v616
        %v1051 = vunpack.c.l.b16 %v617
        %v1052 = vunpack.c.h.b16 %v617
        %v1053 = vunpack.c.l.b16 %v618
        %v1054 = vunpack.c.h.b16 %v618
        %v1055 = vunpack.c.l.b16 %v619
        %v1056 = vunpack.c.h.b16 %v619
        %v1057 = vunpack.c.l.b16 %v620
        %v1058 = vunpack.c.h.b16 %v620
        %v1059 = vunpack.c.l.b16 %v621
        %v1060 = vunpack.c.h.b16 %v621
        %v1061 = vunpack.c.l.b16 %v622
        %v1062 = vunpack.c.h.b16 %v622
        %v1063 = vunpack.c.l.b16 %v623
        %v1064 = vunpack.c.h.b16 %v623
        %v1065 = vunpack.c.l.b16 %v624
        %v1066 = vunpack.c.h.b16 %v624
        %v1067 = vunpack.c.l.b16 %v625
        %v1068 = vunpack.c.h.b16 %v625
        %v1069 = vunpack.c.l.b16 %v626
        %v1070 = vunpack.c.h.b16 %v626
        %v1071 = vunpack.c.l.b16 %v627
        %v1072 = vunpack.c.h.b16 %v627
        %v1073 = vunpack.c.l.b16 %v628
        %v1074 = vunpack.c.h.b16 %v628
        %v1075 = vunpack.c.l.b16 %v629
        %v1076 = vunpack.c.h.b16 %v629
        %v1077 = vunpack.c.l.b16 %v630
        %v1078 = vunpack.c.h.b16 %v630
        %v1079 = vunpack.c.l.b16 %v631
        %v1080 = vunpack.c.h.b16 %v631
        %v1081 = vunpack.c.l.b16 %v632
        %v1082 = vunpack.c.h.b16 %v632
        %v1083 = vunpack.c.l.b16 %v633
        %v1084 = vunpack.c.h.b16 %v633
        %v1085 = vunpack.c.l.b16 %v634
        %v1086 = vunpack.c.h.b16 %v634
        %v1087 = vunpack.c.l.b16 %v635
        %v1088 = vunpack.c.h.b16 %v635
        %v1089 = vunpack.c.l.b16 %v636
        %v1090 = vunpack.c.h.b16 %v636
        %v1091 = vpack.c.b16 %v837, %v835
        %v1092 = vpack.c.b16 %v838, %v836
        %v1093 = vpack.c.b16 %v841, %v839
        %v1094 = vpack.c.b16 %v842, %v840
        %v1095 = vpack.c.b16 %v845, %v843
        %v1096 = vpack.c.b16 %v846, %v844
        %v1097 = vpack.c.b16 %v849, %v847
        %v1098 = vpack.c.b16 %v850, %v848
        %v1099 = vpack.c.b16 %v853, %v851
        %v1100 = vpack.c.b16 %v854, %v852
        %v1101 = vpack.c.b16 %v857, %v855
        %v1102 = vpack.c.b16 %v858, %v856
        %v1103 = vpack.c.b16 %v861, %v859
        %v1104 = vpack.c.b16 %v862, %v860
        %v1105 = vpack.c.b16 %v865, %v863
        %v1106 = vpack.c.b16 %v866, %v864
        %v1107 = vpack.c.b16 %v869, %v867
        %v1108 = vpack.c.b16 %v870, %v868
        %v1109 = vpack.c.b16 %v873, %v871
        %v1110 = vpack.c.b16 %v874, %v872
        %v1111 = vpack.c.b16 %v877, %v875
        %v1112 = vpack.c.b16 %v878, %v876
        %v1113 = vpack.c.b16 %v881, %v879
        %v1114 = vpack.c.b16 %v882, %v880
        %v1115 = vpack.c.b16 %v885, %v883
        %v1116 = vpack.c.b16 %v886, %v884
        %v1117 = vpack.c.b16 %v889, %v887
        %v1118 = vpack.c.b16 %v890, %v888
        %v1119 = vpack.c.b16 %v893, %v891
        %v1120 = vpack.c.b16 %v894, %v892
        %v1121 = vpack.c.b16 %v897, %v895
        %v1122 = vpack.c.b16 %v898, %v896
        %v1123 = vpack.c.b16 %v901, %v899
        %v1124 = vpack.c.b16 %v902, %v900
        %v1125 = vpack.c.b16 %v905, %v903
        %v1126 = vpack.c.b16 %v906, %v904
        %v1127 = vpack.c.b16 %v909, %v907
        %v1128 = vpack.c.b16 %v910, %v908
        %v1129 = vpack.c.b16 %v913, %v911
        %v1130 = vpack.c.b16 %v914, %v912
        %v1131 = vpack.c.b16 %v917, %v915
        %v1132 = vpack.c.b16 %v918, %v916
        %v1133 = vpack.c.b16 %v921, %v919
        %v1134 = vpack.c.b16 %v922, %v920
        %v1135 = vpack.c.b16 %v925, %v923
        %v1136 = vpack.c.b16 %v926, %v924
        %v1137 = vpack.c.b16 %v929, %v927
        %v1138 = vpack.c.b16 %v930, %v928
        %v1139 = vpack.c.b16 %v933, %v931
        %v1140 = vpack.c.b16 %v934, %v932
        %v1141 = vpack.c.b16 %v937, %v935
        %v1142 = vpack.c.b16 %v938, %v936
        %v1143 = vpack.c.b16 %v941, %v939
        %v1144 = vpack.c.b16 %v942, %v940
        %v1145 = vpack.c.b16 %v945, %v943
        %v1146 = vpack.c.b16 %v946, %v944
        %v1147 = vpack.c.b16 %v949, %v947
        %v1148 = vpack.c.b16 %v950, %v948
        %v1149 = vpack.c.b16 %v953, %v951
        %v1150 = vpack.c.b16 %v954, %v952
        %v1151 = vpack.c.b16 %v957, %v955
        %v1152 = vpack.c.b16 %v958, %v956
        %v1153 = vpack.c.b16 %v961, %v959
        %v1154 = vpack.c.b16 %v962, %v960
        %v1155 = vpack.c.b16 %v965, %v963
        %v1156 = vpack.c.b16 %v966, %v964
        %v1157 = vpack.c.b16 %v969, %v967
        %v1158 = vpack.c.b16 %v970, %v968
        %v1159 = vpack.c.b16 %v973, %v971
        %v1160 = vpack.c.b16 %v974, %v972
        %v1161 = vpack.c.b16 %v977, %v975
        %v1162 = vpack.c.b16 %v978, %v976
        %v1163 = vpack.c.b16 %v981, %v979
        %v1164 = vpack.c.b16 %v982, %v980
        %v1165 = vpack.c.b16 %v985, %v983
        %v1166 = vpack.c.b16 %v986, %v984
        %v1167 = vpack.c.b16 %v989, %v987
        %v1168 = vpack.c.b16 %v990, %v988
        %v1169 = vpack.c.b16 %v993, %v991
        %v1170 = vpack.c.b16 %v994, %v992
        %v1171 = vpack.c.b16 %v997, %v995
        %v1172 = vpack.c.b16 %v998, %v996
        %v1173 = vpack.c.b16 %v1001, %v999
        %v1174 = vpack.c.b16 %v1002, %v1000
        %v1175 = vpack.c.b16 %v1005, %v1003
        %v1176 = vpack.c.b16 %v1006, %v1004
        %v1177 = vpack.c.b16 %v1009, %v1007
        %v1178 = vpack.c.b16 %v1010, %v1008
        %v1179 = vpack.c.b16 %v1013, %v1011
        %v1180 = vpack.c.b16 %v1014, %v1012
        %v1181 = vpack.c.b16 %v1017, %v1015
        %v1182 = vpack.c.b16 %v1018, %v1016
        %v1183 = vpack.c.b16 %v1021, %v1019
        %v1184 = vpack.c.b16 %v1022, %v1020
        %v1185 = vpack.c.b16 %v1025, %v1023
        %v1186 = vpack.c.b16 %v1026, %v1024
        %v1187 = vpack.c.b16 %v1029, %v1027
        %v1188 = vpack.c.b16 %v1030, %v1028
        %v1189 = vpack.c.b16 %v1033, %v1031
        %v1190 = vpack.c.b16 %v1034, %v1032
        %v1191 = vpack.c.b16 %v1037, %v1035
        %v1192 = vpack.c.b16 %v1038, %v1036
        %v1193 = vpack.c.b16 %v1041, %v1039
        %v1194 = vpack.c.b16 %v1042, %v1040
        %v1195 = vpack.c.b16 %v1045, %v1043
        %v1196 = vpack.c.b16 %v1046, %v1044
        %v1197 = vpack.c.b16 %v1049, %v1047
        %v1198 = vpack.c.b16 %v1050, %v1048
        %v1199 = vpack.c.b16 %v1053, %v1051
        %v1200 = vpack.c.b16 %v1054, %v1052
        %v1201 = vpack.c.b16 %v1057, %v1055
        %v1202 = vpack.c.b16 %v1058, %v1056
        %v1203 = vpack.c.b16 %v1061, %v1059
        %v1204 = vpack.c.b16 %v1062, %v1060
        %v1205 = vpack.c.b16 %v1065, %v1063
        %v1206 = vpack.c.b16 %v1066, %v1064
        %v1207 = vpack.c.b16 %v1069, %v1067
        %v1208 = vpack.c.b16 %v1070, %v1068
        %v1209 = vpack.c.b16 %v1073, %v1071
        %v1210 = vpack.c.b16 %v1074, %v1072
        %v1211 = vpack.c.b16 %v1077, %v1075
        %v1212 = vpack.c.b16 %v1078, %v1076
        %v1213 = vpack.c.b16 %v1081, %v1079
        %v1214 = vpack.c.b16 %v1082, %v1080
        %v1215 = vpack.c.b16 %v1085, %v1083
        %v1216 = vpack.c.b16 %v1086, %v1084
        %v1217 = vpack.c.b16 %v1089, %v1087
        %v1218 = vpack.c.b16 %v1090, %v1088
        %1347 = vmatpush.bf16.msra.mxu0 %v1105
        %1348 = vmatpush.bf16.msra.mxu0 %v1103
        %1349 = vmatpush.bf16.msra.mxu0 %v1101
        %1350 = vmatpush.bf16.msra.mxu0 %v1099
        %1351 = vmatpush.bf16.msra.mxu0 %v1097
        %1352 = vmatpush.bf16.msra.mxu0 %v1095
        %1353 = vmatpush.bf16.msra.mxu0 %v1093
        %1354 = vmatpush.bf16.msra.mxu0 %v1091
        %1355 = vmatmul.bf16.gmra.mxu0 %v638
        %v1356 = vpop.f32.mrf.mxu0
        %v1357 = vadd.f32 %v703, %v1356
        %v1358 = vpop.f32.mrf.mxu0
        %v1359 = vadd.f32 %v703, %v1358
        %1360 = vmatmul.bf16.gmra.mxu0 %v646
        %v1361 = vpop.f32.mrf.mxu0
        %v1362 = vadd.f32 %v703, %v1361
        %v1363 = vpop.f32.mrf.mxu0
        %v1364 = vadd.f32 %v703, %v1363
        %1365 = vmatmul.bf16.gmra.mxu0 %v654
        %v1366 = vpop.f32.mrf.mxu0
        %v1367 = vadd.f32 %v703, %v1366
        %v1368 = vpop.f32.mrf.mxu0
        %v1369 = vadd.f32 %v703, %v1368
        %1370 = vmatmul.bf16.gmra.mxu0 %v662
        %v1371 = vpop.f32.mrf.mxu0
        %v1372 = vadd.f32 %v703, %v1371
        %v1373 = vpop.f32.mrf.mxu0
        %v1374 = vadd.f32 %v703, %v1373
        %1375 = vmatmul.bf16.gmra.mxu0 %v670
        %v1376 = vpop.f32.mrf.mxu0
        %v1377 = vadd.f32 %v703, %v1376
        %v1378 = vpop.f32.mrf.mxu0
        %v1379 = vadd.f32 %v703, %v1378
        %1380 = vmatmul.bf16.gmra.mxu0 %v678
        %v1381 = vpop.f32.mrf.mxu0
        %v1382 = vadd.f32 %v703, %v1381
        %v1383 = vpop.f32.mrf.mxu0
        %v1384 = vadd.f32 %v703, %v1383
        %1385 = vmatmul.bf16.gmra.mxu0 %v686
        %v1386 = vpop.f32.mrf.mxu0
        %v1387 = vadd.f32 %v703, %v1386
        %v1388 = vpop.f32.mrf.mxu0
        %v1389 = vadd.f32 %v703, %v1388
        %1390 = vmatmul.bf16.gmra.mxu0 %v694
        %v1391 = vpop.f32.mrf.mxu0
        %v1392 = vadd.f32 %v703, %v1391
        %v1393 = vpop.f32.mrf.mxu0
        %v1394 = vadd.f32 %v703, %v1393
        %1395 = vdwg.mxu0
        %1396 = vmatpush.bf16.msra.mxu0 %v1121
        %1397 = vmatpush.bf16.msra.mxu0 %v1119
        %1398 = vmatpush.bf16.msra.mxu0 %v1117
        %1399 = vmatpush.bf16.msra.mxu0 %v1115
        %1400 = vmatpush.bf16.msra.mxu0 %v1113
        %1401 = vmatpush.bf16.msra.mxu0 %v1111
        %1402 = vmatpush.bf16.msra.mxu0 %v1109
        %1403 = vmatpush.bf16.msra.mxu0 %v1107
        %1404 = vmatmul.bf16.gmra.mxu0 %v639
        %v1405 = vpop.f32.mrf.mxu0
        %v1406 = vadd.f32 %v1357, %v1405
        %v1407 = vpop.f32.mrf.mxu0
        %v1408 = vadd.f32 %v1359, %v1407
        %1409 = vmatmul.bf16.gmra.mxu0 %v647
        %v1410 = vpop.f32.mrf.mxu0
        %v1411 = vadd.f32 %v1362, %v1410
        %v1412 = vpop.f32.mrf.mxu0
        %v1413 = vadd.f32 %v1364, %v1412
        %1414 = vmatmul.bf16.gmra.mxu0 %v655
        %v1415 = vpop.f32.mrf.mxu0
        %v1416 = vadd.f32 %v1367, %v1415
        %v1417 = vpop.f32.mrf.mxu0
        %v1418 = vadd.f32 %v1369, %v1417
        %1419 = vmatmul.bf16.gmra.mxu0 %v663
        %v1420 = vpop.f32.mrf.mxu0
        %v1421 = vadd.f32 %v1372, %v1420
        %v1422 = vpop.f32.mrf.mxu0
        %v1423 = vadd.f32 %v1374, %v1422
        %1424 = vmatmul.bf16.gmra.mxu0 %v671
        %v1425 = vpop.f32.mrf.mxu0
        %v1426 = vadd.f32 %v1377, %v1425
        %v1427 = vpop.f32.mrf.mxu0
        %v1428 = vadd.f32 %v1379, %v1427
        %1429 = vmatmul.bf16.gmra.mxu0 %v679
        %v1430 = vpop.f32.mrf.mxu0
        %v1431 = vadd.f32 %v1382, %v1430
        %v1432 = vpop.f32.mrf.mxu0
        %v1433 = vadd.f32 %v1384, %v1432
        %1434 = vmatmul.bf16.gmra.mxu0 %v687
        %v1435 = vpop.f32.mrf.mxu0
        %v1436 = vadd.f32 %v1387, %v1435
        %v1437 = vpop.f32.mrf.mxu0
        %v1438 = vadd.f32 %v1389, %v1437
        %1439 = vmatmul.bf16.gmra.mxu0 %v695
        %v1440 = vpop.f32.mrf.mxu0
        %v1441 = vadd.f32 %v1392, %v1440
        %v1442 = vpop.f32.mrf.mxu0
        %v1443 = vadd.f32 %v1394, %v1442
        %1444 = vdwg.mxu0
        %1445 = vmatpush.bf16.msra.mxu0 %v1137
        %1446 = vmatpush.bf16.msra.mxu0 %v1135
        %1447 = vmatpush.bf16.msra.mxu0 %v1133
        %1448 = vmatpush.bf16.msra.mxu0 %v1131
        %1449 = vmatpush.bf16.msra.mxu0 %v1129
        %1450 = vmatpush.bf16.msra.mxu0 %v1127
        %1451 = vmatpush.bf16.msra.mxu0 %v1125
        %1452 = vmatpush.bf16.msra.mxu0 %v1123
        %1453 = vmatmul.bf16.gmra.mxu0 %v640
        %v1454 = vpop.f32.mrf.mxu0
        %v1455 = vadd.f32 %v1406, %v1454
        %v1456 = vpop.f32.mrf.mxu0
        %v1457 = vadd.f32 %v1408, %v1456
        %1458 = vmatmul.bf16.gmra.mxu0 %v648
        %v1459 = vpop.f32.mrf.mxu0
        %v1460 = vadd.f32 %v1411, %v1459
        %v1461 = vpop.f32.mrf.mxu0
        %v1462 = vadd.f32 %v1413, %v1461
        %1463 = vmatmul.bf16.gmra.mxu0 %v656
        %v1464 = vpop.f32.mrf.mxu0
        %v1465 = vadd.f32 %v1416, %v1464
        %v1466 = vpop.f32.mrf.mxu0
        %v1467 = vadd.f32 %v1418, %v1466
        %1468 = vmatmul.bf16.gmra.mxu0 %v664
        %v1469 = vpop.f32.mrf.mxu0
        %v1470 = vadd.f32 %v1421, %v1469
        %v1471 = vpop.f32.mrf.mxu0
        %v1472 = vadd.f32 %v1423, %v1471
        %1473 = vmatmul.bf16.gmra.mxu0 %v672
        %v1474 = vpop.f32.mrf.mxu0
        %v1475 = vadd.f32 %v1426, %v1474
        %v1476 = vpop.f32.mrf.mxu0
        %v1477 = vadd.f32 %v1428, %v1476
        %1478 = vmatmul.bf16.gmra.mxu0 %v680
        %v1479 = vpop.f32.mrf.mxu0
        %v1480 = vadd.f32 %v1431, %v1479
        %v1481 = vpop.f32.mrf.mxu0
        %v1482 = vadd.f32 %v1433, %v1481
        %1483 = vmatmul.bf16.gmra.mxu0 %v688
        %v1484 = vpop.f32.mrf.mxu0
        %v1485 = vadd.f32 %v1436, %v1484
        %v1486 = vpop.f32.mrf.mxu0
        %v1487 = vadd.f32 %v1438, %v1486
        %1488 = vmatmul.bf16.gmra.mxu0 %v696
        %v1489 = vpop.f32.mrf.mxu0
        %v1490 = vadd.f32 %v1441, %v1489
        %v1491 = vpop.f32.mrf.mxu0
        %v1492 = vadd.f32 %v1443, %v1491
        %1493 = vdwg.mxu0
        %1494 = vmatpush.bf16.msra.mxu0 %v1153
        %1495 = vmatpush.bf16.msra.mxu0 %v1151
        %1496 = vmatpush.bf16.msra.mxu0 %v1149
        %1497 = vmatpush.bf16.msra.mxu0 %v1147
        %1498 = vmatpush.bf16.msra.mxu0 %v1145
        %1499 = vmatpush.bf16.msra.mxu0 %v1143
        %1500 = vmatpush.bf16.msra.mxu0 %v1141
        %1501 = vmatpush.bf16.msra.mxu0 %v1139
        %1502 = vmatmul.bf16.gmra.mxu0 %v641
        %v1503 = vpop.f32.mrf.mxu0
        %v1504 = vadd.f32 %v1455, %v1503
        %v1505 = vpop.f32.mrf.mxu0
        %v1506 = vadd.f32 %v1457, %v1505
        %1507 = vmatmul.bf16.gmra.mxu0 %v649
        %v1508 = vpop.f32.mrf.mxu0
        %v1509 = vadd.f32 %v1460, %v1508
        %v1510 = vpop.f32.mrf.mxu0
        %v1511 = vadd.f32 %v1462, %v1510
        %1512 = vmatmul.bf16.gmra.mxu0 %v657
        %v1513 = vpop.f32.mrf.mxu0
        %v1514 = vadd.f32 %v1465, %v1513
        %v1515 = vpop.f32.mrf.mxu0
        %v1516 = vadd.f32 %v1467, %v1515
        %1517 = vmatmul.bf16.gmra.mxu0 %v665
        %v1518 = vpop.f32.mrf.mxu0
        %v1519 = vadd.f32 %v1470, %v1518
        %v1520 = vpop.f32.mrf.mxu0
        %v1521 = vadd.f32 %v1472, %v1520
        %1522 = vmatmul.bf16.gmra.mxu0 %v673
        %v1523 = vpop.f32.mrf.mxu0
        %v1524 = vadd.f32 %v1475, %v1523
        %v1525 = vpop.f32.mrf.mxu0
        %v1526 = vadd.f32 %v1477, %v1525
        %1527 = vmatmul.bf16.gmra.mxu0 %v681
        %v1528 = vpop.f32.mrf.mxu0
        %v1529 = vadd.f32 %v1480, %v1528
        %v1530 = vpop.f32.mrf.mxu0
        %v1531 = vadd.f32 %v1482, %v1530
        %1532 = vmatmul.bf16.gmra.mxu0 %v689
        %v1533 = vpop.f32.mrf.mxu0
        %v1534 = vadd.f32 %v1485, %v1533
        %v1535 = vpop.f32.mrf.mxu0
        %v1536 = vadd.f32 %v1487, %v1535
        %1537 = vmatmul.bf16.gmra.mxu0 %v697
        %v1538 = vpop.f32.mrf.mxu0
        %v1539 = vadd.f32 %v1490, %v1538
        %v1540 = vpop.f32.mrf.mxu0
        %v1541 = vadd.f32 %v1492, %v1540
        %1542 = vdwg.mxu0
        %1543 = vmatpush.bf16.msra.mxu0 %v1169
        %1544 = vmatpush.bf16.msra.mxu0 %v1167
        %1545 = vmatpush.bf16.msra.mxu0 %v1165
        %1546 = vmatpush.bf16.msra.mxu0 %v1163
        %1547 = vmatpush.bf16.msra.mxu0 %v1161
        %1548 = vmatpush.bf16.msra.mxu0 %v1159
        %1549 = vmatpush.bf16.msra.mxu0 %v1157
        %1550 = vmatpush.bf16.msra.mxu0 %v1155
        %1551 = vmatmul.bf16.gmra.mxu0 %v642
        %v1552 = vpop.f32.mrf.mxu0
        %v1553 = vadd.f32 %v1504, %v1552
        %v1554 = vpop.f32.mrf.mxu0
        %v1555 = vadd.f32 %v1506, %v1554
        %1556 = vmatmul.bf16.gmra.mxu0 %v650
        %v1557 = vpop.f32.mrf.mxu0
        %v1558 = vadd.f32 %v1509, %v1557
        %v1559 = vpop.f32.mrf.mxu0
        %v1560 = vadd.f32 %v1511, %v1559
        %1561 = vmatmul.bf16.gmra.mxu0 %v658
        %v1562 = vpop.f32.mrf.mxu0
        %v1563 = vadd.f32 %v1514, %v1562
        %v1564 = vpop.f32.mrf.mxu0
        %v1565 = vadd.f32 %v1516, %v1564
        %1566 = vmatmul.bf16.gmra.mxu0 %v666
        %v1567 = vpop.f32.mrf.mxu0
        %v1568 = vadd.f32 %v1519, %v1567
        %v1569 = vpop.f32.mrf.mxu0
        %v1570 = vadd.f32 %v1521, %v1569
        %1571 = vmatmul.bf16.gmra.mxu0 %v674
        %v1572 = vpop.f32.mrf.mxu0
        %v1573 = vadd.f32 %v1524, %v1572
        %v1574 = vpop.f32.mrf.mxu0
        %v1575 = vadd.f32 %v1526, %v1574
        %1576 = vmatmul.bf16.gmra.mxu0 %v682
        %v1577 = vpop.f32.mrf.mxu0
        %v1578 = vadd.f32 %v1529, %v1577
        %v1579 = vpop.f32.mrf.mxu0
        %v1580 = vadd.f32 %v1531, %v1579
        %1581 = vmatmul.bf16.gmra.mxu0 %v690
        %v1582 = vpop.f32.mrf.mxu0
        %v1583 = vadd.f32 %v1534, %v1582
        %v1584 = vpop.f32.mrf.mxu0
        %v1585 = vadd.f32 %v1536, %v1584
        %1586 = vmatmul.bf16.gmra.mxu0 %v698
        %v1587 = vpop.f32.mrf.mxu0
        %v1588 = vadd.f32 %v1539, %v1587
        %v1589 = vpop.f32.mrf.mxu0
        %v1590 = vadd.f32 %v1541, %v1589
        %1591 = vdwg.mxu0
        %1592 = vmatpush.bf16.msra.mxu0 %v1185
        %1593 = vmatpush.bf16.msra.mxu0 %v1183
        %1594 = vmatpush.bf16.msra.mxu0 %v1181
        %1595 = vmatpush.bf16.msra.mxu0 %v1179
        %1596 = vmatpush.bf16.msra.mxu0 %v1177
        %1597 = vmatpush.bf16.msra.mxu0 %v1175
        %1598 = vmatpush.bf16.msra.mxu0 %v1173
        %1599 = vmatpush.bf16.msra.mxu0 %v1171
        %1600 = vmatmul.bf16.gmra.mxu0 %v643
        %v1601 = vpop.f32.mrf.mxu0
        %v1602 = vadd.f32 %v1553, %v1601
        %v1603 = vpop.f32.mrf.mxu0
        %v1604 = vadd.f32 %v1555, %v1603
        %1605 = vmatmul.bf16.gmra.mxu0 %v651
        %v1606 = vpop.f32.mrf.mxu0
        %v1607 = vadd.f32 %v1558, %v1606
        %v1608 = vpop.f32.mrf.mxu0
        %v1609 = vadd.f32 %v1560, %v1608
        %1610 = vmatmul.bf16.gmra.mxu0 %v659
        %v1611 = vpop.f32.mrf.mxu0
        %v1612 = vadd.f32 %v1563, %v1611
        %v1613 = vpop.f32.mrf.mxu0
        %v1614 = vadd.f32 %v1565, %v1613
        %1615 = vmatmul.bf16.gmra.mxu0 %v667
        %v1616 = vpop.f32.mrf.mxu0
        %v1617 = vadd.f32 %v1568, %v1616
        %v1618 = vpop.f32.mrf.mxu0
        %v1619 = vadd.f32 %v1570, %v1618
        %1620 = vmatmul.bf16.gmra.mxu0 %v675
        %v1621 = vpop.f32.mrf.mxu0
        %v1622 = vadd.f32 %v1573, %v1621
        %v1623 = vpop.f32.mrf.mxu0
        %v1624 = vadd.f32 %v1575, %v1623
        %1625 = vmatmul.bf16.gmra.mxu0 %v683
        %v1626 = vpop.f32.mrf.mxu0
        %v1627 = vadd.f32 %v1578, %v1626
        %v1628 = vpop.f32.mrf.mxu0
        %v1629 = vadd.f32 %v1580, %v1628
        %1630 = vmatmul.bf16.gmra.mxu0 %v691
        %v1631 = vpop.f32.mrf.mxu0
        %v1632 = vadd.f32 %v1583, %v1631
        %v1633 = vpop.f32.mrf.mxu0
        %v1634 = vadd.f32 %v1585, %v1633
        %1635 = vmatmul.bf16.gmra.mxu0 %v699
        %v1636 = vpop.f32.mrf.mxu0
        %v1637 = vadd.f32 %v1588, %v1636
        %v1638 = vpop.f32.mrf.mxu0
        %v1639 = vadd.f32 %v1590, %v1638
        %1640 = vdwg.mxu0
        %1641 = vmatpush.bf16.msra.mxu0 %v1201
        %1642 = vmatpush.bf16.msra.mxu0 %v1199
        %1643 = vmatpush.bf16.msra.mxu0 %v1197
        %1644 = vmatpush.bf16.msra.mxu0 %v1195
        %1645 = vmatpush.bf16.msra.mxu0 %v1193
        %1646 = vmatpush.bf16.msra.mxu0 %v1191
        %1647 = vmatpush.bf16.msra.mxu0 %v1189
        %1648 = vmatpush.bf16.msra.mxu0 %v1187
        %1649 = vmatmul.bf16.gmra.mxu0 %v644
        %v1650 = vpop.f32.mrf.mxu0
        %v1651 = vadd.f32 %v1602, %v1650
        %v1652 = vpop.f32.mrf.mxu0
        %v1653 = vadd.f32 %v1604, %v1652
        %1654 = vmatmul.bf16.gmra.mxu0 %v652
        %v1655 = vpop.f32.mrf.mxu0
        %v1656 = vadd.f32 %v1607, %v1655
        %v1657 = vpop.f32.mrf.mxu0
        %v1658 = vadd.f32 %v1609, %v1657
        %1659 = vmatmul.bf16.gmra.mxu0 %v660
        %v1660 = vpop.f32.mrf.mxu0
        %v1661 = vadd.f32 %v1612, %v1660
        %v1662 = vpop.f32.mrf.mxu0
        %v1663 = vadd.f32 %v1614, %v1662
        %1664 = vmatmul.bf16.gmra.mxu0 %v668
        %v1665 = vpop.f32.mrf.mxu0
        %v1666 = vadd.f32 %v1617, %v1665
        %v1667 = vpop.f32.mrf.mxu0
        %v1668 = vadd.f32 %v1619, %v1667
        %1669 = vmatmul.bf16.gmra.mxu0 %v676
        %v1670 = vpop.f32.mrf.mxu0
        %v1671 = vadd.f32 %v1622, %v1670
        %v1672 = vpop.f32.mrf.mxu0
        %v1673 = vadd.f32 %v1624, %v1672
        %1674 = vmatmul.bf16.gmra.mxu0 %v684
        %v1675 = vpop.f32.mrf.mxu0
        %v1676 = vadd.f32 %v1627, %v1675
        %v1677 = vpop.f32.mrf.mxu0
        %v1678 = vadd.f32 %v1629, %v1677
        %1679 = vmatmul.bf16.gmra.mxu0 %v692
        %v1680 = vpop.f32.mrf.mxu0
        %v1681 = vadd.f32 %v1632, %v1680
        %v1682 = vpop.f32.mrf.mxu0
        %v1683 = vadd.f32 %v1634, %v1682
        %1684 = vmatmul.bf16.gmra.mxu0 %v700
        %v1685 = vpop.f32.mrf.mxu0
        %v1686 = vadd.f32 %v1637, %v1685
        %v1687 = vpop.f32.mrf.mxu0
        %v1688 = vadd.f32 %v1639, %v1687
        %1689 = vdwg.mxu0
        %1690 = vmatpush.bf16.msra.mxu0 %v1217
        %1691 = vmatpush.bf16.msra.mxu0 %v1215
        %1692 = vmatpush.bf16.msra.mxu0 %v1213
        %1693 = vmatpush.bf16.msra.mxu0 %v1211
        %1694 = vmatpush.bf16.msra.mxu0 %v1209
        %1695 = vmatpush.bf16.msra.mxu0 %v1207
        %1696 = vmatpush.bf16.msra.mxu0 %v1205
        %1697 = vmatpush.bf16.msra.mxu0 %v1203
        %1698 = vmatmul.bf16.gmra.mxu0 %v645
        %v1699 = vpop.f32.mrf.mxu0
        %v1700 = vadd.f32 %v1651, %v1699
        %v1701 = vpop.f32.mrf.mxu0
        %v1702 = vadd.f32 %v1653, %v1701
        %1703 = vmatmul.bf16.gmra.mxu0 %v653
        %v1704 = vpop.f32.mrf.mxu0
        %v1705 = vadd.f32 %v1656, %v1704
        %v1706 = vpop.f32.mrf.mxu0
        %v1707 = vadd.f32 %v1658, %v1706
        %1708 = vmatmul.bf16.gmra.mxu0 %v661
        %v1709 = vpop.f32.mrf.mxu0
        %v1710 = vadd.f32 %v1661, %v1709
        %v1711 = vpop.f32.mrf.mxu0
        %v1712 = vadd.f32 %v1663, %v1711
        %1713 = vmatmul.bf16.gmra.mxu0 %v669
        %v1714 = vpop.f32.mrf.mxu0
        %v1715 = vadd.f32 %v1666, %v1714
        %v1716 = vpop.f32.mrf.mxu0
        %v1717 = vadd.f32 %v1668, %v1716
        %1718 = vmatmul.bf16.gmra.mxu0 %v677
        %v1719 = vpop.f32.mrf.mxu0
        %v1720 = vadd.f32 %v1671, %v1719
        %v1721 = vpop.f32.mrf.mxu0
        %v1722 = vadd.f32 %v1673, %v1721
        %1723 = vmatmul.bf16.gmra.mxu0 %v685
        %v1724 = vpop.f32.mrf.mxu0
        %v1725 = vadd.f32 %v1676, %v1724
        %v1726 = vpop.f32.mrf.mxu0
        %v1727 = vadd.f32 %v1678, %v1726
        %1728 = vmatmul.bf16.gmra.mxu0 %v693
        %v1729 = vpop.f32.mrf.mxu0
        %v1730 = vadd.f32 %v1681, %v1729
        %v1731 = vpop.f32.mrf.mxu0
        %v1732 = vadd.f32 %v1683, %v1731
        %1733 = vmatmul.bf16.gmra.mxu0 %v701
        %v1734 = vpop.f32.mrf.mxu0
        %v1735 = vadd.f32 %v1686, %v1734
        %v1736 = vpop.f32.mrf.mxu0
        %v1737 = vadd.f32 %v1688, %v1736
        %1738 = vdwg.mxu0
        %1739 = vmatpush.bf16.msra.mxu0 %v1106
        %1740 = vmatpush.bf16.msra.mxu0 %v1104
        %1741 = vmatpush.bf16.msra.mxu0 %v1102
        %1742 = vmatpush.bf16.msra.mxu0 %v1100
        %1743 = vmatpush.bf16.msra.mxu0 %v1098
        %1744 = vmatpush.bf16.msra.mxu0 %v1096
        %1745 = vmatpush.bf16.msra.mxu0 %v1094
        %1746 = vmatpush.bf16.msra.mxu0 %v1092
        %1747 = vmatmul.bf16.gmra.mxu0 %v638
        %v1748 = vpop.f32.mrf.mxu0
        %v1749 = vadd.f32 %v704, %v1748
        %v1750 = vpop.f32.mrf.mxu0
        %v1751 = vadd.f32 %v704, %v1750
        %1752 = vmatmul.bf16.gmra.mxu0 %v646
        %v1753 = vpop.f32.mrf.mxu0
        %v1754 = vadd.f32 %v704, %v1753
        %v1755 = vpop.f32.mrf.mxu0
        %v1756 = vadd.f32 %v704, %v1755
        %1757 = vmatmul.bf16.gmra.mxu0 %v654
        %v1758 = vpop.f32.mrf.mxu0
        %v1759 = vadd.f32 %v704, %v1758
        %v1760 = vpop.f32.mrf.mxu0
        %v1761 = vadd.f32 %v704, %v1760
        %1762 = vmatmul.bf16.gmra.mxu0 %v662
        %v1763 = vpop.f32.mrf.mxu0
        %v1764 = vadd.f32 %v704, %v1763
        %v1765 = vpop.f32.mrf.mxu0
        %v1766 = vadd.f32 %v704, %v1765
        %1767 = vmatmul.bf16.gmra.mxu0 %v670
        %v1768 = vpop.f32.mrf.mxu0
        %v1769 = vadd.f32 %v704, %v1768
        %v1770 = vpop.f32.mrf.mxu0
        %v1771 = vadd.f32 %v704, %v1770
        %1772 = vmatmul.bf16.gmra.mxu0 %v678
        %v1773 = vpop.f32.mrf.mxu0
        %v1774 = vadd.f32 %v704, %v1773
        %v1775 = vpop.f32.mrf.mxu0
        %v1776 = vadd.f32 %v704, %v1775
        %1777 = vmatmul.bf16.gmra.mxu0 %v686
        %v1778 = vpop.f32.mrf.mxu0
        %v1779 = vadd.f32 %v704, %v1778
        %v1780 = vpop.f32.mrf.mxu0
        %v1781 = vadd.f32 %v704, %v1780
        %1782 = vmatmul.bf16.gmra.mxu0 %v694
        %v1783 = vpop.f32.mrf.mxu0
        %v1784 = vadd.f32 %v704, %v1783
        %v1785 = vpop.f32.mrf.mxu0
        %v1786 = vadd.f32 %v704, %v1785
        %1787 = vdwg.mxu0
        %1788 = vmatpush.bf16.msra.mxu0 %v1122
        %1789 = vmatpush.bf16.msra.mxu0 %v1120
        %1790 = vmatpush.bf16.msra.mxu0 %v1118
        %1791 = vmatpush.bf16.msra.mxu0 %v1116
        %1792 = vmatpush.bf16.msra.mxu0 %v1114
        %1793 = vmatpush.bf16.msra.mxu0 %v1112
        %1794 = vmatpush.bf16.msra.mxu0 %v1110
        %1795 = vmatpush.bf16.msra.mxu0 %v1108
        %1796 = vmatmul.bf16.gmra.mxu0 %v639
        %v1797 = vpop.f32.mrf.mxu0
        %v1798 = vadd.f32 %v1749, %v1797
        %v1799 = vpop.f32.mrf.mxu0
        %v1800 = vadd.f32 %v1751, %v1799
        %1801 = vmatmul.bf16.gmra.mxu0 %v647
        %v1802 = vpop.f32.mrf.mxu0
        %v1803 = vadd.f32 %v1754, %v1802
        %v1804 = vpop.f32.mrf.mxu0
        %v1805 = vadd.f32 %v1756, %v1804
        %1806 = vmatmul.bf16.gmra.mxu0 %v655
        %v1807 = vpop.f32.mrf.mxu0
        %v1808 = vadd.f32 %v1759, %v1807
        %v1809 = vpop.f32.mrf.mxu0
        %v1810 = vadd.f32 %v1761, %v1809
        %1811 = vmatmul.bf16.gmra.mxu0 %v663
        %v1812 = vpop.f32.mrf.mxu0
        %v1813 = vadd.f32 %v1764, %v1812
        %v1814 = vpop.f32.mrf.mxu0
        %v1815 = vadd.f32 %v1766, %v1814
        %1816 = vmatmul.bf16.gmra.mxu0 %v671
        %v1817 = vpop.f32.mrf.mxu0
        %v1818 = vadd.f32 %v1769, %v1817
        %v1819 = vpop.f32.mrf.mxu0
        %v1820 = vadd.f32 %v1771, %v1819
        %1821 = vmatmul.bf16.gmra.mxu0 %v679
        %v1822 = vpop.f32.mrf.mxu0
        %v1823 = vadd.f32 %v1774, %v1822
        %v1824 = vpop.f32.mrf.mxu0
        %v1825 = vadd.f32 %v1776, %v1824
        %1826 = vmatmul.bf16.gmra.mxu0 %v687
        %v1827 = vpop.f32.mrf.mxu0
        %v1828 = vadd.f32 %v1779, %v1827
        %v1829 = vpop.f32.mrf.mxu0
        %v1830 = vadd.f32 %v1781, %v1829
        %1831 = vmatmul.bf16.gmra.mxu0 %v695
        %v1832 = vpop.f32.mrf.mxu0
        %v1833 = vadd.f32 %v1784, %v1832
        %v1834 = vpop.f32.mrf.mxu0
        %v1835 = vadd.f32 %v1786, %v1834
        %1836 = vdwg.mxu0
        %1837 = vmatpush.bf16.msra.mxu0 %v1138
        %1838 = vmatpush.bf16.msra.mxu0 %v1136
        %1839 = vmatpush.bf16.msra.mxu0 %v1134
        %1840 = vmatpush.bf16.msra.mxu0 %v1132
        %1841 = vmatpush.bf16.msra.mxu0 %v1130
        %1842 = vmatpush.bf16.msra.mxu0 %v1128
        %1843 = vmatpush.bf16.msra.mxu0 %v1126
        %1844 = vmatpush.bf16.msra.mxu0 %v1124
        %1845 = vmatmul.bf16.gmra.mxu0 %v640
        %v1846 = vpop.f32.mrf.mxu0
        %v1847 = vadd.f32 %v1798, %v1846
        %v1848 = vpop.f32.mrf.mxu0
        %v1849 = vadd.f32 %v1800, %v1848
        %1850 = vmatmul.bf16.gmra.mxu0 %v648
        %v1851 = vpop.f32.mrf.mxu0
        %v1852 = vadd.f32 %v1803, %v1851
        %v1853 = vpop.f32.mrf.mxu0
        %v1854 = vadd.f32 %v1805, %v1853
        %1855 = vmatmul.bf16.gmra.mxu0 %v656
        %v1856 = vpop.f32.mrf.mxu0
        %v1857 = vadd.f32 %v1808, %v1856
        %v1858 = vpop.f32.mrf.mxu0
        %v1859 = vadd.f32 %v1810, %v1858
        %1860 = vmatmul.bf16.gmra.mxu0 %v664
        %v1861 = vpop.f32.mrf.mxu0
        %v1862 = vadd.f32 %v1813, %v1861
        %v1863 = vpop.f32.mrf.mxu0
        %v1864 = vadd.f32 %v1815, %v1863
        %1865 = vmatmul.bf16.gmra.mxu0 %v672
        %v1866 = vpop.f32.mrf.mxu0
        %v1867 = vadd.f32 %v1818, %v1866
        %v1868 = vpop.f32.mrf.mxu0
        %v1869 = vadd.f32 %v1820, %v1868
        %1870 = vmatmul.bf16.gmra.mxu0 %v680
        %v1871 = vpop.f32.mrf.mxu0
        %v1872 = vadd.f32 %v1823, %v1871
        %v1873 = vpop.f32.mrf.mxu0
        %v1874 = vadd.f32 %v1825, %v1873
        %1875 = vmatmul.bf16.gmra.mxu0 %v688
        %v1876 = vpop.f32.mrf.mxu0
        %v1877 = vadd.f32 %v1828, %v1876
        %v1878 = vpop.f32.mrf.mxu0
        %v1879 = vadd.f32 %v1830, %v1878
        %1880 = vmatmul.bf16.gmra.mxu0 %v696
        %v1881 = vpop.f32.mrf.mxu0
        %v1882 = vadd.f32 %v1833, %v1881
        %v1883 = vpop.f32.mrf.mxu0
        %v1884 = vadd.f32 %v1835, %v1883
        %1885 = vdwg.mxu0
        %1886 = vmatpush.bf16.msra.mxu0 %v1154
        %1887 = vmatpush.bf16.msra.mxu0 %v1152
        %1888 = vmatpush.bf16.msra.mxu0 %v1150
        %1889 = vmatpush.bf16.msra.mxu0 %v1148
        %1890 = vmatpush.bf16.msra.mxu0 %v1146
        %1891 = vmatpush.bf16.msra.mxu0 %v1144
        %1892 = vmatpush.bf16.msra.mxu0 %v1142
        %1893 = vmatpush.bf16.msra.mxu0 %v1140
        %1894 = vmatmul.bf16.gmra.mxu0 %v641
        %v1895 = vpop.f32.mrf.mxu0
        %v1896 = vadd.f32 %v1847, %v1895
        %v1897 = vpop.f32.mrf.mxu0
        %v1898 = vadd.f32 %v1849, %v1897
        %1899 = vmatmul.bf16.gmra.mxu0 %v649
        %v1900 = vpop.f32.mrf.mxu0
        %v1901 = vadd.f32 %v1852, %v1900
        %v1902 = vpop.f32.mrf.mxu0
        %v1903 = vadd.f32 %v1854, %v1902
        %1904 = vmatmul.bf16.gmra.mxu0 %v657
        %v1905 = vpop.f32.mrf.mxu0
        %v1906 = vadd.f32 %v1857, %v1905
        %v1907 = vpop.f32.mrf.mxu0
        %v1908 = vadd.f32 %v1859, %v1907
        %1909 = vmatmul.bf16.gmra.mxu0 %v665
        %v1910 = vpop.f32.mrf.mxu0
        %v1911 = vadd.f32 %v1862, %v1910
        %v1912 = vpop.f32.mrf.mxu0
        %v1913 = vadd.f32 %v1864, %v1912
        %1914 = vmatmul.bf16.gmra.mxu0 %v673
        %v1915 = vpop.f32.mrf.mxu0
        %v1916 = vadd.f32 %v1867, %v1915
        %v1917 = vpop.f32.mrf.mxu0
        %v1918 = vadd.f32 %v1869, %v1917
        %1919 = vmatmul.bf16.gmra.mxu0 %v681
        %v1920 = vpop.f32.mrf.mxu0
        %v1921 = vadd.f32 %v1872, %v1920
        %v1922 = vpop.f32.mrf.mxu0
        %v1923 = vadd.f32 %v1874, %v1922
        %1924 = vmatmul.bf16.gmra.mxu0 %v689
        %v1925 = vpop.f32.mrf.mxu0
        %v1926 = vadd.f32 %v1877, %v1925
        %v1927 = vpop.f32.mrf.mxu0
        %v1928 = vadd.f32 %v1879, %v1927
        %1929 = vmatmul.bf16.gmra.mxu0 %v697
        %v1930 = vpop.f32.mrf.mxu0
        %v1931 = vadd.f32 %v1882, %v1930
        %v1932 = vpop.f32.mrf.mxu0
        %v1933 = vadd.f32 %v1884, %v1932
        %1934 = vdwg.mxu0
        %1935 = vmatpush.bf16.msra.mxu0 %v1170
        %1936 = vmatpush.bf16.msra.mxu0 %v1168
        %1937 = vmatpush.bf16.msra.mxu0 %v1166
        %1938 = vmatpush.bf16.msra.mxu0 %v1164
        %1939 = vmatpush.bf16.msra.mxu0 %v1162
        %1940 = vmatpush.bf16.msra.mxu0 %v1160
        %1941 = vmatpush.bf16.msra.mxu0 %v1158
        %1942 = vmatpush.bf16.msra.mxu0 %v1156
        %1943 = vmatmul.bf16.gmra.mxu0 %v642
        %v1944 = vpop.f32.mrf.mxu0
        %v1945 = vadd.f32 %v1896, %v1944
        %v1946 = vpop.f32.mrf.mxu0
        %v1947 = vadd.f32 %v1898, %v1946
        %1948 = vmatmul.bf16.gmra.mxu0 %v650
        %v1949 = vpop.f32.mrf.mxu0
        %v1950 = vadd.f32 %v1901, %v1949
        %v1951 = vpop.f32.mrf.mxu0
        %v1952 = vadd.f32 %v1903, %v1951
        %1953 = vmatmul.bf16.gmra.mxu0 %v658
        %v1954 = vpop.f32.mrf.mxu0
        %v1955 = vadd.f32 %v1906, %v1954
        %v1956 = vpop.f32.mrf.mxu0
        %v1957 = vadd.f32 %v1908, %v1956
        %1958 = vmatmul.bf16.gmra.mxu0 %v666
        %v1959 = vpop.f32.mrf.mxu0
        %v1960 = vadd.f32 %v1911, %v1959
        %v1961 = vpop.f32.mrf.mxu0
        %v1962 = vadd.f32 %v1913, %v1961
        %1963 = vmatmul.bf16.gmra.mxu0 %v674
        %v1964 = vpop.f32.mrf.mxu0
        %v1965 = vadd.f32 %v1916, %v1964
        %v1966 = vpop.f32.mrf.mxu0
        %v1967 = vadd.f32 %v1918, %v1966
        %1968 = vmatmul.bf16.gmra.mxu0 %v682
        %v1969 = vpop.f32.mrf.mxu0
        %v1970 = vadd.f32 %v1921, %v1969
        %v1971 = vpop.f32.mrf.mxu0
        %v1972 = vadd.f32 %v1923, %v1971
        %1973 = vmatmul.bf16.gmra.mxu0 %v690
        %v1974 = vpop.f32.mrf.mxu0
        %v1975 = vadd.f32 %v1926, %v1974
        %v1976 = vpop.f32.mrf.mxu0
        %v1977 = vadd.f32 %v1928, %v1976
        %1978 = vmatmul.bf16.gmra.mxu0 %v698
        %v1979 = vpop.f32.mrf.mxu0
        %v1980 = vadd.f32 %v1931, %v1979
        %v1981 = vpop.f32.mrf.mxu0
        %v1982 = vadd.f32 %v1933, %v1981
        %1983 = vdwg.mxu0
        %1984 = vmatpush.bf16.msra.mxu0 %v1186
        %1985 = vmatpush.bf16.msra.mxu0 %v1184
        %1986 = vmatpush.bf16.msra.mxu0 %v1182
        %1987 = vmatpush.bf16.msra.mxu0 %v1180
        %1988 = vmatpush.bf16.msra.mxu0 %v1178
        %1989 = vmatpush.bf16.msra.mxu0 %v1176
        %1990 = vmatpush.bf16.msra.mxu0 %v1174
        %1991 = vmatpush.bf16.msra.mxu0 %v1172
        %1992 = vmatmul.bf16.gmra.mxu0 %v643
        %v1993 = vpop.f32.mrf.mxu0
        %v1994 = vadd.f32 %v1945, %v1993
        %v1995 = vpop.f32.mrf.mxu0
        %v1996 = vadd.f32 %v1947, %v1995
        %1997 = vmatmul.bf16.gmra.mxu0 %v651
        %v1998 = vpop.f32.mrf.mxu0
        %v1999 = vadd.f32 %v1950, %v1998
        %v2000 = vpop.f32.mrf.mxu0
        %v2001 = vadd.f32 %v1952, %v2000
        %2002 = vmatmul.bf16.gmra.mxu0 %v659
        %v2003 = vpop.f32.mrf.mxu0
        %v2004 = vadd.f32 %v1955, %v2003
        %v2005 = vpop.f32.mrf.mxu0
        %v2006 = vadd.f32 %v1957, %v2005
        %2007 = vmatmul.bf16.gmra.mxu0 %v667
        %v2008 = vpop.f32.mrf.mxu0
        %v2009 = vadd.f32 %v1960, %v2008
        %v2010 = vpop.f32.mrf.mxu0
        %v2011 = vadd.f32 %v1962, %v2010
        %2012 = vmatmul.bf16.gmra.mxu0 %v675
        %v2013 = vpop.f32.mrf.mxu0
        %v2014 = vadd.f32 %v1965, %v2013
        %v2015 = vpop.f32.mrf.mxu0
        %v2016 = vadd.f32 %v1967, %v2015
        %2017 = vmatmul.bf16.gmra.mxu0 %v683
        %v2018 = vpop.f32.mrf.mxu0
        %v2019 = vadd.f32 %v1970, %v2018
        %v2020 = vpop.f32.mrf.mxu0
        %v2021 = vadd.f32 %v1972, %v2020
        %2022 = vmatmul.bf16.gmra.mxu0 %v691
        %v2023 = vpop.f32.mrf.mxu0
        %v2024 = vadd.f32 %v1975, %v2023
        %v2025 = vpop.f32.mrf.mxu0
        %v2026 = vadd.f32 %v1977, %v2025
        %2027 = vmatmul.bf16.gmra.mxu0 %v699
        %v2028 = vpop.f32.mrf.mxu0
        %v2029 = vadd.f32 %v1980, %v2028
        %v2030 = vpop.f32.mrf.mxu0
        %v2031 = vadd.f32 %v1982, %v2030
        %2032 = vdwg.mxu0
        %2033 = vmatpush.bf16.msra.mxu0 %v1202
        %2034 = vmatpush.bf16.msra.mxu0 %v1200
        %2035 = vmatpush.bf16.msra.mxu0 %v1198
        %2036 = vmatpush.bf16.msra.mxu0 %v1196
        %2037 = vmatpush.bf16.msra.mxu0 %v1194
        %2038 = vmatpush.bf16.msra.mxu0 %v1192
        %2039 = vmatpush.bf16.msra.mxu0 %v1190
        %2040 = vmatpush.bf16.msra.mxu0 %v1188
        %2041 = vmatmul.bf16.gmra.mxu0 %v644
        %v2042 = vpop.f32.mrf.mxu0
        %v2043 = vadd.f32 %v1994, %v2042
        %v2044 = vpop.f32.mrf.mxu0
        %v2045 = vadd.f32 %v1996, %v2044
        %2046 = vmatmul.bf16.gmra.mxu0 %v652
        %v2047 = vpop.f32.mrf.mxu0
        %v2048 = vadd.f32 %v1999, %v2047
        %v2049 = vpop.f32.mrf.mxu0
        %v2050 = vadd.f32 %v2001, %v2049
        %2051 = vmatmul.bf16.gmra.mxu0 %v660
        %v2052 = vpop.f32.mrf.mxu0
        %v2053 = vadd.f32 %v2004, %v2052
        %v2054 = vpop.f32.mrf.mxu0
        %v2055 = vadd.f32 %v2006, %v2054
        %2056 = vmatmul.bf16.gmra.mxu0 %v668
        %v2057 = vpop.f32.mrf.mxu0
        %v2058 = vadd.f32 %v2009, %v2057
        %v2059 = vpop.f32.mrf.mxu0
        %v2060 = vadd.f32 %v2011, %v2059
        %2061 = vmatmul.bf16.gmra.mxu0 %v676
        %v2062 = vpop.f32.mrf.mxu0
        %v2063 = vadd.f32 %v2014, %v2062
        %v2064 = vpop.f32.mrf.mxu0
        %v2065 = vadd.f32 %v2016, %v2064
        %2066 = vmatmul.bf16.gmra.mxu0 %v684
        %v2067 = vpop.f32.mrf.mxu0
        %v2068 = vadd.f32 %v2019, %v2067
        %v2069 = vpop.f32.mrf.mxu0
        %v2070 = vadd.f32 %v2021, %v2069
        %2071 = vmatmul.bf16.gmra.mxu0 %v692
        %v2072 = vpop.f32.mrf.mxu0
        %v2073 = vadd.f32 %v2024, %v2072
        %v2074 = vpop.f32.mrf.mxu0
        %v2075 = vadd.f32 %v2026, %v2074
        %2076 = vmatmul.bf16.gmra.mxu0 %v700
        %v2077 = vpop.f32.mrf.mxu0
        %v2078 = vadd.f32 %v2029, %v2077
        %v2079 = vpop.f32.mrf.mxu0
        %v2080 = vadd.f32 %v2031, %v2079
        %2081 = vdwg.mxu0
        %2082 = vmatpush.bf16.msra.mxu0 %v1218
        %2083 = vmatpush.bf16.msra.mxu0 %v1216
        %2084 = vmatpush.bf16.msra.mxu0 %v1214
        %2085 = vmatpush.bf16.msra.mxu0 %v1212
        %2086 = vmatpush.bf16.msra.mxu0 %v1210
        %2087 = vmatpush.bf16.msra.mxu0 %v1208
        %2088 = vmatpush.bf16.msra.mxu0 %v1206
        %2089 = vmatpush.bf16.msra.mxu0 %v1204
        %2090 = vmatmul.bf16.gmra.mxu0 %v645
        %v2091 = vpop.f32.mrf.mxu0
        %v2092 = vadd.f32 %v2043, %v2091
        %v2093 = vpop.f32.mrf.mxu0
        %v2094 = vadd.f32 %v2045, %v2093
        %2095 = vmatmul.bf16.gmra.mxu0 %v653
        %v2096 = vpop.f32.mrf.mxu0
        %v2097 = vadd.f32 %v2048, %v2096
        %v2098 = vpop.f32.mrf.mxu0
        %v2099 = vadd.f32 %v2050, %v2098
        %2100 = vmatmul.bf16.gmra.mxu0 %v661
        %v2101 = vpop.f32.mrf.mxu0
        %v2102 = vadd.f32 %v2053, %v2101
        %v2103 = vpop.f32.mrf.mxu0
        %v2104 = vadd.f32 %v2055, %v2103
        %2105 = vmatmul.bf16.gmra.mxu0 %v669
        %v2106 = vpop.f32.mrf.mxu0
        %v2107 = vadd.f32 %v2058, %v2106
        %v2108 = vpop.f32.mrf.mxu0
        %v2109 = vadd.f32 %v2060, %v2108
        %2110 = vmatmul.bf16.gmra.mxu0 %v677
        %v2111 = vpop.f32.mrf.mxu0
        %v2112 = vadd.f32 %v2063, %v2111
        %v2113 = vpop.f32.mrf.mxu0
        %v2114 = vadd.f32 %v2065, %v2113
        %2115 = vmatmul.bf16.gmra.mxu0 %v685
        %v2116 = vpop.f32.mrf.mxu0
        %v2117 = vadd.f32 %v2068, %v2116
        %v2118 = vpop.f32.mrf.mxu0
        %v2119 = vadd.f32 %v2070, %v2118
        %2120 = vmatmul.bf16.gmra.mxu0 %v693
        %v2121 = vpop.f32.mrf.mxu0
        %v2122 = vadd.f32 %v2073, %v2121
        %v2123 = vpop.f32.mrf.mxu0
        %v2124 = vadd.f32 %v2075, %v2123
        %2125 = vmatmul.bf16.gmra.mxu0 %v701
        %v2126 = vpop.f32.mrf.mxu0
        %v2127 = vadd.f32 %v2078, %v2126
        %v2128 = vpop.f32.mrf.mxu0
        %v2129 = vadd.f32 %v2080, %v2128
        %2130 = vdwg.mxu0
        %v2131 = vmax.f32 %v1700, 0.0
        %v2132 = vmax.f32 %v2092, 0.0
        %v2133 = vmax.f32 %v1702, 0.0
        %v2134 = vmax.f32 %v2094, 0.0
        %v2135 = vmax.f32 %v1705, 0.0
        %v2136 = vmax.f32 %v2097, 0.0
        %v2137 = vmax.f32 %v1707, 0.0
        %v2138 = vmax.f32 %v2099, 0.0
        %v2139 = vmax.f32 %v1710, 0.0
        %v2140 = vmax.f32 %v2102, 0.0
        %v2141 = vmax.f32 %v1712, 0.0
        %v2142 = vmax.f32 %v2104, 0.0
        %v2143 = vmax.f32 %v1715, 0.0
        %v2144 = vmax.f32 %v2107, 0.0
        %v2145 = vmax.f32 %v1717, 0.0
        %v2146 = vmax.f32 %v2109, 0.0
        %v2147 = vmax.f32 %v1720, 0.0
        %v2148 = vmax.f32 %v2112, 0.0
        %v2149 = vmax.f32 %v1722, 0.0
        %v2150 = vmax.f32 %v2114, 0.0
        %v2151 = vmax.f32 %v1725, 0.0
        %v2152 = vmax.f32 %v2117, 0.0
        %v2153 = vmax.f32 %v1727, 0.0
        %v2154 = vmax.f32 %v2119, 0.0
        %v2155 = vmax.f32 %v1730, 0.0
        %v2156 = vmax.f32 %v2122, 0.0
        %v2157 = vmax.f32 %v1732, 0.0
        %v2158 = vmax.f32 %v2124, 0.0
        %v2159 = vmax.f32 %v1735, 0.0
        %v2160 = vmax.f32 %v2127, 0.0
        %v2161 = vmax.f32 %v1737, 0.0
        %v2162 = vmax.f32 %v2129, 0.0
        %v2163 = vld [vmem:[#allocation8] sm:$0xff]
        %v2164 = vld [vmem:[#allocation8 + $0x8] sm:$0xff]
        %v2165 = vld [vmem:[#allocation8 + $0x10] sm:$0xff]
        %v2166 = vld [vmem:[#allocation8 + $0x18] sm:$0xff]
        %v2167 = vld [vmem:[#allocation8 + $0x20] sm:$0xff]
        %v2168 = vld [vmem:[#allocation8 + $0x28] sm:$0xff]
        %v2169 = vld [vmem:[#allocation8 + $0x30] sm:$0xff]
        %v2170 = vld [vmem:[#allocation8 + $0x38] sm:$0xff]
        %v2171 = vld [vmem:[#allocation8 + $0x40] sm:$0xff]
        %v2172 = vld [vmem:[#allocation8 + $0x48] sm:$0xff]
        %v2173 = vld [vmem:[#allocation8 + $0x50] sm:$0xff]
        %v2174 = vld [vmem:[#allocation8 + $0x58] sm:$0xff]
        %v2175 = vld [vmem:[#allocation8 + $0x60] sm:$0xff]
        %v2176 = vld [vmem:[#allocation8 + $0x68] sm:$0xff]
        %v2177 = vld [vmem:[#allocation8 + $0x70] sm:$0xff]
        %v2178 = vld [vmem:[#allocation8 + $0x78] sm:$0xff]
        %v2179 = vld [vmem:[#allocation8 + $0x80] sm:$0xff]
        %v2180 = vld [vmem:[#allocation8 + $0x88] sm:$0xff]
        %v2181 = vld [vmem:[#allocation8 + $0x90] sm:$0xff]
        %v2182 = vld [vmem:[#allocation8 + $0x98] sm:$0xff]
        %v2183 = vld [vmem:[#allocation8 + $0xa0] sm:$0xff]
        %v2184 = vld [vmem:[#allocation8 + $0xa8] sm:$0xff]
        %v2185 = vld [vmem:[#allocation8 + $0xb0] sm:$0xff]
        %v2186 = vld [vmem:[#allocation8 + $0xb8] sm:$0xff]
        %v2187 = vld [vmem:[#allocation8 + $0xc0] sm:$0xff]
        %v2188 = vld [vmem:[#allocation8 + $0xc8] sm:$0xff]
        %v2189 = vld [vmem:[#allocation8 + $0xd0] sm:$0xff]
        %v2190 = vld [vmem:[#allocation8 + $0xd8] sm:$0xff]
        %v2191 = vld [vmem:[#allocation8 + $0xe0] sm:$0xff]
        %v2192 = vld [vmem:[#allocation8 + $0xe8] sm:$0xff]
        %v2193 = vld [vmem:[#allocation8 + $0xf0] sm:$0xff]
        %v2194 = vld [vmem:[#allocation8 + $0xf8] sm:$0xff]
        %v2195 = vld [vmem:[%s4] sm:$0x3]
        %v2196 = vpack.c.bf16 %v2133, %v2131
        %v2197 = vpack.c.bf16 %v2134, %v2132
        %v2198 = vpack.c.bf16 %v2137, %v2135
        %v2199 = vpack.c.bf16 %v2138, %v2136
        %v2200 = vpack.c.bf16 %v2141, %v2139
        %v2201 = vpack.c.bf16 %v2142, %v2140
        %v2202 = vpack.c.bf16 %v2145, %v2143
        %v2203 = vpack.c.bf16 %v2146, %v2144
        %v2204 = vpack.c.bf16 %v2149, %v2147
        %v2205 = vpack.c.bf16 %v2150, %v2148
        %v2206 = vpack.c.bf16 %v2153, %v2151
        %v2207 = vpack.c.bf16 %v2154, %v2152
        %v2208 = vpack.c.bf16 %v2157, %v2155
        %v2209 = vpack.c.bf16 %v2158, %v2156
        %v2210 = vpack.c.bf16 %v2161, %v2159
        %v2211 = vpack.c.bf16 %v2162, %v2160
        %v2213 = vperm.slane %v2195, 0
        %v2214 = vperm.slane %v2195, 1
        %v2249 = vunpack.c.l.b16 %v2163
        %v2250 = vunpack.c.h.b16 %v2163
        %v2251 = vunpack.c.l.b16 %v2164
        %v2252 = vunpack.c.h.b16 %v2164
        %v2253 = vunpack.c.l.b16 %v2165
        %v2254 = vunpack.c.h.b16 %v2165
        %v2255 = vunpack.c.l.b16 %v2166
        %v2256 = vunpack.c.h.b16 %v2166
        %v2257 = vunpack.c.l.b16 %v2167
        %v2258 = vunpack.c.h.b16 %v2167
        %v2259 = vunpack.c.l.b16 %v2168
        %v2260 = vunpack.c.h.b16 %v2168
        %v2261 = vunpack.c.l.b16 %v2169
        %v2262 = vunpack.c.h.b16 %v2169
        %v2263 = vunpack.c.l.b16 %v2170
        %v2264 = vunpack.c.h.b16 %v2170
        %v2265 = vunpack.c.l.b16 %v2171
        %v2266 = vunpack.c.h.b16 %v2171
        %v2267 = vunpack.c.l.b16 %v2172
        %v2268 = vunpack.c.h.b16 %v2172
        %v2269 = vunpack.c.l.b16 %v2173
        %v2270 = vunpack.c.h.b16 %v2173
        %v2271 = vunpack.c.l.b16 %v2174
        %v2272 = vunpack.c.h.b16 %v2174
        %v2273 = vunpack.c.l.b16 %v2175
        %v2274 = vunpack.c.h.b16 %v2175
        %v2275 = vunpack.c.l.b16 %v2176
        %v2276 = vunpack.c.h.b16 %v2176
        %v2277 = vunpack.c.l.b16 %v2177
        %v2278 = vunpack.c.h.b16 %v2177
        %v2279 = vunpack.c.l.b16 %v2178
        %v2280 = vunpack.c.h.b16 %v2178
        %v2281 = vunpack.c.l.b16 %v2179
        %v2282 = vunpack.c.h.b16 %v2179
        %v2283 = vunpack.c.l.b16 %v2180
        %v2284 = vunpack.c.h.b16 %v2180
        %v2285 = vunpack.c.l.b16 %v2181
        %v2286 = vunpack.c.h.b16 %v2181
        %v2287 = vunpack.c.l.b16 %v2182
        %v2288 = vunpack.c.h.b16 %v2182
        %v2289 = vunpack.c.l.b16 %v2183
        %v2290 = vunpack.c.h.b16 %v2183
        %v2291 = vunpack.c.l.b16 %v2184
        %v2292 = vunpack.c.h.b16 %v2184
        %v2293 = vunpack.c.l.b16 %v2185
        %v2294 = vunpack.c.h.b16 %v2185
        %v2295 = vunpack.c.l.b16 %v2186
        %v2296 = vunpack.c.h.b16 %v2186
        %v2297 = vunpack.c.l.b16 %v2187
        %v2298 = vunpack.c.h.b16 %v2187
        %v2299 = vunpack.c.l.b16 %v2188
        %v2300 = vunpack.c.h.b16 %v2188
        %v2301 = vunpack.c.l.b16 %v2189
        %v2302 = vunpack.c.h.b16 %v2189
        %v2303 = vunpack.c.l.b16 %v2190
        %v2304 = vunpack.c.h.b16 %v2190
        %v2305 = vunpack.c.l.b16 %v2191
        %v2306 = vunpack.c.h.b16 %v2191
        %v2307 = vunpack.c.l.b16 %v2192
        %v2308 = vunpack.c.h.b16 %v2192
        %v2309 = vunpack.c.l.b16 %v2193
        %v2310 = vunpack.c.h.b16 %v2193
        %v2311 = vunpack.c.l.b16 %v2194
        %v2312 = vunpack.c.h.b16 %v2194
        %v2313 = vpack.c.b16 %v2251, %v2249
        %v2314 = vpack.c.b16 %v2252, %v2250
        %v2315 = vpack.c.b16 %v2255, %v2253
        %v2316 = vpack.c.b16 %v2256, %v2254
        %v2317 = vpack.c.b16 %v2259, %v2257
        %v2318 = vpack.c.b16 %v2260, %v2258
        %v2319 = vpack.c.b16 %v2263, %v2261
        %v2320 = vpack.c.b16 %v2264, %v2262
        %v2321 = vpack.c.b16 %v2267, %v2265
        %v2322 = vpack.c.b16 %v2268, %v2266
        %v2323 = vpack.c.b16 %v2271, %v2269
        %v2324 = vpack.c.b16 %v2272, %v2270
        %v2325 = vpack.c.b16 %v2275, %v2273
        %v2326 = vpack.c.b16 %v2276, %v2274
        %v2327 = vpack.c.b16 %v2279, %v2277
        %v2328 = vpack.c.b16 %v2280, %v2278
        %v2329 = vpack.c.b16 %v2283, %v2281
        %v2330 = vpack.c.b16 %v2284, %v2282
        %v2331 = vpack.c.b16 %v2287, %v2285
        %v2332 = vpack.c.b16 %v2288, %v2286
        %v2333 = vpack.c.b16 %v2291, %v2289
        %v2334 = vpack.c.b16 %v2292, %v2290
        %v2335 = vpack.c.b16 %v2295, %v2293
        %v2336 = vpack.c.b16 %v2296, %v2294
        %v2337 = vpack.c.b16 %v2299, %v2297
        %v2338 = vpack.c.b16 %v2300, %v2298
        %v2339 = vpack.c.b16 %v2303, %v2301
        %v2340 = vpack.c.b16 %v2304, %v2302
        %v2341 = vpack.c.b16 %v2307, %v2305
        %v2342 = vpack.c.b16 %v2308, %v2306
        %v2343 = vpack.c.b16 %v2311, %v2309
        %v2344 = vpack.c.b16 %v2312, %v2310
        %2377 = vmatpush.bf16.msra.mxu0 %v2327
        %2378 = vmatpush.bf16.msra.mxu0 %v2325
        %2379 = vmatpush.bf16.msra.mxu0 %v2323
        %2380 = vmatpush.bf16.msra.mxu0 %v2321
        %2381 = vmatpush.bf16.msra.mxu0 %v2319
        %2382 = vmatpush.bf16.msra.mxu0 %v2317
        %2383 = vmatpush.bf16.msra.mxu0 %v2315
        %2384 = vmatpush.bf16.msra.mxu0 %v2313
        %2385 = vmatmul.bf16.gmra.mxu0 %v2196
        %v2386 = vpop.f32.mrf.mxu0
        %v2387 = vadd.f32 %v2213, %v2386
        %v2388 = vpop.f32.mrf.mxu0
        %v2389 = vadd.f32 %v2213, %v2388
        %2390 = vmatmul.bf16.gmra.mxu0 %v2198
        %v2391 = vpop.f32.mrf.mxu0
        %v2392 = vadd.f32 %v2213, %v2391
        %v2393 = vpop.f32.mrf.mxu0
        %v2394 = vadd.f32 %v2213, %v2393
        %2395 = vmatmul.bf16.gmra.mxu0 %v2200
        %v2396 = vpop.f32.mrf.mxu0
        %v2397 = vadd.f32 %v2213, %v2396
        %v2398 = vpop.f32.mrf.mxu0
        %v2399 = vadd.f32 %v2213, %v2398
        %2400 = vmatmul.bf16.gmra.mxu0 %v2202
        %v2401 = vpop.f32.mrf.mxu0
        %v2402 = vadd.f32 %v2213, %v2401
        %v2403 = vpop.f32.mrf.mxu0
        %v2404 = vadd.f32 %v2213, %v2403
        %2405 = vmatmul.bf16.gmra.mxu0 %v2204
        %v2406 = vpop.f32.mrf.mxu0
        %v2407 = vadd.f32 %v2213, %v2406
        %v2408 = vpop.f32.mrf.mxu0
        %v2409 = vadd.f32 %v2213, %v2408
        %2410 = vmatmul.bf16.gmra.mxu0 %v2206
        %v2411 = vpop.f32.mrf.mxu0
        %v2412 = vadd.f32 %v2213, %v2411
        %v2413 = vpop.f32.mrf.mxu0
        %v2414 = vadd.f32 %v2213, %v2413
        %2415 = vmatmul.bf16.gmra.mxu0 %v2208
        %v2416 = vpop.f32.mrf.mxu0
        %v2417 = vadd.f32 %v2213, %v2416
        %v2418 = vpop.f32.mrf.mxu0
        %v2419 = vadd.f32 %v2213, %v2418
        %2420 = vmatmul.bf16.gmra.mxu0 %v2210
        %v2421 = vpop.f32.mrf.mxu0
        %v2422 = vadd.f32 %v2213, %v2421
        %v2423 = vpop.f32.mrf.mxu0
        %v2424 = vadd.f32 %v2213, %v2423
        %2425 = vdwg.mxu0
        %2426 = vmatpush.bf16.msra.mxu0 %v2343
        %2427 = vmatpush.bf16.msra.mxu0 %v2341
        %2428 = vmatpush.bf16.msra.mxu0 %v2339
        %2429 = vmatpush.bf16.msra.mxu0 %v2337
        %2430 = vmatpush.bf16.msra.mxu0 %v2335
        %2431 = vmatpush.bf16.msra.mxu0 %v2333
        %2432 = vmatpush.bf16.msra.mxu0 %v2331
        %2433 = vmatpush.bf16.msra.mxu0 %v2329
        %2434 = vmatmul.bf16.gmra.mxu0 %v2197
        %v2435 = vpop.f32.mrf.mxu0
        %v2436 = vadd.f32 %v2387, %v2435
        %v2437 = vpop.f32.mrf.mxu0
        %v2438 = vadd.f32 %v2389, %v2437
        %2439 = vmatmul.bf16.gmra.mxu0 %v2199
        %v2440 = vpop.f32.mrf.mxu0
        %v2441 = vadd.f32 %v2392, %v2440
        %v2442 = vpop.f32.mrf.mxu0
        %v2443 = vadd.f32 %v2394, %v2442
        %2444 = vmatmul.bf16.gmra.mxu0 %v2201
        %v2445 = vpop.f32.mrf.mxu0
        %v2446 = vadd.f32 %v2397, %v2445
        %v2447 = vpop.f32.mrf.mxu0
        %v2448 = vadd.f32 %v2399, %v2447
        %2449 = vmatmul.bf16.gmra.mxu0 %v2203
        %v2450 = vpop.f32.mrf.mxu0
        %v2451 = vadd.f32 %v2402, %v2450
        %v2452 = vpop.f32.mrf.mxu0
        %v2453 = vadd.f32 %v2404, %v2452
        %2454 = vmatmul.bf16.gmra.mxu0 %v2205
        %v2455 = vpop.f32.mrf.mxu0
        %v2456 = vadd.f32 %v2407, %v2455
        %v2457 = vpop.f32.mrf.mxu0
        %v2458 = vadd.f32 %v2409, %v2457
        %2459 = vmatmul.bf16.gmra.mxu0 %v2207
        %v2460 = vpop.f32.mrf.mxu0
        %v2461 = vadd.f32 %v2412, %v2460
        %v2462 = vpop.f32.mrf.mxu0
        %v2463 = vadd.f32 %v2414, %v2462
        %2464 = vmatmul.bf16.gmra.mxu0 %v2209
        %v2465 = vpop.f32.mrf.mxu0
        %v2466 = vadd.f32 %v2417, %v2465
        %v2467 = vpop.f32.mrf.mxu0
        %v2468 = vadd.f32 %v2419, %v2467
        %2469 = vmatmul.bf16.gmra.mxu0 %v2211
        %v2470 = vpop.f32.mrf.mxu0
        %v2471 = vadd.f32 %v2422, %v2470
        %v2472 = vpop.f32.mrf.mxu0
        %v2473 = vadd.f32 %v2424, %v2472
        %2474 = vdwg.mxu0
        %2475 = vmatpush.bf16.msra.mxu0 %v2328
        %2476 = vmatpush.bf16.msra.mxu0 %v2326
        %2477 = vmatpush.bf16.msra.mxu0 %v2324
        %2478 = vmatpush.bf16.msra.mxu0 %v2322
        %2479 = vmatpush.bf16.msra.mxu0 %v2320
        %2480 = vmatpush.bf16.msra.mxu0 %v2318
        %2481 = vmatpush.bf16.msra.mxu0 %v2316
        %2482 = vmatpush.bf16.msra.mxu0 %v2314
        %2483 = vmatmul.bf16.gmra.mxu0 %v2196
        %v2484 = vpop.f32.mrf.mxu0
        %v2485 = vadd.f32 %v2214, %v2484
        %v2486 = vpop.f32.mrf.mxu0
        %v2487 = vadd.f32 %v2214, %v2486
        %2488 = vmatmul.bf16.gmra.mxu0 %v2198
        %v2489 = vpop.f32.mrf.mxu0
        %v2490 = vadd.f32 %v2214, %v2489
        %v2491 = vpop.f32.mrf.mxu0
        %v2492 = vadd.f32 %v2214, %v2491
        %2493 = vmatmul.bf16.gmra.mxu0 %v2200
        %v2494 = vpop.f32.mrf.mxu0
        %v2495 = vadd.f32 %v2214, %v2494
        %v2496 = vpop.f32.mrf.mxu0
        %v2497 = vadd.f32 %v2214, %v2496
        %2498 = vmatmul.bf16.gmra.mxu0 %v2202
        %v2499 = vpop.f32.mrf.mxu0
        %v2500 = vadd.f32 %v2214, %v2499
        %v2501 = vpop.f32.mrf.mxu0
        %v2502 = vadd.f32 %v2214, %v2501
        %2503 = vmatmul.bf16.gmra.mxu0 %v2204
        %v2504 = vpop.f32.mrf.mxu0
        %v2505 = vadd.f32 %v2214, %v2504
        %v2506 = vpop.f32.mrf.mxu0
        %v2507 = vadd.f32 %v2214, %v2506
        %2508 = vmatmul.bf16.gmra.mxu0 %v2206
        %v2509 = vpop.f32.mrf.mxu0
        %v2510 = vadd.f32 %v2214, %v2509
        %v2511 = vpop.f32.mrf.mxu0
        %v2512 = vadd.f32 %v2214, %v2511
        %2513 = vmatmul.bf16.gmra.mxu0 %v2208
        %v2514 = vpop.f32.mrf.mxu0
        %v2515 = vadd.f32 %v2214, %v2514
        %v2516 = vpop.f32.mrf.mxu0
        %v2517 = vadd.f32 %v2214, %v2516
        %2518 = vmatmul.bf16.gmra.mxu0 %v2210
        %v2519 = vpop.f32.mrf.mxu0
        %v2520 = vadd.f32 %v2214, %v2519
        %v2521 = vpop.f32.mrf.mxu0
        %v2522 = vadd.f32 %v2214, %v2521
        %2523 = vdwg.mxu0
        %2524 = vmatpush.bf16.msra.mxu0 %v2344
        %2525 = vmatpush.bf16.msra.mxu0 %v2342
        %2526 = vmatpush.bf16.msra.mxu0 %v2340
        %2527 = vmatpush.bf16.msra.mxu0 %v2338
        %2528 = vmatpush.bf16.msra.mxu0 %v2336
        %2529 = vmatpush.bf16.msra.mxu0 %v2334
        %2530 = vmatpush.bf16.msra.mxu0 %v2332
        %2531 = vmatpush.bf16.msra.mxu0 %v2330
        %2532 = vmatmul.bf16.gmra.mxu0 %v2197
        %v2533 = vpop.f32.mrf.mxu0
        %v2534 = vadd.f32 %v2485, %v2533
        %v2535 = vpop.f32.mrf.mxu0
        %v2536 = vadd.f32 %v2487, %v2535
        %2537 = vmatmul.bf16.gmra.mxu0 %v2199
        %v2538 = vpop.f32.mrf.mxu0
        %v2539 = vadd.f32 %v2490, %v2538
        %v2540 = vpop.f32.mrf.mxu0
        %v2541 = vadd.f32 %v2492, %v2540
        %2542 = vmatmul.bf16.gmra.mxu0 %v2201
        %v2543 = vpop.f32.mrf.mxu0
        %v2544 = vadd.f32 %v2495, %v2543
        %v2545 = vpop.f32.mrf.mxu0
        %v2546 = vadd.f32 %v2497, %v2545
        %2547 = vmatmul.bf16.gmra.mxu0 %v2203
        %v2548 = vpop.f32.mrf.mxu0
        %v2549 = vadd.f32 %v2500, %v2548
        %v2550 = vpop.f32.mrf.mxu0
        %v2551 = vadd.f32 %v2502, %v2550
        %2552 = vmatmul.bf16.gmra.mxu0 %v2205
        %v2553 = vpop.f32.mrf.mxu0
        %v2554 = vadd.f32 %v2505, %v2553
        %v2555 = vpop.f32.mrf.mxu0
        %v2556 = vadd.f32 %v2507, %v2555
        %2557 = vmatmul.bf16.gmra.mxu0 %v2207
        %v2558 = vpop.f32.mrf.mxu0
        %v2559 = vadd.f32 %v2510, %v2558
        %v2560 = vpop.f32.mrf.mxu0
        %v2561 = vadd.f32 %v2512, %v2560
        %2562 = vmatmul.bf16.gmra.mxu0 %v2209
        %v2563 = vpop.f32.mrf.mxu0
        %v2564 = vadd.f32 %v2515, %v2563
        %v2565 = vpop.f32.mrf.mxu0
        %v2566 = vadd.f32 %v2517, %v2565
        %2567 = vmatmul.bf16.gmra.mxu0 %v2211
        %v2568 = vpop.f32.mrf.mxu0
        %v2569 = vadd.f32 %v2520, %v2568
        %v2570 = vpop.f32.mrf.mxu0
        %v2571 = vadd.f32 %v2522, %v2570
        %2572 = vdwg.mxu0
        %v2573 = vmax.f32 %v2436, 0.0
        %v2574 = vmax.f32 %v2534, 0.0
        %v2575 = vmax.f32 %v2438, 0.0
        %v2576 = vmax.f32 %v2536, 0.0
        %v2577 = vmax.f32 %v2441, 0.0
        %v2578 = vmax.f32 %v2539, 0.0
        %v2579 = vmax.f32 %v2443, 0.0
        %v2580 = vmax.f32 %v2541, 0.0
        %v2581 = vmax.f32 %v2446, 0.0
        %v2582 = vmax.f32 %v2544, 0.0
        %v2583 = vmax.f32 %v2448, 0.0
        %v2584 = vmax.f32 %v2546, 0.0
        %v2585 = vmax.f32 %v2451, 0.0
        %v2586 = vmax.f32 %v2549, 0.0
        %v2587 = vmax.f32 %v2453, 0.0
        %v2588 = vmax.f32 %v2551, 0.0
        %v2589 = vmax.f32 %v2456, 0.0
        %v2590 = vmax.f32 %v2554, 0.0
        %v2591 = vmax.f32 %v2458, 0.0
        %v2592 = vmax.f32 %v2556, 0.0
        %v2593 = vmax.f32 %v2461, 0.0
        %v2594 = vmax.f32 %v2559, 0.0
        %v2595 = vmax.f32 %v2463, 0.0
        %v2596 = vmax.f32 %v2561, 0.0
        %v2597 = vmax.f32 %v2466, 0.0
        %v2598 = vmax.f32 %v2564, 0.0
        %v2599 = vmax.f32 %v2468, 0.0
        %v2600 = vmax.f32 %v2566, 0.0
        %v2601 = vmax.f32 %v2471, 0.0
        %v2602 = vmax.f32 %v2569, 0.0
        %v2603 = vmax.f32 %v2473, 0.0
        %v2604 = vmax.f32 %v2571, 0.0
        %v2605 = vld [vmem:[#allocation10] sm:$0xff]
        %v2606 = vld [vmem:[#allocation10 + $0x8] sm:$0xff]
        %v2607 = vld [vmem:[#allocation10 + $0x10] sm:$0xff]
        %v2608 = vld [vmem:[#allocation10 + $0x18] sm:$0xff]
        %v2609 = vld [vmem:[#allocation10 + $0x20] sm:$0xff]
        %v2610 = vld [vmem:[#allocation10 + $0x28] sm:$0xff]
        %v2611 = vld [vmem:[#allocation10 + $0x30] sm:$0xff]
        %v2612 = vld [vmem:[#allocation10 + $0x38] sm:$0xff]
        %v2613 = vld [vmem:[#allocation10 + $0x40] sm:$0xff]
        %v2614 = vld [vmem:[#allocation10 + $0x48] sm:$0xff]
        %v2615 = vld [vmem:[#allocation10 + $0x50] sm:$0xff]
        %v2616 = vld [vmem:[#allocation10 + $0x58] sm:$0xff]
        %v2617 = vld [vmem:[#allocation10 + $0x60] sm:$0xff]
        %v2618 = vld [vmem:[#allocation10 + $0x68] sm:$0xff]
        %v2619 = vld [vmem:[#allocation10 + $0x70] sm:$0xff]
        %v2620 = vld [vmem:[#allocation10 + $0x78] sm:$0xff]
        %v2621 = vld [vmem:[#allocation10 + $0x80] sm:$0xff]
        %v2622 = vld [vmem:[#allocation10 + $0x88] sm:$0xff]
        %v2623 = vld [vmem:[#allocation10 + $0x90] sm:$0xff]
        %v2624 = vld [vmem:[#allocation10 + $0x98] sm:$0xff]
        %v2625 = vld [vmem:[#allocation10 + $0xa0] sm:$0xff]
        %v2626 = vld [vmem:[#allocation10 + $0xa8] sm:$0xff]
        %v2627 = vld [vmem:[#allocation10 + $0xb0] sm:$0xff]
        %v2628 = vld [vmem:[#allocation10 + $0xb8] sm:$0xff]
        %v2629 = vld [vmem:[#allocation10 + $0xc0] sm:$0xff]
        %v2630 = vld [vmem:[#allocation10 + $0xc8] sm:$0xff]
        %v2631 = vld [vmem:[#allocation10 + $0xd0] sm:$0xff]
        %v2632 = vld [vmem:[#allocation10 + $0xd8] sm:$0xff]
        %v2633 = vld [vmem:[#allocation10 + $0xe0] sm:$0xff]
        %v2634 = vld [vmem:[#allocation10 + $0xe8] sm:$0xff]
        %v2635 = vld [vmem:[#allocation10 + $0xf0] sm:$0xff]
        %v2636 = vld [vmem:[#allocation10 + $0xf8] sm:$0xff]
        %v2637 = vld [vmem:[#allocation10 + $0x100] sm:$0xff]
        %v2638 = vld [vmem:[#allocation10 + $0x108] sm:$0xff]
        %v2639 = vld [vmem:[#allocation10 + $0x110] sm:$0xff]
        %v2640 = vld [vmem:[#allocation10 + $0x118] sm:$0xff]
        %v2641 = vld [vmem:[#allocation10 + $0x120] sm:$0xff]
        %v2642 = vld [vmem:[#allocation10 + $0x128] sm:$0xff]
        %v2643 = vld [vmem:[#allocation10 + $0x130] sm:$0xff]
        %v2644 = vld [vmem:[#allocation10 + $0x138] sm:$0xff]
        %v2645 = vld [vmem:[#allocation10 + $0x140] sm:$0xff]
        %v2646 = vld [vmem:[#allocation10 + $0x148] sm:$0xff]
        %v2647 = vld [vmem:[#allocation10 + $0x150] sm:$0xff]
        %v2648 = vld [vmem:[#allocation10 + $0x158] sm:$0xff]
        %v2649 = vld [vmem:[#allocation10 + $0x160] sm:$0xff]
        %v2650 = vld [vmem:[#allocation10 + $0x168] sm:$0xff]
        %v2651 = vld [vmem:[#allocation10 + $0x170] sm:$0xff]
        %v2652 = vld [vmem:[#allocation10 + $0x178] sm:$0xff]
        %v2653 = vld [vmem:[#allocation10 + $0x180] sm:$0xff]
        %v2654 = vld [vmem:[#allocation10 + $0x188] sm:$0xff]
        %v2655 = vld [vmem:[#allocation10 + $0x190] sm:$0xff]
        %v2656 = vld [vmem:[#allocation10 + $0x198] sm:$0xff]
        %v2657 = vld [vmem:[#allocation10 + $0x1a0] sm:$0xff]
        %v2658 = vld [vmem:[#allocation10 + $0x1a8] sm:$0xff]
        %v2659 = vld [vmem:[#allocation10 + $0x1b0] sm:$0xff]
        %v2660 = vld [vmem:[#allocation10 + $0x1b8] sm:$0xff]
        %v2661 = vld [vmem:[#allocation10 + $0x1c0] sm:$0xff]
        %v2662 = vld [vmem:[#allocation10 + $0x1c8] sm:$0xff]
        %v2663 = vld [vmem:[#allocation10 + $0x1d0] sm:$0xff]
        %v2664 = vld [vmem:[#allocation10 + $0x1d8] sm:$0xff]
        %v2665 = vld [vmem:[#allocation10 + $0x1e0] sm:$0xff]
        %v2666 = vld [vmem:[#allocation10 + $0x1e8] sm:$0xff]
        %v2667 = vld [vmem:[#allocation10 + $0x1f0] sm:$0xff]
        %v2668 = vld [vmem:[#allocation10 + $0x1f8] sm:$0xff]
        %v2669 = vld [vmem:[#allocation10 + $0x200] sm:$0xff]
        %v2670 = vld [vmem:[#allocation10 + $0x208] sm:$0xff]
        %v2671 = vld [vmem:[#allocation10 + $0x210] sm:$0xff]
        %v2672 = vld [vmem:[#allocation10 + $0x218] sm:$0xff]
        %v2673 = vld [vmem:[#allocation10 + $0x220] sm:$0xff]
        %v2674 = vld [vmem:[#allocation10 + $0x228] sm:$0xff]
        %v2675 = vld [vmem:[#allocation10 + $0x230] sm:$0xff]
        %v2676 = vld [vmem:[#allocation10 + $0x238] sm:$0xff]
        %v2677 = vld [vmem:[#allocation10 + $0x240] sm:$0xff]
        %v2678 = vld [vmem:[#allocation10 + $0x248] sm:$0xff]
        %v2679 = vld [vmem:[#allocation10 + $0x250] sm:$0xff]
        %v2680 = vld [vmem:[#allocation10 + $0x258] sm:$0xff]
        %v2681 = vld [vmem:[#allocation10 + $0x260] sm:$0xff]
        %v2682 = vld [vmem:[#allocation10 + $0x268] sm:$0xff]
        %v2683 = vld [vmem:[#allocation10 + $0x270] sm:$0xff]
        %v2684 = vld [vmem:[#allocation10 + $0x278] sm:$0xff]
        %v2685 = vld [vmem:[#allocation10 + $0x280] sm:$0xff]
        %v2686 = vld [vmem:[#allocation10 + $0x288] sm:$0xff]
        %v2687 = vld [vmem:[#allocation10 + $0x290] sm:$0xff]
        %v2688 = vld [vmem:[#allocation10 + $0x298] sm:$0xff]
        %v2689 = vld [vmem:[#allocation10 + $0x2a0] sm:$0xff]
        %v2690 = vld [vmem:[#allocation10 + $0x2a8] sm:$0xff]
        %v2691 = vld [vmem:[#allocation10 + $0x2b0] sm:$0xff]
        %v2692 = vld [vmem:[#allocation10 + $0x2b8] sm:$0xff]
        %v2693 = vld [vmem:[#allocation10 + $0x2c0] sm:$0xff]
        %v2694 = vld [vmem:[#allocation10 + $0x2c8] sm:$0xff]
        %v2695 = vld [vmem:[#allocation10 + $0x2d0] sm:$0xff]
        %v2696 = vld [vmem:[#allocation10 + $0x2d8] sm:$0xff]
        %v2697 = vld [vmem:[#allocation10 + $0x2e0] sm:$0xff]
        %v2698 = vld [vmem:[#allocation10 + $0x2e8] sm:$0xff]
        %v2699 = vld [vmem:[#allocation10 + $0x2f0] sm:$0xff]
        %v2700 = vld [vmem:[#allocation10 + $0x2f8] sm:$0xff]
        %v2701 = vld [vmem:[#allocation10 + $0x300] sm:$0xff]
        %v2702 = vld [vmem:[#allocation10 + $0x308] sm:$0xff]
        %v2703 = vld [vmem:[#allocation10 + $0x310] sm:$0xff]
        %v2704 = vld [vmem:[#allocation10 + $0x318] sm:$0xff]
        %v2705 = vld [vmem:[#allocation10 + $0x320] sm:$0xff]
        %v2706 = vld [vmem:[#allocation10 + $0x328] sm:$0xff]
        %v2707 = vld [vmem:[#allocation10 + $0x330] sm:$0xff]
        %v2708 = vld [vmem:[#allocation10 + $0x338] sm:$0xff]
        %v2709 = vld [vmem:[#allocation10 + $0x340] sm:$0xff]
        %v2710 = vld [vmem:[#allocation10 + $0x348] sm:$0xff]
        %v2711 = vld [vmem:[#allocation10 + $0x350] sm:$0xff]
        %v2712 = vld [vmem:[#allocation10 + $0x358] sm:$0xff]
        %v2713 = vld [vmem:[#allocation10 + $0x360] sm:$0xff]
        %v2714 = vld [vmem:[#allocation10 + $0x368] sm:$0xff]
        %v2715 = vld [vmem:[#allocation10 + $0x370] sm:$0xff]
        %v2716 = vld [vmem:[#allocation10 + $0x378] sm:$0xff]
        %v2717 = vld [vmem:[#allocation10 + $0x380] sm:$0xff]
        %v2718 = vld [vmem:[#allocation10 + $0x388] sm:$0xff]
        %v2719 = vld [vmem:[#allocation10 + $0x390] sm:$0xff]
        %v2720 = vld [vmem:[#allocation10 + $0x398] sm:$0xff]
        %v2721 = vld [vmem:[#allocation10 + $0x3a0] sm:$0xff]
        %v2722 = vld [vmem:[#allocation10 + $0x3a8] sm:$0xff]
        %v2723 = vld [vmem:[#allocation10 + $0x3b0] sm:$0xff]
        %v2724 = vld [vmem:[#allocation10 + $0x3b8] sm:$0xff]
        %v2725 = vld [vmem:[#allocation10 + $0x3c0] sm:$0xff]
        %v2726 = vld [vmem:[#allocation10 + $0x3c8] sm:$0xff]
        %v2727 = vld [vmem:[#allocation10 + $0x3d0] sm:$0xff]
        %v2728 = vld [vmem:[#allocation10 + $0x3d8] sm:$0xff]
        %v2729 = vld [vmem:[#allocation10 + $0x3e0] sm:$0xff]
        %v2730 = vld [vmem:[#allocation10 + $0x3e8] sm:$0xff]
        %v2731 = vld [vmem:[#allocation10 + $0x3f0] sm:$0xff]
        %v2732 = vld [vmem:[#allocation10 + $0x3f8] sm:$0xff]
        %v2733 = vld [vmem:[#allocation11] sm:$0xff]
        %v2734 = vpack.c.bf16 %v2575, %v2573
        %v2735 = vpack.c.bf16 %v2576, %v2574
        %v2736 = vpack.c.bf16 %v2579, %v2577
        %v2737 = vpack.c.bf16 %v2580, %v2578
        %v2738 = vpack.c.bf16 %v2583, %v2581
        %v2739 = vpack.c.bf16 %v2584, %v2582
        %v2740 = vpack.c.bf16 %v2587, %v2585
        %v2741 = vpack.c.bf16 %v2588, %v2586
        %v2742 = vpack.c.bf16 %v2591, %v2589
        %v2743 = vpack.c.bf16 %v2592, %v2590
        %v2744 = vpack.c.bf16 %v2595, %v2593
        %v2745 = vpack.c.bf16 %v2596, %v2594
        %v2746 = vpack.c.bf16 %v2599, %v2597
        %v2747 = vpack.c.bf16 %v2600, %v2598
        %v2748 = vpack.c.bf16 %v2603, %v2601
        %v2749 = vpack.c.bf16 %v2604, %v2602
        %v2751 = vperm.slane %v2733, 0
        %v2752 = vperm.slane %v2733, 1
        %v2753 = vperm.slane %v2733, 2
        %v2754 = vperm.slane %v2733, 3
        %v2755 = vperm.slane %v2733, 4
        %v2756 = vperm.slane %v2733, 5
        %v2757 = vperm.slane %v2733, 6
        %v2758 = vperm.slane %v2733, 7
        %v2895 = vunpack.c.l.b16 %v2605
        %v2896 = vunpack.c.h.b16 %v2605
        %v2897 = vunpack.c.l.b16 %v2606
        %v2898 = vunpack.c.h.b16 %v2606
        %v2899 = vunpack.c.l.b16 %v2607
        %v2900 = vunpack.c.h.b16 %v2607
        %v2901 = vunpack.c.l.b16 %v2608
        %v2902 = vunpack.c.h.b16 %v2608
        %v2903 = vunpack.c.l.b16 %v2609
        %v2904 = vunpack.c.h.b16 %v2609
        %v2905 = vunpack.c.l.b16 %v2610
        %v2906 = vunpack.c.h.b16 %v2610
        %v2907 = vunpack.c.l.b16 %v2611
        %v2908 = vunpack.c.h.b16 %v2611
        %v2909 = vunpack.c.l.b16 %v2612
        %v2910 = vunpack.c.h.b16 %v2612
        %v2911 = vunpack.c.l.b16 %v2613
        %v2912 = vunpack.c.h.b16 %v2613
        %v2913 = vunpack.c.l.b16 %v2614
        %v2914 = vunpack.c.h.b16 %v2614
        %v2915 = vunpack.c.l.b16 %v2615
        %v2916 = vunpack.c.h.b16 %v2615
        %v2917 = vunpack.c.l.b16 %v2616
        %v2918 = vunpack.c.h.b16 %v2616
        %v2919 = vunpack.c.l.b16 %v2617
        %v2920 = vunpack.c.h.b16 %v2617
        %v2921 = vunpack.c.l.b16 %v2618
        %v2922 = vunpack.c.h.b16 %v2618
        %v2923 = vunpack.c.l.b16 %v2619
        %v2924 = vunpack.c.h.b16 %v2619
        %v2925 = vunpack.c.l.b16 %v2620
        %v2926 = vunpack.c.h.b16 %v2620
        %v2927 = vunpack.c.l.b16 %v2621
        %v2928 = vunpack.c.h.b16 %v2621
        %v2929 = vunpack.c.l.b16 %v2622
        %v2930 = vunpack.c.h.b16 %v2622
        %v2931 = vunpack.c.l.b16 %v2623
        %v2932 = vunpack.c.h.b16 %v2623
        %v2933 = vunpack.c.l.b16 %v2624
        %v2934 = vunpack.c.h.b16 %v2624
        %v2935 = vunpack.c.l.b16 %v2625
        %v2936 = vunpack.c.h.b16 %v2625
        %v2937 = vunpack.c.l.b16 %v2626
        %v2938 = vunpack.c.h.b16 %v2626
        %v2939 = vunpack.c.l.b16 %v2627
        %v2940 = vunpack.c.h.b16 %v2627
        %v2941 = vunpack.c.l.b16 %v2628
        %v2942 = vunpack.c.h.b16 %v2628
        %v2943 = vunpack.c.l.b16 %v2629
        %v2944 = vunpack.c.h.b16 %v2629
        %v2945 = vunpack.c.l.b16 %v2630
        %v2946 = vunpack.c.h.b16 %v2630
        %v2947 = vunpack.c.l.b16 %v2631
        %v2948 = vunpack.c.h.b16 %v2631
        %v2949 = vunpack.c.l.b16 %v2632
        %v2950 = vunpack.c.h.b16 %v2632
        %v2951 = vunpack.c.l.b16 %v2633
        %v2952 = vunpack.c.h.b16 %v2633
        %v2953 = vunpack.c.l.b16 %v2634
        %v2954 = vunpack.c.h.b16 %v2634
        %v2955 = vunpack.c.l.b16 %v2635
        %v2956 = vunpack.c.h.b16 %v2635
        %v2957 = vunpack.c.l.b16 %v2636
        %v2958 = vunpack.c.h.b16 %v2636
        %v2959 = vunpack.c.l.b16 %v2637
        %v2960 = vunpack.c.h.b16 %v2637
        %v2961 = vunpack.c.l.b16 %v2638
        %v2962 = vunpack.c.h.b16 %v2638
        %v2963 = vunpack.c.l.b16 %v2639
        %v2964 = vunpack.c.h.b16 %v2639
        %v2965 = vunpack.c.l.b16 %v2640
        %v2966 = vunpack.c.h.b16 %v2640
        %v2967 = vunpack.c.l.b16 %v2641
        %v2968 = vunpack.c.h.b16 %v2641
        %v2969 = vunpack.c.l.b16 %v2642
        %v2970 = vunpack.c.h.b16 %v2642
        %v2971 = vunpack.c.l.b16 %v2643
        %v2972 = vunpack.c.h.b16 %v2643
        %v2973 = vunpack.c.l.b16 %v2644
        %v2974 = vunpack.c.h.b16 %v2644
        %v2975 = vunpack.c.l.b16 %v2645
        %v2976 = vunpack.c.h.b16 %v2645
        %v2977 = vunpack.c.l.b16 %v2646
        %v2978 = vunpack.c.h.b16 %v2646
        %v2979 = vunpack.c.l.b16 %v2647
        %v2980 = vunpack.c.h.b16 %v2647
        %v2981 = vunpack.c.l.b16 %v2648
        %v2982 = vunpack.c.h.b16 %v2648
        %v2983 = vunpack.c.l.b16 %v2649
        %v2984 = vunpack.c.h.b16 %v2649
        %v2985 = vunpack.c.l.b16 %v2650
        %v2986 = vunpack.c.h.b16 %v2650
        %v2987 = vunpack.c.l.b16 %v2651
        %v2988 = vunpack.c.h.b16 %v2651
        %v2989 = vunpack.c.l.b16 %v2652
        %v2990 = vunpack.c.h.b16 %v2652
        %v2991 = vunpack.c.l.b16 %v2653
        %v2992 = vunpack.c.h.b16 %v2653
        %v2993 = vunpack.c.l.b16 %v2654
        %v2994 = vunpack.c.h.b16 %v2654
        %v2995 = vunpack.c.l.b16 %v2655
        %v2996 = vunpack.c.h.b16 %v2655
        %v2997 = vunpack.c.l.b16 %v2656
        %v2998 = vunpack.c.h.b16 %v2656
        %v2999 = vunpack.c.l.b16 %v2657
        %v3000 = vunpack.c.h.b16 %v2657
        %v3001 = vunpack.c.l.b16 %v2658
        %v3002 = vunpack.c.h.b16 %v2658
        %v3003 = vunpack.c.l.b16 %v2659
        %v3004 = vunpack.c.h.b16 %v2659
        %v3005 = vunpack.c.l.b16 %v2660
        %v3006 = vunpack.c.h.b16 %v2660
        %v3007 = vunpack.c.l.b16 %v2661
        %v3008 = vunpack.c.h.b16 %v2661
        %v3009 = vunpack.c.l.b16 %v2662
        %v3010 = vunpack.c.h.b16 %v2662
        %v3011 = vunpack.c.l.b16 %v2663
        %v3012 = vunpack.c.h.b16 %v2663
        %v3013 = vunpack.c.l.b16 %v2664
        %v3014 = vunpack.c.h.b16 %v2664
        %v3015 = vunpack.c.l.b16 %v2665
        %v3016 = vunpack.c.h.b16 %v2665
        %v3017 = vunpack.c.l.b16 %v2666
        %v3018 = vunpack.c.h.b16 %v2666
        %v3019 = vunpack.c.l.b16 %v2667
        %v3020 = vunpack.c.h.b16 %v2667
        %v3021 = vunpack.c.l.b16 %v2668
        %v3022 = vunpack.c.h.b16 %v2668
        %v3023 = vunpack.c.l.b16 %v2669
        %v3024 = vunpack.c.h.b16 %v2669
        %v3025 = vunpack.c.l.b16 %v2670
        %v3026 = vunpack.c.h.b16 %v2670
        %v3027 = vunpack.c.l.b16 %v2671
        %v3028 = vunpack.c.h.b16 %v2671
        %v3029 = vunpack.c.l.b16 %v2672
        %v3030 = vunpack.c.h.b16 %v2672
        %v3031 = vunpack.c.l.b16 %v2673
        %v3032 = vunpack.c.h.b16 %v2673
        %v3033 = vunpack.c.l.b16 %v2674
        %v3034 = vunpack.c.h.b16 %v2674
        %v3035 = vunpack.c.l.b16 %v2675
        %v3036 = vunpack.c.h.b16 %v2675
        %v3037 = vunpack.c.l.b16 %v2676
        %v3038 = vunpack.c.h.b16 %v2676
        %v3039 = vunpack.c.l.b16 %v2677
        %v3040 = vunpack.c.h.b16 %v2677
        %v3041 = vunpack.c.l.b16 %v2678
        %v3042 = vunpack.c.h.b16 %v2678
        %v3043 = vunpack.c.l.b16 %v2679
        %v3044 = vunpack.c.h.b16 %v2679
        %v3045 = vunpack.c.l.b16 %v2680
        %v3046 = vunpack.c.h.b16 %v2680
        %v3047 = vunpack.c.l.b16 %v2681
        %v3048 = vunpack.c.h.b16 %v2681
        %v3049 = vunpack.c.l.b16 %v2682
        %v3050 = vunpack.c.h.b16 %v2682
        %v3051 = vunpack.c.l.b16 %v2683
        %v3052 = vunpack.c.h.b16 %v2683
        %v3053 = vunpack.c.l.b16 %v2684
        %v3054 = vunpack.c.h.b16 %v2684
        %v3055 = vunpack.c.l.b16 %v2685
        %v3056 = vunpack.c.h.b16 %v2685
        %v3057 = vunpack.c.l.b16 %v2686
        %v3058 = vunpack.c.h.b16 %v2686
        %v3059 = vunpack.c.l.b16 %v2687
        %v3060 = vunpack.c.h.b16 %v2687
        %v3061 = vunpack.c.l.b16 %v2688
        %v3062 = vunpack.c.h.b16 %v2688
        %v3063 = vunpack.c.l.b16 %v2689
        %v3064 = vunpack.c.h.b16 %v2689
        %v3065 = vunpack.c.l.b16 %v2690
        %v3066 = vunpack.c.h.b16 %v2690
        %v3067 = vunpack.c.l.b16 %v2691
        %v3068 = vunpack.c.h.b16 %v2691
        %v3069 = vunpack.c.l.b16 %v2692
        %v3070 = vunpack.c.h.b16 %v2692
        %v3071 = vunpack.c.l.b16 %v2693
        %v3072 = vunpack.c.h.b16 %v2693
        %v3073 = vunpack.c.l.b16 %v2694
        %v3074 = vunpack.c.h.b16 %v2694
        %v3075 = vunpack.c.l.b16 %v2695
        %v3076 = vunpack.c.h.b16 %v2695
        %v3077 = vunpack.c.l.b16 %v2696
        %v3078 = vunpack.c.h.b16 %v2696
        %v3079 = vunpack.c.l.b16 %v2697
        %v3080 = vunpack.c.h.b16 %v2697
        %v3081 = vunpack.c.l.b16 %v2698
        %v3082 = vunpack.c.h.b16 %v2698
        %v3083 = vunpack.c.l.b16 %v2699
        %v3084 = vunpack.c.h.b16 %v2699
        %v3085 = vunpack.c.l.b16 %v2700
        %v3086 = vunpack.c.h.b16 %v2700
        %v3087 = vunpack.c.l.b16 %v2701
        %v3088 = vunpack.c.h.b16 %v2701
        %v3089 = vunpack.c.l.b16 %v2702
        %v3090 = vunpack.c.h.b16 %v2702
        %v3091 = vunpack.c.l.b16 %v2703
        %v3092 = vunpack.c.h.b16 %v2703
        %v3093 = vunpack.c.l.b16 %v2704
        %v3094 = vunpack.c.h.b16 %v2704
        %v3095 = vunpack.c.l.b16 %v2705
        %v3096 = vunpack.c.h.b16 %v2705
        %v3097 = vunpack.c.l.b16 %v2706
        %v3098 = vunpack.c.h.b16 %v2706
        %v3099 = vunpack.c.l.b16 %v2707
        %v3100 = vunpack.c.h.b16 %v2707
        %v3101 = vunpack.c.l.b16 %v2708
        %v3102 = vunpack.c.h.b16 %v2708
        %v3103 = vunpack.c.l.b16 %v2709
        %v3104 = vunpack.c.h.b16 %v2709
        %v3105 = vunpack.c.l.b16 %v2710
        %v3106 = vunpack.c.h.b16 %v2710
        %v3107 = vunpack.c.l.b16 %v2711
        %v3108 = vunpack.c.h.b16 %v2711
        %v3109 = vunpack.c.l.b16 %v2712
        %v3110 = vunpack.c.h.b16 %v2712
        %v3111 = vunpack.c.l.b16 %v2713
        %v3112 = vunpack.c.h.b16 %v2713
        %v3113 = vunpack.c.l.b16 %v2714
        %v3114 = vunpack.c.h.b16 %v2714
        %v3115 = vunpack.c.l.b16 %v2715
        %v3116 = vunpack.c.h.b16 %v2715
        %v3117 = vunpack.c.l.b16 %v2716
        %v3118 = vunpack.c.h.b16 %v2716
        %v3119 = vunpack.c.l.b16 %v2717
        %v3120 = vunpack.c.h.b16 %v2717
        %v3121 = vunpack.c.l.b16 %v2718
        %v3122 = vunpack.c.h.b16 %v2718
        %v3123 = vunpack.c.l.b16 %v2719
        %v3124 = vunpack.c.h.b16 %v2719
        %v3125 = vunpack.c.l.b16 %v2720
        %v3126 = vunpack.c.h.b16 %v2720
        %v3127 = vunpack.c.l.b16 %v2721
        %v3128 = vunpack.c.h.b16 %v2721
        %v3129 = vunpack.c.l.b16 %v2722
        %v3130 = vunpack.c.h.b16 %v2722
        %v3131 = vunpack.c.l.b16 %v2723
        %v3132 = vunpack.c.h.b16 %v2723
        %v3133 = vunpack.c.l.b16 %v2724
        %v3134 = vunpack.c.h.b16 %v2724
        %v3135 = vunpack.c.l.b16 %v2725
        %v3136 = vunpack.c.h.b16 %v2725
        %v3137 = vunpack.c.l.b16 %v2726
        %v3138 = vunpack.c.h.b16 %v2726
        %v3139 = vunpack.c.l.b16 %v2727
        %v3140 = vunpack.c.h.b16 %v2727
        %v3141 = vunpack.c.l.b16 %v2728
        %v3142 = vunpack.c.h.b16 %v2728
        %v3143 = vunpack.c.l.b16 %v2729
        %v3144 = vunpack.c.h.b16 %v2729
        %v3145 = vunpack.c.l.b16 %v2730
        %v3146 = vunpack.c.h.b16 %v2730
        %v3147 = vunpack.c.l.b16 %v2731
        %v3148 = vunpack.c.h.b16 %v2731
        %v3149 = vunpack.c.l.b16 %v2732
        %v3150 = vunpack.c.h.b16 %v2732
        %v3151 = vpack.c.b16 %v2903, %v2895
        %v3152 = vpack.c.b16 %v2904, %v2896
        %v3153 = vpack.c.b16 %v2905, %v2897
        %v3154 = vpack.c.b16 %v2906, %v2898
        %v3155 = vpack.c.b16 %v2907, %v2899
        %v3156 = vpack.c.b16 %v2908, %v2900
        %v3157 = vpack.c.b16 %v2909, %v2901
        %v3158 = vpack.c.b16 %v2910, %v2902
        %v3159 = vpack.c.b16 %v2919, %v2911
        %v3160 = vpack.c.b16 %v2920, %v2912
        %v3161 = vpack.c.b16 %v2921, %v2913
        %v3162 = vpack.c.b16 %v2922, %v2914
        %v3163 = vpack.c.b16 %v2923, %v2915
        %v3164 = vpack.c.b16 %v2924, %v2916
        %v3165 = vpack.c.b16 %v2925, %v2917
        %v3166 = vpack.c.b16 %v2926, %v2918
        %v3167 = vpack.c.b16 %v2935, %v2927
        %v3168 = vpack.c.b16 %v2936, %v2928
        %v3169 = vpack.c.b16 %v2937, %v2929
        %v3170 = vpack.c.b16 %v2938, %v2930
        %v3171 = vpack.c.b16 %v2939, %v2931
        %v3172 = vpack.c.b16 %v2940, %v2932
        %v3173 = vpack.c.b16 %v2941, %v2933
        %v3174 = vpack.c.b16 %v2942, %v2934
        %v3175 = vpack.c.b16 %v2951, %v2943
        %v3176 = vpack.c.b16 %v2952, %v2944
        %v3177 = vpack.c.b16 %v2953, %v2945
        %v3178 = vpack.c.b16 %v2954, %v2946
        %v3179 = vpack.c.b16 %v2955, %v2947
        %v3180 = vpack.c.b16 %v2956, %v2948
        %v3181 = vpack.c.b16 %v2957, %v2949
        %v3182 = vpack.c.b16 %v2958, %v2950
        %v3183 = vpack.c.b16 %v2967, %v2959
        %v3184 = vpack.c.b16 %v2968, %v2960
        %v3185 = vpack.c.b16 %v2969, %v2961
        %v3186 = vpack.c.b16 %v2970, %v2962
        %v3187 = vpack.c.b16 %v2971, %v2963
        %v3188 = vpack.c.b16 %v2972, %v2964
        %v3189 = vpack.c.b16 %v2973, %v2965
        %v3190 = vpack.c.b16 %v2974, %v2966
        %v3191 = vpack.c.b16 %v2983, %v2975
        %v3192 = vpack.c.b16 %v2984, %v2976
        %v3193 = vpack.c.b16 %v2985, %v2977
        %v3194 = vpack.c.b16 %v2986, %v2978
        %v3195 = vpack.c.b16 %v2987, %v2979
        %v3196 = vpack.c.b16 %v2988, %v2980
        %v3197 = vpack.c.b16 %v2989, %v2981
        %v3198 = vpack.c.b16 %v2990, %v2982
        %v3199 = vpack.c.b16 %v2999, %v2991
        %v3200 = vpack.c.b16 %v3000, %v2992
        %v3201 = vpack.c.b16 %v3001, %v2993
        %v3202 = vpack.c.b16 %v3002, %v2994
        %v3203 = vpack.c.b16 %v3003, %v2995
        %v3204 = vpack.c.b16 %v3004, %v2996
        %v3205 = vpack.c.b16 %v3005, %v2997
        %v3206 = vpack.c.b16 %v3006, %v2998
        %v3207 = vpack.c.b16 %v3015, %v3007
        %v3208 = vpack.c.b16 %v3016, %v3008
        %v3209 = vpack.c.b16 %v3017, %v3009
        %v3210 = vpack.c.b16 %v3018, %v3010
        %v3211 = vpack.c.b16 %v3019, %v3011
        %v3212 = vpack.c.b16 %v3020, %v3012
        %v3213 = vpack.c.b16 %v3021, %v3013
        %v3214 = vpack.c.b16 %v3022, %v3014
        %v3215 = vpack.c.b16 %v3031, %v3023
        %v3216 = vpack.c.b16 %v3032, %v3024
        %v3217 = vpack.c.b16 %v3033, %v3025
        %v3218 = vpack.c.b16 %v3034, %v3026
        %v3219 = vpack.c.b16 %v3035, %v3027
        %v3220 = vpack.c.b16 %v3036, %v3028
        %v3221 = vpack.c.b16 %v3037, %v3029
        %v3222 = vpack.c.b16 %v3038, %v3030
        %v3223 = vpack.c.b16 %v3047, %v3039
        %v3224 = vpack.c.b16 %v3048, %v3040
        %v3225 = vpack.c.b16 %v3049, %v3041
        %v3226 = vpack.c.b16 %v3050, %v3042
        %v3227 = vpack.c.b16 %v3051, %v3043
        %v3228 = vpack.c.b16 %v3052, %v3044
        %v3229 = vpack.c.b16 %v3053, %v3045
        %v3230 = vpack.c.b16 %v3054, %v3046
        %v3231 = vpack.c.b16 %v3063, %v3055
        %v3232 = vpack.c.b16 %v3064, %v3056
        %v3233 = vpack.c.b16 %v3065, %v3057
        %v3234 = vpack.c.b16 %v3066, %v3058
        %v3235 = vpack.c.b16 %v3067, %v3059
        %v3236 = vpack.c.b16 %v3068, %v3060
        %v3237 = vpack.c.b16 %v3069, %v3061
        %v3238 = vpack.c.b16 %v3070, %v3062
        %v3239 = vpack.c.b16 %v3079, %v3071
        %v3240 = vpack.c.b16 %v3080, %v3072
        %v3241 = vpack.c.b16 %v3081, %v3073
        %v3242 = vpack.c.b16 %v3082, %v3074
        %v3243 = vpack.c.b16 %v3083, %v3075
        %v3244 = vpack.c.b16 %v3084, %v3076
        %v3245 = vpack.c.b16 %v3085, %v3077
        %v3246 = vpack.c.b16 %v3086, %v3078
        %v3247 = vpack.c.b16 %v3095, %v3087
        %v3248 = vpack.c.b16 %v3096, %v3088
        %v3249 = vpack.c.b16 %v3097, %v3089
        %v3250 = vpack.c.b16 %v3098, %v3090
        %v3251 = vpack.c.b16 %v3099, %v3091
        %v3252 = vpack.c.b16 %v3100, %v3092
        %v3253 = vpack.c.b16 %v3101, %v3093
        %v3254 = vpack.c.b16 %v3102, %v3094
        %v3255 = vpack.c.b16 %v3111, %v3103
        %v3256 = vpack.c.b16 %v3112, %v3104
        %v3257 = vpack.c.b16 %v3113, %v3105
        %v3258 = vpack.c.b16 %v3114, %v3106
        %v3259 = vpack.c.b16 %v3115, %v3107
        %v3260 = vpack.c.b16 %v3116, %v3108
        %v3261 = vpack.c.b16 %v3117, %v3109
        %v3262 = vpack.c.b16 %v3118, %v3110
        %v3263 = vpack.c.b16 %v3127, %v3119
        %v3264 = vpack.c.b16 %v3128, %v3120
        %v3265 = vpack.c.b16 %v3129, %v3121
        %v3266 = vpack.c.b16 %v3130, %v3122
        %v3267 = vpack.c.b16 %v3131, %v3123
        %v3268 = vpack.c.b16 %v3132, %v3124
        %v3269 = vpack.c.b16 %v3133, %v3125
        %v3270 = vpack.c.b16 %v3134, %v3126
        %v3271 = vpack.c.b16 %v3143, %v3135
        %v3272 = vpack.c.b16 %v3144, %v3136
        %v3273 = vpack.c.b16 %v3145, %v3137
        %v3274 = vpack.c.b16 %v3146, %v3138
        %v3275 = vpack.c.b16 %v3147, %v3139
        %v3276 = vpack.c.b16 %v3148, %v3140
        %v3277 = vpack.c.b16 %v3149, %v3141
        %v3278 = vpack.c.b16 %v3150, %v3142
        %3407 = vmatpush.bf16.msra.mxu0 %v3207
        %3408 = vmatpush.bf16.msra.mxu0 %v3199
        %3409 = vmatpush.bf16.msra.mxu0 %v3191
        %3410 = vmatpush.bf16.msra.mxu0 %v3183
        %3411 = vmatpush.bf16.msra.mxu0 %v3175
        %3412 = vmatpush.bf16.msra.mxu0 %v3167
        %3413 = vmatpush.bf16.msra.mxu0 %v3159
        %3414 = vmatpush.bf16.msra.mxu0 %v3151
        %3415 = vmatmul.bf16.gmra.mxu0 %v2734
        %v3416 = vpop.f32.mrf.mxu0
        %v3417 = vadd.f32 %v2751, %v3416
        %v3418 = vpop.f32.mrf.mxu0
        %v3419 = vadd.f32 %v2751, %v3418
        %3420 = vmatmul.bf16.gmra.mxu0 %v2736
        %v3421 = vpop.f32.mrf.mxu0
        %v3422 = vadd.f32 %v2751, %v3421
        %v3423 = vpop.f32.mrf.mxu0
        %v3424 = vadd.f32 %v2751, %v3423
        %3425 = vmatmul.bf16.gmra.mxu0 %v2738
        %v3426 = vpop.f32.mrf.mxu0
        %v3427 = vadd.f32 %v2751, %v3426
        %v3428 = vpop.f32.mrf.mxu0
        %v3429 = vadd.f32 %v2751, %v3428
        %3430 = vmatmul.bf16.gmra.mxu0 %v2740
        %v3431 = vpop.f32.mrf.mxu0
        %v3432 = vadd.f32 %v2751, %v3431
        %v3433 = vpop.f32.mrf.mxu0
        %v3434 = vadd.f32 %v2751, %v3433
        %3435 = vmatmul.bf16.gmra.mxu0 %v2742
        %v3436 = vpop.f32.mrf.mxu0
        %v3437 = vadd.f32 %v2751, %v3436
        %v3438 = vpop.f32.mrf.mxu0
        %v3439 = vadd.f32 %v2751, %v3438
        %3440 = vmatmul.bf16.gmra.mxu0 %v2744
        %v3441 = vpop.f32.mrf.mxu0
        %v3442 = vadd.f32 %v2751, %v3441
        %v3443 = vpop.f32.mrf.mxu0
        %v3444 = vadd.f32 %v2751, %v3443
        %3445 = vmatmul.bf16.gmra.mxu0 %v2746
        %v3446 = vpop.f32.mrf.mxu0
        %v3447 = vadd.f32 %v2751, %v3446
        %v3448 = vpop.f32.mrf.mxu0
        %v3449 = vadd.f32 %v2751, %v3448
        %3450 = vmatmul.bf16.gmra.mxu0 %v2748
        %v3451 = vpop.f32.mrf.mxu0
        %v3452 = vadd.f32 %v2751, %v3451
        %v3453 = vpop.f32.mrf.mxu0
        %v3454 = vadd.f32 %v2751, %v3453
        %3455 = vdwg.mxu0
        %3456 = vmatpush.bf16.msra.mxu0 %v3271
        %3457 = vmatpush.bf16.msra.mxu0 %v3263
        %3458 = vmatpush.bf16.msra.mxu0 %v3255
        %3459 = vmatpush.bf16.msra.mxu0 %v3247
        %3460 = vmatpush.bf16.msra.mxu0 %v3239
        %3461 = vmatpush.bf16.msra.mxu0 %v3231
        %3462 = vmatpush.bf16.msra.mxu0 %v3223
        %3463 = vmatpush.bf16.msra.mxu0 %v3215
        %3464 = vmatmul.bf16.gmra.mxu0 %v2735
        %v3465 = vpop.f32.mrf.mxu0
        %v3466 = vadd.f32 %v3417, %v3465
        %v3467 = vpop.f32.mrf.mxu0
        %v3468 = vadd.f32 %v3419, %v3467
        %3469 = vmatmul.bf16.gmra.mxu0 %v2737
        %v3470 = vpop.f32.mrf.mxu0
        %v3471 = vadd.f32 %v3422, %v3470
        %v3472 = vpop.f32.mrf.mxu0
        %v3473 = vadd.f32 %v3424, %v3472
        %3474 = vmatmul.bf16.gmra.mxu0 %v2739
        %v3475 = vpop.f32.mrf.mxu0
        %v3476 = vadd.f32 %v3427, %v3475
        %v3477 = vpop.f32.mrf.mxu0
        %v3478 = vadd.f32 %v3429, %v3477
        %3479 = vmatmul.bf16.gmra.mxu0 %v2741
        %v3480 = vpop.f32.mrf.mxu0
        %v3481 = vadd.f32 %v3432, %v3480
        %v3482 = vpop.f32.mrf.mxu0
        %v3483 = vadd.f32 %v3434, %v3482
        %3484 = vmatmul.bf16.gmra.mxu0 %v2743
        %v3485 = vpop.f32.mrf.mxu0
        %v3486 = vadd.f32 %v3437, %v3485
        %v3487 = vpop.f32.mrf.mxu0
        %v3488 = vadd.f32 %v3439, %v3487
        %3489 = vmatmul.bf16.gmra.mxu0 %v2745
        %v3490 = vpop.f32.mrf.mxu0
        %v3491 = vadd.f32 %v3442, %v3490
        %v3492 = vpop.f32.mrf.mxu0
        %v3493 = vadd.f32 %v3444, %v3492
        %3494 = vmatmul.bf16.gmra.mxu0 %v2747
        %v3495 = vpop.f32.mrf.mxu0
        %v3496 = vadd.f32 %v3447, %v3495
        %v3497 = vpop.f32.mrf.mxu0
        %v3498 = vadd.f32 %v3449, %v3497
        %3499 = vmatmul.bf16.gmra.mxu0 %v2749
        %v3500 = vpop.f32.mrf.mxu0
        %v3501 = vadd.f32 %v3452, %v3500
        %v3502 = vpop.f32.mrf.mxu0
        %v3503 = vadd.f32 %v3454, %v3502
        %3504 = vdwg.mxu0
        %3505 = vmatpush.bf16.msra.mxu0 %v3208
        %3506 = vmatpush.bf16.msra.mxu0 %v3200
        %3507 = vmatpush.bf16.msra.mxu0 %v3192
        %3508 = vmatpush.bf16.msra.mxu0 %v3184
        %3509 = vmatpush.bf16.msra.mxu0 %v3176
        %3510 = vmatpush.bf16.msra.mxu0 %v3168
        %3511 = vmatpush.bf16.msra.mxu0 %v3160
        %3512 = vmatpush.bf16.msra.mxu0 %v3152
        %3513 = vmatmul.bf16.gmra.mxu0 %v2734
        %v3514 = vpop.f32.mrf.mxu0
        %v3515 = vadd.f32 %v2752, %v3514
        %v3516 = vpop.f32.mrf.mxu0
        %v3517 = vadd.f32 %v2752, %v3516
        %3518 = vmatmul.bf16.gmra.mxu0 %v2736
        %v3519 = vpop.f32.mrf.mxu0
        %v3520 = vadd.f32 %v2752, %v3519
        %v3521 = vpop.f32.mrf.mxu0
        %v3522 = vadd.f32 %v2752, %v3521
        %3523 = vmatmul.bf16.gmra.mxu0 %v2738
        %v3524 = vpop.f32.mrf.mxu0
        %v3525 = vadd.f32 %v2752, %v3524
        %v3526 = vpop.f32.mrf.mxu0
        %v3527 = vadd.f32 %v2752, %v3526
        %3528 = vmatmul.bf16.gmra.mxu0 %v2740
        %v3529 = vpop.f32.mrf.mxu0
        %v3530 = vadd.f32 %v2752, %v3529
        %v3531 = vpop.f32.mrf.mxu0
        %v3532 = vadd.f32 %v2752, %v3531
        %3533 = vmatmul.bf16.gmra.mxu0 %v2742
        %v3534 = vpop.f32.mrf.mxu0
        %v3535 = vadd.f32 %v2752, %v3534
        %v3536 = vpop.f32.mrf.mxu0
        %v3537 = vadd.f32 %v2752, %v3536
        %3538 = vmatmul.bf16.gmra.mxu0 %v2744
        %v3539 = vpop.f32.mrf.mxu0
        %v3540 = vadd.f32 %v2752, %v3539
        %v3541 = vpop.f32.mrf.mxu0
        %v3542 = vadd.f32 %v2752, %v3541
        %3543 = vmatmul.bf16.gmra.mxu0 %v2746
        %v3544 = vpop.f32.mrf.mxu0
        %v3545 = vadd.f32 %v2752, %v3544
        %v3546 = vpop.f32.mrf.mxu0
        %v3547 = vadd.f32 %v2752, %v3546
        %3548 = vmatmul.bf16.gmra.mxu0 %v2748
        %v3549 = vpop.f32.mrf.mxu0
        %v3550 = vadd.f32 %v2752, %v3549
        %v3551 = vpop.f32.mrf.mxu0
        %v3552 = vadd.f32 %v2752, %v3551
        %3553 = vdwg.mxu0
        %3554 = vmatpush.bf16.msra.mxu0 %v3272
        %3555 = vmatpush.bf16.msra.mxu0 %v3264
        %3556 = vmatpush.bf16.msra.mxu0 %v3256
        %3557 = vmatpush.bf16.msra.mxu0 %v3248
        %3558 = vmatpush.bf16.msra.mxu0 %v3240
        %3559 = vmatpush.bf16.msra.mxu0 %v3232
        %3560 = vmatpush.bf16.msra.mxu0 %v3224
        %3561 = vmatpush.bf16.msra.mxu0 %v3216
        %3562 = vmatmul.bf16.gmra.mxu0 %v2735
        %v3563 = vpop.f32.mrf.mxu0
        %v3564 = vadd.f32 %v3515, %v3563
        %v3565 = vpop.f32.mrf.mxu0
        %v3566 = vadd.f32 %v3517, %v3565
        %3567 = vmatmul.bf16.gmra.mxu0 %v2737
        %v3568 = vpop.f32.mrf.mxu0
        %v3569 = vadd.f32 %v3520, %v3568
        %v3570 = vpop.f32.mrf.mxu0
        %v3571 = vadd.f32 %v3522, %v3570
        %3572 = vmatmul.bf16.gmra.mxu0 %v2739
        %v3573 = vpop.f32.mrf.mxu0
        %v3574 = vadd.f32 %v3525, %v3573
        %v3575 = vpop.f32.mrf.mxu0
        %v3576 = vadd.f32 %v3527, %v3575
        %3577 = vmatmul.bf16.gmra.mxu0 %v2741
        %v3578 = vpop.f32.mrf.mxu0
        %v3579 = vadd.f32 %v3530, %v3578
        %v3580 = vpop.f32.mrf.mxu0
        %v3581 = vadd.f32 %v3532, %v3580
        %3582 = vmatmul.bf16.gmra.mxu0 %v2743
        %v3583 = vpop.f32.mrf.mxu0
        %v3584 = vadd.f32 %v3535, %v3583
        %v3585 = vpop.f32.mrf.mxu0
        %v3586 = vadd.f32 %v3537, %v3585
        %3587 = vmatmul.bf16.gmra.mxu0 %v2745
        %v3588 = vpop.f32.mrf.mxu0
        %v3589 = vadd.f32 %v3540, %v3588
        %v3590 = vpop.f32.mrf.mxu0
        %v3591 = vadd.f32 %v3542, %v3590
        %3592 = vmatmul.bf16.gmra.mxu0 %v2747
        %v3593 = vpop.f32.mrf.mxu0
        %v3594 = vadd.f32 %v3545, %v3593
        %v3595 = vpop.f32.mrf.mxu0
        %v3596 = vadd.f32 %v3547, %v3595
        %3597 = vmatmul.bf16.gmra.mxu0 %v2749
        %v3598 = vpop.f32.mrf.mxu0
        %v3599 = vadd.f32 %v3550, %v3598
        %v3600 = vpop.f32.mrf.mxu0
        %v3601 = vadd.f32 %v3552, %v3600
        %3602 = vdwg.mxu0
        %3603 = vmatpush.bf16.msra.mxu0 %v3209
        %3604 = vmatpush.bf16.msra.mxu0 %v3201
        %3605 = vmatpush.bf16.msra.mxu0 %v3193
        %3606 = vmatpush.bf16.msra.mxu0 %v3185
        %3607 = vmatpush.bf16.msra.mxu0 %v3177
        %3608 = vmatpush.bf16.msra.mxu0 %v3169
        %3609 = vmatpush.bf16.msra.mxu0 %v3161
        %3610 = vmatpush.bf16.msra.mxu0 %v3153
        %3611 = vmatmul.bf16.gmra.mxu0 %v2734
        %v3612 = vpop.f32.mrf.mxu0
        %v3613 = vadd.f32 %v2753, %v3612
        %v3614 = vpop.f32.mrf.mxu0
        %v3615 = vadd.f32 %v2753, %v3614
        %3616 = vmatmul.bf16.gmra.mxu0 %v2736
        %v3617 = vpop.f32.mrf.mxu0
        %v3618 = vadd.f32 %v2753, %v3617
        %v3619 = vpop.f32.mrf.mxu0
        %v3620 = vadd.f32 %v2753, %v3619
        %3621 = vmatmul.bf16.gmra.mxu0 %v2738
        %v3622 = vpop.f32.mrf.mxu0
        %v3623 = vadd.f32 %v2753, %v3622
        %v3624 = vpop.f32.mrf.mxu0
        %v3625 = vadd.f32 %v2753, %v3624
        %3626 = vmatmul.bf16.gmra.mxu0 %v2740
        %v3627 = vpop.f32.mrf.mxu0
        %v3628 = vadd.f32 %v2753, %v3627
        %v3629 = vpop.f32.mrf.mxu0
        %v3630 = vadd.f32 %v2753, %v3629
        %3631 = vmatmul.bf16.gmra.mxu0 %v2742
        %v3632 = vpop.f32.mrf.mxu0
        %v3633 = vadd.f32 %v2753, %v3632
        %v3634 = vpop.f32.mrf.mxu0
        %v3635 = vadd.f32 %v2753, %v3634
        %3636 = vmatmul.bf16.gmra.mxu0 %v2744
        %v3637 = vpop.f32.mrf.mxu0
        %v3638 = vadd.f32 %v2753, %v3637
        %v3639 = vpop.f32.mrf.mxu0
        %v3640 = vadd.f32 %v2753, %v3639
        %3641 = vmatmul.bf16.gmra.mxu0 %v2746
        %v3642 = vpop.f32.mrf.mxu0
        %v3643 = vadd.f32 %v2753, %v3642
        %v3644 = vpop.f32.mrf.mxu0
        %v3645 = vadd.f32 %v2753, %v3644
        %3646 = vmatmul.bf16.gmra.mxu0 %v2748
        %v3647 = vpop.f32.mrf.mxu0
        %v3648 = vadd.f32 %v2753, %v3647
        %v3649 = vpop.f32.mrf.mxu0
        %v3650 = vadd.f32 %v2753, %v3649
        %3651 = vdwg.mxu0
        %3652 = vmatpush.bf16.msra.mxu0 %v3273
        %3653 = vmatpush.bf16.msra.mxu0 %v3265
        %3654 = vmatpush.bf16.msra.mxu0 %v3257
        %3655 = vmatpush.bf16.msra.mxu0 %v3249
        %3656 = vmatpush.bf16.msra.mxu0 %v3241
        %3657 = vmatpush.bf16.msra.mxu0 %v3233
        %3658 = vmatpush.bf16.msra.mxu0 %v3225
        %3659 = vmatpush.bf16.msra.mxu0 %v3217
        %3660 = vmatmul.bf16.gmra.mxu0 %v2735
        %v3661 = vpop.f32.mrf.mxu0
        %v3662 = vadd.f32 %v3613, %v3661
        %v3663 = vpop.f32.mrf.mxu0
        %v3664 = vadd.f32 %v3615, %v3663
        %3665 = vmatmul.bf16.gmra.mxu0 %v2737
        %v3666 = vpop.f32.mrf.mxu0
        %v3667 = vadd.f32 %v3618, %v3666
        %v3668 = vpop.f32.mrf.mxu0
        %v3669 = vadd.f32 %v3620, %v3668
        %3670 = vmatmul.bf16.gmra.mxu0 %v2739
        %v3671 = vpop.f32.mrf.mxu0
        %v3672 = vadd.f32 %v3623, %v3671
        %v3673 = vpop.f32.mrf.mxu0
        %v3674 = vadd.f32 %v3625, %v3673
        %3675 = vmatmul.bf16.gmra.mxu0 %v2741
        %v3676 = vpop.f32.mrf.mxu0
        %v3677 = vadd.f32 %v3628, %v3676
        %v3678 = vpop.f32.mrf.mxu0
        %v3679 = vadd.f32 %v3630, %v3678
        %3680 = vmatmul.bf16.gmra.mxu0 %v2743
        %v3681 = vpop.f32.mrf.mxu0
        %v3682 = vadd.f32 %v3633, %v3681
        %v3683 = vpop.f32.mrf.mxu0
        %v3684 = vadd.f32 %v3635, %v3683
        %3685 = vmatmul.bf16.gmra.mxu0 %v2745
        %v3686 = vpop.f32.mrf.mxu0
        %v3687 = vadd.f32 %v3638, %v3686
        %v3688 = vpop.f32.mrf.mxu0
        %v3689 = vadd.f32 %v3640, %v3688
        %3690 = vmatmul.bf16.gmra.mxu0 %v2747
        %v3691 = vpop.f32.mrf.mxu0
        %v3692 = vadd.f32 %v3643, %v3691
        %v3693 = vpop.f32.mrf.mxu0
        %v3694 = vadd.f32 %v3645, %v3693
        %3695 = vmatmul.bf16.gmra.mxu0 %v2749
        %v3696 = vpop.f32.mrf.mxu0
        %v3697 = vadd.f32 %v3648, %v3696
        %v3698 = vpop.f32.mrf.mxu0
        %v3699 = vadd.f32 %v3650, %v3698
        %3700 = vdwg.mxu0
        %3701 = vmatpush.bf16.msra.mxu0 %v3210
        %3702 = vmatpush.bf16.msra.mxu0 %v3202
        %3703 = vmatpush.bf16.msra.mxu0 %v3194
        %3704 = vmatpush.bf16.msra.mxu0 %v3186
        %3705 = vmatpush.bf16.msra.mxu0 %v3178
        %3706 = vmatpush.bf16.msra.mxu0 %v3170
        %3707 = vmatpush.bf16.msra.mxu0 %v3162
        %3708 = vmatpush.bf16.msra.mxu0 %v3154
        %3709 = vmatmul.bf16.gmra.mxu0 %v2734
        %v3710 = vpop.f32.mrf.mxu0
        %v3711 = vadd.f32 %v2754, %v3710
        %v3712 = vpop.f32.mrf.mxu0
        %v3713 = vadd.f32 %v2754, %v3712
        %3714 = vmatmul.bf16.gmra.mxu0 %v2736
        %v3715 = vpop.f32.mrf.mxu0
        %v3716 = vadd.f32 %v2754, %v3715
        %v3717 = vpop.f32.mrf.mxu0
        %v3718 = vadd.f32 %v2754, %v3717
        %3719 = vmatmul.bf16.gmra.mxu0 %v2738
        %v3720 = vpop.f32.mrf.mxu0
        %v3721 = vadd.f32 %v2754, %v3720
        %v3722 = vpop.f32.mrf.mxu0
        %v3723 = vadd.f32 %v2754, %v3722
        %3724 = vmatmul.bf16.gmra.mxu0 %v2740
        %v3725 = vpop.f32.mrf.mxu0
        %v3726 = vadd.f32 %v2754, %v3725
        %v3727 = vpop.f32.mrf.mxu0
        %v3728 = vadd.f32 %v2754, %v3727
        %3729 = vmatmul.bf16.gmra.mxu0 %v2742
        %v3730 = vpop.f32.mrf.mxu0
        %v3731 = vadd.f32 %v2754, %v3730
        %v3732 = vpop.f32.mrf.mxu0
        %v3733 = vadd.f32 %v2754, %v3732
        %3734 = vmatmul.bf16.gmra.mxu0 %v2744
        %v3735 = vpop.f32.mrf.mxu0
        %v3736 = vadd.f32 %v2754, %v3735
        %v3737 = vpop.f32.mrf.mxu0
        %v3738 = vadd.f32 %v2754, %v3737
        %3739 = vmatmul.bf16.gmra.mxu0 %v2746
        %v3740 = vpop.f32.mrf.mxu0
        %v3741 = vadd.f32 %v2754, %v3740
        %v3742 = vpop.f32.mrf.mxu0
        %v3743 = vadd.f32 %v2754, %v3742
        %3744 = vmatmul.bf16.gmra.mxu0 %v2748
        %v3745 = vpop.f32.mrf.mxu0
        %v3746 = vadd.f32 %v2754, %v3745
        %v3747 = vpop.f32.mrf.mxu0
        %v3748 = vadd.f32 %v2754, %v3747
        %3749 = vdwg.mxu0
        %3750 = vmatpush.bf16.msra.mxu0 %v3274
        %3751 = vmatpush.bf16.msra.mxu0 %v3266
        %3752 = vmatpush.bf16.msra.mxu0 %v3258
        %3753 = vmatpush.bf16.msra.mxu0 %v3250
        %3754 = vmatpush.bf16.msra.mxu0 %v3242
        %3755 = vmatpush.bf16.msra.mxu0 %v3234
        %3756 = vmatpush.bf16.msra.mxu0 %v3226
        %3757 = vmatpush.bf16.msra.mxu0 %v3218
        %3758 = vmatmul.bf16.gmra.mxu0 %v2735
        %v3759 = vpop.f32.mrf.mxu0
        %v3760 = vadd.f32 %v3711, %v3759
        %v3761 = vpop.f32.mrf.mxu0
        %v3762 = vadd.f32 %v3713, %v3761
        %3763 = vmatmul.bf16.gmra.mxu0 %v2737
        %v3764 = vpop.f32.mrf.mxu0
        %v3765 = vadd.f32 %v3716, %v3764
        %v3766 = vpop.f32.mrf.mxu0
        %v3767 = vadd.f32 %v3718, %v3766
        %3768 = vmatmul.bf16.gmra.mxu0 %v2739
        %v3769 = vpop.f32.mrf.mxu0
        %v3770 = vadd.f32 %v3721, %v3769
        %v3771 = vpop.f32.mrf.mxu0
        %v3772 = vadd.f32 %v3723, %v3771
        %3773 = vmatmul.bf16.gmra.mxu0 %v2741
        %v3774 = vpop.f32.mrf.mxu0
        %v3775 = vadd.f32 %v3726, %v3774
        %v3776 = vpop.f32.mrf.mxu0
        %v3777 = vadd.f32 %v3728, %v3776
        %3778 = vmatmul.bf16.gmra.mxu0 %v2743
        %v3779 = vpop.f32.mrf.mxu0
        %v3780 = vadd.f32 %v3731, %v3779
        %v3781 = vpop.f32.mrf.mxu0
        %v3782 = vadd.f32 %v3733, %v3781
        %3783 = vmatmul.bf16.gmra.mxu0 %v2745
        %v3784 = vpop.f32.mrf.mxu0
        %v3785 = vadd.f32 %v3736, %v3784
        %v3786 = vpop.f32.mrf.mxu0
        %v3787 = vadd.f32 %v3738, %v3786
        %3788 = vmatmul.bf16.gmra.mxu0 %v2747
        %v3789 = vpop.f32.mrf.mxu0
        %v3790 = vadd.f32 %v3741, %v3789
        %v3791 = vpop.f32.mrf.mxu0
        %v3792 = vadd.f32 %v3743, %v3791
        %3793 = vmatmul.bf16.gmra.mxu0 %v2749
        %v3794 = vpop.f32.mrf.mxu0
        %v3795 = vadd.f32 %v3746, %v3794
        %v3796 = vpop.f32.mrf.mxu0
        %v3797 = vadd.f32 %v3748, %v3796
        %3798 = vdwg.mxu0
        %3799 = vmatpush.bf16.msra.mxu0 %v3211
        %3800 = vmatpush.bf16.msra.mxu0 %v3203
        %3801 = vmatpush.bf16.msra.mxu0 %v3195
        %3802 = vmatpush.bf16.msra.mxu0 %v3187
        %3803 = vmatpush.bf16.msra.mxu0 %v3179
        %3804 = vmatpush.bf16.msra.mxu0 %v3171
        %3805 = vmatpush.bf16.msra.mxu0 %v3163
        %3806 = vmatpush.bf16.msra.mxu0 %v3155
        %3807 = vmatmul.bf16.gmra.mxu0 %v2734
        %v3808 = vpop.f32.mrf.mxu0
        %v3809 = vadd.f32 %v2755, %v3808
        %v3810 = vpop.f32.mrf.mxu0
        %v3811 = vadd.f32 %v2755, %v3810
        %3812 = vmatmul.bf16.gmra.mxu0 %v2736
        %v3813 = vpop.f32.mrf.mxu0
        %v3814 = vadd.f32 %v2755, %v3813
        %v3815 = vpop.f32.mrf.mxu0
        %v3816 = vadd.f32 %v2755, %v3815
        %3817 = vmatmul.bf16.gmra.mxu0 %v2738
        %v3818 = vpop.f32.mrf.mxu0
        %v3819 = vadd.f32 %v2755, %v3818
        %v3820 = vpop.f32.mrf.mxu0
        %v3821 = vadd.f32 %v2755, %v3820
        %3822 = vmatmul.bf16.gmra.mxu0 %v2740
        %v3823 = vpop.f32.mrf.mxu0
        %v3824 = vadd.f32 %v2755, %v3823
        %v3825 = vpop.f32.mrf.mxu0
        %v3826 = vadd.f32 %v2755, %v3825
        %3827 = vmatmul.bf16.gmra.mxu0 %v2742
        %v3828 = vpop.f32.mrf.mxu0
        %v3829 = vadd.f32 %v2755, %v3828
        %v3830 = vpop.f32.mrf.mxu0
        %v3831 = vadd.f32 %v2755, %v3830
        %3832 = vmatmul.bf16.gmra.mxu0 %v2744
        %v3833 = vpop.f32.mrf.mxu0
        %v3834 = vadd.f32 %v2755, %v3833
        %v3835 = vpop.f32.mrf.mxu0
        %v3836 = vadd.f32 %v2755, %v3835
        %3837 = vmatmul.bf16.gmra.mxu0 %v2746
        %v3838 = vpop.f32.mrf.mxu0
        %v3839 = vadd.f32 %v2755, %v3838
        %v3840 = vpop.f32.mrf.mxu0
        %v3841 = vadd.f32 %v2755, %v3840
        %3842 = vmatmul.bf16.gmra.mxu0 %v2748
        %v3843 = vpop.f32.mrf.mxu0
        %v3844 = vadd.f32 %v2755, %v3843
        %v3845 = vpop.f32.mrf.mxu0
        %v3846 = vadd.f32 %v2755, %v3845
        %3847 = vdwg.mxu0
        %3848 = vmatpush.bf16.msra.mxu0 %v3275
        %3849 = vmatpush.bf16.msra.mxu0 %v3267
        %3850 = vmatpush.bf16.msra.mxu0 %v3259
        %3851 = vmatpush.bf16.msra.mxu0 %v3251
        %3852 = vmatpush.bf16.msra.mxu0 %v3243
        %3853 = vmatpush.bf16.msra.mxu0 %v3235
        %3854 = vmatpush.bf16.msra.mxu0 %v3227
        %3855 = vmatpush.bf16.msra.mxu0 %v3219
        %3856 = vmatmul.bf16.gmra.mxu0 %v2735
        %v3857 = vpop.f32.mrf.mxu0
        %v3858 = vadd.f32 %v3809, %v3857
        %v3859 = vpop.f32.mrf.mxu0
        %v3860 = vadd.f32 %v3811, %v3859
        %3861 = vmatmul.bf16.gmra.mxu0 %v2737
        %v3862 = vpop.f32.mrf.mxu0
        %v3863 = vadd.f32 %v3814, %v3862
        %v3864 = vpop.f32.mrf.mxu0
        %v3865 = vadd.f32 %v3816, %v3864
        %3866 = vmatmul.bf16.gmra.mxu0 %v2739
        %v3867 = vpop.f32.mrf.mxu0
        %v3868 = vadd.f32 %v3819, %v3867
        %v3869 = vpop.f32.mrf.mxu0
        %v3870 = vadd.f32 %v3821, %v3869
        %3871 = vmatmul.bf16.gmra.mxu0 %v2741
        %v3872 = vpop.f32.mrf.mxu0
        %v3873 = vadd.f32 %v3824, %v3872
        %v3874 = vpop.f32.mrf.mxu0
        %v3875 = vadd.f32 %v3826, %v3874
        %3876 = vmatmul.bf16.gmra.mxu0 %v2743
        %v3877 = vpop.f32.mrf.mxu0
        %v3878 = vadd.f32 %v3829, %v3877
        %v3879 = vpop.f32.mrf.mxu0
        %v3880 = vadd.f32 %v3831, %v3879
        %3881 = vmatmul.bf16.gmra.mxu0 %v2745
        %v3882 = vpop.f32.mrf.mxu0
        %v3883 = vadd.f32 %v3834, %v3882
        %v3884 = vpop.f32.mrf.mxu0
        %v3885 = vadd.f32 %v3836, %v3884
        %3886 = vmatmul.bf16.gmra.mxu0 %v2747
        %v3887 = vpop.f32.mrf.mxu0
        %v3888 = vadd.f32 %v3839, %v3887
        %v3889 = vpop.f32.mrf.mxu0
        %v3890 = vadd.f32 %v3841, %v3889
        %3891 = vmatmul.bf16.gmra.mxu0 %v2749
        %v3892 = vpop.f32.mrf.mxu0
        %v3893 = vadd.f32 %v3844, %v3892
        %v3894 = vpop.f32.mrf.mxu0
        %v3895 = vadd.f32 %v3846, %v3894
        %3896 = vdwg.mxu0
        %3897 = vmatpush.bf16.msra.mxu0 %v3212
        %3898 = vmatpush.bf16.msra.mxu0 %v3204
        %3899 = vmatpush.bf16.msra.mxu0 %v3196
        %3900 = vmatpush.bf16.msra.mxu0 %v3188
        %3901 = vmatpush.bf16.msra.mxu0 %v3180
        %3902 = vmatpush.bf16.msra.mxu0 %v3172
        %3903 = vmatpush.bf16.msra.mxu0 %v3164
        %3904 = vmatpush.bf16.msra.mxu0 %v3156
        %3905 = vmatmul.bf16.gmra.mxu0 %v2734
        %v3906 = vpop.f32.mrf.mxu0
        %v3907 = vadd.f32 %v2756, %v3906
        %v3908 = vpop.f32.mrf.mxu0
        %v3909 = vadd.f32 %v2756, %v3908
        %3910 = vmatmul.bf16.gmra.mxu0 %v2736
        %v3911 = vpop.f32.mrf.mxu0
        %v3912 = vadd.f32 %v2756, %v3911
        %v3913 = vpop.f32.mrf.mxu0
        %v3914 = vadd.f32 %v2756, %v3913
        %3915 = vmatmul.bf16.gmra.mxu0 %v2738
        %v3916 = vpop.f32.mrf.mxu0
        %v3917 = vadd.f32 %v2756, %v3916
        %v3918 = vpop.f32.mrf.mxu0
        %v3919 = vadd.f32 %v2756, %v3918
        %3920 = vmatmul.bf16.gmra.mxu0 %v2740
        %v3921 = vpop.f32.mrf.mxu0
        %v3922 = vadd.f32 %v2756, %v3921
        %v3923 = vpop.f32.mrf.mxu0
        %v3924 = vadd.f32 %v2756, %v3923
        %3925 = vmatmul.bf16.gmra.mxu0 %v2742
        %v3926 = vpop.f32.mrf.mxu0
        %v3927 = vadd.f32 %v2756, %v3926
        %v3928 = vpop.f32.mrf.mxu0
        %v3929 = vadd.f32 %v2756, %v3928
        %3930 = vmatmul.bf16.gmra.mxu0 %v2744
        %v3931 = vpop.f32.mrf.mxu0
        %v3932 = vadd.f32 %v2756, %v3931
        %v3933 = vpop.f32.mrf.mxu0
        %v3934 = vadd.f32 %v2756, %v3933
        %3935 = vmatmul.bf16.gmra.mxu0 %v2746
        %v3936 = vpop.f32.mrf.mxu0
        %v3937 = vadd.f32 %v2756, %v3936
        %v3938 = vpop.f32.mrf.mxu0
        %v3939 = vadd.f32 %v2756, %v3938
        %3940 = vmatmul.bf16.gmra.mxu0 %v2748
        %v3941 = vpop.f32.mrf.mxu0
        %v3942 = vadd.f32 %v2756, %v3941
        %v3943 = vpop.f32.mrf.mxu0
        %v3944 = vadd.f32 %v2756, %v3943
        %3945 = vdwg.mxu0
        %3946 = vmatpush.bf16.msra.mxu0 %v3276
        %3947 = vmatpush.bf16.msra.mxu0 %v3268
        %3948 = vmatpush.bf16.msra.mxu0 %v3260
        %3949 = vmatpush.bf16.msra.mxu0 %v3252
        %3950 = vmatpush.bf16.msra.mxu0 %v3244
        %3951 = vmatpush.bf16.msra.mxu0 %v3236
        %3952 = vmatpush.bf16.msra.mxu0 %v3228
        %3953 = vmatpush.bf16.msra.mxu0 %v3220
        %3954 = vmatmul.bf16.gmra.mxu0 %v2735
        %v3955 = vpop.f32.mrf.mxu0
        %v3956 = vadd.f32 %v3907, %v3955
        %v3957 = vpop.f32.mrf.mxu0
        %v3958 = vadd.f32 %v3909, %v3957
        %3959 = vmatmul.bf16.gmra.mxu0 %v2737
        %v3960 = vpop.f32.mrf.mxu0
        %v3961 = vadd.f32 %v3912, %v3960
        %v3962 = vpop.f32.mrf.mxu0
        %v3963 = vadd.f32 %v3914, %v3962
        %3964 = vmatmul.bf16.gmra.mxu0 %v2739
        %v3965 = vpop.f32.mrf.mxu0
        %v3966 = vadd.f32 %v3917, %v3965
        %v3967 = vpop.f32.mrf.mxu0
        %v3968 = vadd.f32 %v3919, %v3967
        %3969 = vmatmul.bf16.gmra.mxu0 %v2741
        %v3970 = vpop.f32.mrf.mxu0
        %v3971 = vadd.f32 %v3922, %v3970
        %v3972 = vpop.f32.mrf.mxu0
        %v3973 = vadd.f32 %v3924, %v3972
        %3974 = vmatmul.bf16.gmra.mxu0 %v2743
        %v3975 = vpop.f32.mrf.mxu0
        %v3976 = vadd.f32 %v3927, %v3975
        %v3977 = vpop.f32.mrf.mxu0
        %v3978 = vadd.f32 %v3929, %v3977
        %3979 = vmatmul.bf16.gmra.mxu0 %v2745
        %v3980 = vpop.f32.mrf.mxu0
        %v3981 = vadd.f32 %v3932, %v3980
        %v3982 = vpop.f32.mrf.mxu0
        %v3983 = vadd.f32 %v3934, %v3982
        %3984 = vmatmul.bf16.gmra.mxu0 %v2747
        %v3985 = vpop.f32.mrf.mxu0
        %v3986 = vadd.f32 %v3937, %v3985
        %v3987 = vpop.f32.mrf.mxu0
        %v3988 = vadd.f32 %v3939, %v3987
        %3989 = vmatmul.bf16.gmra.mxu0 %v2749
        %v3990 = vpop.f32.mrf.mxu0
        %v3991 = vadd.f32 %v3942, %v3990
        %v3992 = vpop.f32.mrf.mxu0
        %v3993 = vadd.f32 %v3944, %v3992
        %3994 = vdwg.mxu0
        %3995 = vmatpush.bf16.msra.mxu0 %v3213
        %3996 = vmatpush.bf16.msra.mxu0 %v3205
        %3997 = vmatpush.bf16.msra.mxu0 %v3197
        %3998 = vmatpush.bf16.msra.mxu0 %v3189
        %3999 = vmatpush.bf16.msra.mxu0 %v3181
        %4000 = vmatpush.bf16.msra.mxu0 %v3173
        %4001 = vmatpush.bf16.msra.mxu0 %v3165
        %4002 = vmatpush.bf16.msra.mxu0 %v3157
        %4003 = vmatmul.bf16.gmra.mxu0 %v2734
        %v4004 = vpop.f32.mrf.mxu0
        %v4005 = vadd.f32 %v2757, %v4004
        %v4006 = vpop.f32.mrf.mxu0
        %v4007 = vadd.f32 %v2757, %v4006
        %4008 = vmatmul.bf16.gmra.mxu0 %v2736
        %v4009 = vpop.f32.mrf.mxu0
        %v4010 = vadd.f32 %v2757, %v4009
        %v4011 = vpop.f32.mrf.mxu0
        %v4012 = vadd.f32 %v2757, %v4011
        %4013 = vmatmul.bf16.gmra.mxu0 %v2738
        %v4014 = vpop.f32.mrf.mxu0
        %v4015 = vadd.f32 %v2757, %v4014
        %v4016 = vpop.f32.mrf.mxu0
        %v4017 = vadd.f32 %v2757, %v4016
        %4018 = vmatmul.bf16.gmra.mxu0 %v2740
        %v4019 = vpop.f32.mrf.mxu0
        %v4020 = vadd.f32 %v2757, %v4019
        %v4021 = vpop.f32.mrf.mxu0
        %v4022 = vadd.f32 %v2757, %v4021
        %4023 = vmatmul.bf16.gmra.mxu0 %v2742
        %v4024 = vpop.f32.mrf.mxu0
        %v4025 = vadd.f32 %v2757, %v4024
        %v4026 = vpop.f32.mrf.mxu0
        %v4027 = vadd.f32 %v2757, %v4026
        %4028 = vmatmul.bf16.gmra.mxu0 %v2744
        %v4029 = vpop.f32.mrf.mxu0
        %v4030 = vadd.f32 %v2757, %v4029
        %v4031 = vpop.f32.mrf.mxu0
        %v4032 = vadd.f32 %v2757, %v4031
        %4033 = vmatmul.bf16.gmra.mxu0 %v2746
        %v4034 = vpop.f32.mrf.mxu0
        %v4035 = vadd.f32 %v2757, %v4034
        %v4036 = vpop.f32.mrf.mxu0
        %v4037 = vadd.f32 %v2757, %v4036
        %4038 = vmatmul.bf16.gmra.mxu0 %v2748
        %v4039 = vpop.f32.mrf.mxu0
        %v4040 = vadd.f32 %v2757, %v4039
        %v4041 = vpop.f32.mrf.mxu0
        %v4042 = vadd.f32 %v2757, %v4041
        %4043 = vdwg.mxu0
        %4044 = vmatpush.bf16.msra.mxu0 %v3277
        %4045 = vmatpush.bf16.msra.mxu0 %v3269
        %4046 = vmatpush.bf16.msra.mxu0 %v3261
        %4047 = vmatpush.bf16.msra.mxu0 %v3253
        %4048 = vmatpush.bf16.msra.mxu0 %v3245
        %4049 = vmatpush.bf16.msra.mxu0 %v3237
        %4050 = vmatpush.bf16.msra.mxu0 %v3229
        %4051 = vmatpush.bf16.msra.mxu0 %v3221
        %4052 = vmatmul.bf16.gmra.mxu0 %v2735
        %v4053 = vpop.f32.mrf.mxu0
        %v4054 = vadd.f32 %v4005, %v4053
        %v4055 = vpop.f32.mrf.mxu0
        %v4056 = vadd.f32 %v4007, %v4055
        %4057 = vmatmul.bf16.gmra.mxu0 %v2737
        %v4058 = vpop.f32.mrf.mxu0
        %v4059 = vadd.f32 %v4010, %v4058
        %v4060 = vpop.f32.mrf.mxu0
        %v4061 = vadd.f32 %v4012, %v4060
        %4062 = vmatmul.bf16.gmra.mxu0 %v2739
        %v4063 = vpop.f32.mrf.mxu0
        %v4064 = vadd.f32 %v4015, %v4063
        %v4065 = vpop.f32.mrf.mxu0
        %v4066 = vadd.f32 %v4017, %v4065
        %4067 = vmatmul.bf16.gmra.mxu0 %v2741
        %v4068 = vpop.f32.mrf.mxu0
        %v4069 = vadd.f32 %v4020, %v4068
        %v4070 = vpop.f32.mrf.mxu0
        %v4071 = vadd.f32 %v4022, %v4070
        %4072 = vmatmul.bf16.gmra.mxu0 %v2743
        %v4073 = vpop.f32.mrf.mxu0
        %v4074 = vadd.f32 %v4025, %v4073
        %v4075 = vpop.f32.mrf.mxu0
        %v4076 = vadd.f32 %v4027, %v4075
        %4077 = vmatmul.bf16.gmra.mxu0 %v2745
        %v4078 = vpop.f32.mrf.mxu0
        %v4079 = vadd.f32 %v4030, %v4078
        %v4080 = vpop.f32.mrf.mxu0
        %v4081 = vadd.f32 %v4032, %v4080
        %4082 = vmatmul.bf16.gmra.mxu0 %v2747
        %v4083 = vpop.f32.mrf.mxu0
        %v4084 = vadd.f32 %v4035, %v4083
        %v4085 = vpop.f32.mrf.mxu0
        %v4086 = vadd.f32 %v4037, %v4085
        %4087 = vmatmul.bf16.gmra.mxu0 %v2749
        %v4088 = vpop.f32.mrf.mxu0
        %v4089 = vadd.f32 %v4040, %v4088
        %v4090 = vpop.f32.mrf.mxu0
        %v4091 = vadd.f32 %v4042, %v4090
        %4092 = vdwg.mxu0
        %4093 = vmatpush.bf16.msra.mxu0 %v3214
        %4094 = vmatpush.bf16.msra.mxu0 %v3206
        %4095 = vmatpush.bf16.msra.mxu0 %v3198
        %4096 = vmatpush.bf16.msra.mxu0 %v3190
        %4097 = vmatpush.bf16.msra.mxu0 %v3182
        %4098 = vmatpush.bf16.msra.mxu0 %v3174
        %4099 = vmatpush.bf16.msra.mxu0 %v3166
        %4100 = vmatpush.bf16.msra.mxu0 %v3158
        %4101 = vmatmul.bf16.gmra.mxu0 %v2734
        %v4102 = vpop.f32.mrf.mxu0
        %v4103 = vadd.f32 %v2758, %v4102
        %v4104 = vpop.f32.mrf.mxu0
        %v4105 = vadd.f32 %v2758, %v4104
        %4106 = vmatmul.bf16.gmra.mxu0 %v2736
        %v4107 = vpop.f32.mrf.mxu0
        %v4108 = vadd.f32 %v2758, %v4107
        %v4109 = vpop.f32.mrf.mxu0
        %v4110 = vadd.f32 %v2758, %v4109
        %4111 = vmatmul.bf16.gmra.mxu0 %v2738
        %v4112 = vpop.f32.mrf.mxu0
        %v4113 = vadd.f32 %v2758, %v4112
        %v4114 = vpop.f32.mrf.mxu0
        %v4115 = vadd.f32 %v2758, %v4114
        %4116 = vmatmul.bf16.gmra.mxu0 %v2740
        %v4117 = vpop.f32.mrf.mxu0
        %v4118 = vadd.f32 %v2758, %v4117
        %v4119 = vpop.f32.mrf.mxu0
        %v4120 = vadd.f32 %v2758, %v4119
        %4121 = vmatmul.bf16.gmra.mxu0 %v2742
        %v4122 = vpop.f32.mrf.mxu0
        %v4123 = vadd.f32 %v2758, %v4122
        %v4124 = vpop.f32.mrf.mxu0
        %v4125 = vadd.f32 %v2758, %v4124
        %4126 = vmatmul.bf16.gmra.mxu0 %v2744
        %v4127 = vpop.f32.mrf.mxu0
        %v4128 = vadd.f32 %v2758, %v4127
        %v4129 = vpop.f32.mrf.mxu0
        %v4130 = vadd.f32 %v2758, %v4129
        %4131 = vmatmul.bf16.gmra.mxu0 %v2746
        %v4132 = vpop.f32.mrf.mxu0
        %v4133 = vadd.f32 %v2758, %v4132
        %v4134 = vpop.f32.mrf.mxu0
        %v4135 = vadd.f32 %v2758, %v4134
        %4136 = vmatmul.bf16.gmra.mxu0 %v2748
        %v4137 = vpop.f32.mrf.mxu0
        %v4138 = vadd.f32 %v2758, %v4137
        %v4139 = vpop.f32.mrf.mxu0
        %v4140 = vadd.f32 %v2758, %v4139
        %4141 = vdwg.mxu0
        %4142 = vmatpush.bf16.msra.mxu0 %v3278
        %4143 = vmatpush.bf16.msra.mxu0 %v3270
        %4144 = vmatpush.bf16.msra.mxu0 %v3262
        %4145 = vmatpush.bf16.msra.mxu0 %v3254
        %4146 = vmatpush.bf16.msra.mxu0 %v3246
        %4147 = vmatpush.bf16.msra.mxu0 %v3238
        %4148 = vmatpush.bf16.msra.mxu0 %v3230
        %4149 = vmatpush.bf16.msra.mxu0 %v3222
        %4150 = vmatmul.bf16.gmra.mxu0 %v2735
        %v4151 = vpop.f32.mrf.mxu0
        %v4152 = vadd.f32 %v4103, %v4151
        %v4153 = vpop.f32.mrf.mxu0
        %v4154 = vadd.f32 %v4105, %v4153
        %4155 = vmatmul.bf16.gmra.mxu0 %v2737
        %v4156 = vpop.f32.mrf.mxu0
        %v4157 = vadd.f32 %v4108, %v4156
        %v4158 = vpop.f32.mrf.mxu0
        %v4159 = vadd.f32 %v4110, %v4158
        %4160 = vmatmul.bf16.gmra.mxu0 %v2739
        %v4161 = vpop.f32.mrf.mxu0
        %v4162 = vadd.f32 %v4113, %v4161
        %v4163 = vpop.f32.mrf.mxu0
        %v4164 = vadd.f32 %v4115, %v4163
        %4165 = vmatmul.bf16.gmra.mxu0 %v2741
        %v4166 = vpop.f32.mrf.mxu0
        %v4167 = vadd.f32 %v4118, %v4166
        %v4168 = vpop.f32.mrf.mxu0
        %v4169 = vadd.f32 %v4120, %v4168
        %4170 = vmatmul.bf16.gmra.mxu0 %v2743
        %v4171 = vpop.f32.mrf.mxu0
        %v4172 = vadd.f32 %v4123, %v4171
        %v4173 = vpop.f32.mrf.mxu0
        %v4174 = vadd.f32 %v4125, %v4173
        %4175 = vmatmul.bf16.gmra.mxu0 %v2745
        %v4176 = vpop.f32.mrf.mxu0
        %v4177 = vadd.f32 %v4128, %v4176
        %v4178 = vpop.f32.mrf.mxu0
        %v4179 = vadd.f32 %v4130, %v4178
        %4180 = vmatmul.bf16.gmra.mxu0 %v2747
        %v4181 = vpop.f32.mrf.mxu0
        %v4182 = vadd.f32 %v4133, %v4181
        %v4183 = vpop.f32.mrf.mxu0
        %v4184 = vadd.f32 %v4135, %v4183
        %4185 = vmatmul.bf16.gmra.mxu0 %v2749
        %v4186 = vpop.f32.mrf.mxu0
        %v4187 = vadd.f32 %v4138, %v4186
        %v4188 = vpop.f32.mrf.mxu0
        %v4189 = vadd.f32 %v4140, %v4188
        %4190 = vdwg.mxu0
        %v4191 = vtanh.pop %v3466
        %v4192 = vtanh.pop %v3564
        %v4193 = vtanh.pop %v3662
        %v4194 = vtanh.pop %v3760
        %v4195 = vtanh.pop %v3858
        %v4196 = vtanh.pop %v3956
        %v4197 = vtanh.pop %v4054
        %v4198 = vtanh.pop %v4152
        %v4199 = vtanh.pop %v3468
        %v4200 = vtanh.pop %v3566
        %v4201 = vtanh.pop %v3664
        %v4202 = vtanh.pop %v3762
        %v4203 = vtanh.pop %v3860
        %v4204 = vtanh.pop %v3958
        %v4205 = vtanh.pop %v4056
        %v4206 = vtanh.pop %v4154
        %v4207 = vtanh.pop %v3471
        %v4208 = vtanh.pop %v3569
        %v4209 = vtanh.pop %v3667
        %v4210 = vtanh.pop %v3765
        %v4211 = vtanh.pop %v3863
        %v4212 = vtanh.pop %v3961
        %v4213 = vtanh.pop %v4059
        %v4214 = vtanh.pop %v4157
        %v4215 = vtanh.pop %v3473
        %v4216 = vtanh.pop %v3571
        %v4217 = vtanh.pop %v3669
        %v4218 = vtanh.pop %v3767
        %v4219 = vtanh.pop %v3865
        %v4220 = vtanh.pop %v3963
        %v4221 = vtanh.pop %v4061
        %v4222 = vtanh.pop %v4159
        %v4223 = vtanh.pop %v3476
        %v4224 = vtanh.pop %v3574
        %v4225 = vtanh.pop %v3672
        %v4226 = vtanh.pop %v3770
        %v4227 = vtanh.pop %v3868
        %v4228 = vtanh.pop %v3966
        %v4229 = vtanh.pop %v4064
        %v4230 = vtanh.pop %v4162
        %v4231 = vtanh.pop %v3478
        %v4232 = vtanh.pop %v3576
        %v4233 = vtanh.pop %v3674
        %v4234 = vtanh.pop %v3772
        %v4235 = vtanh.pop %v3870
        %v4236 = vtanh.pop %v3968
        %v4237 = vtanh.pop %v4066
        %v4238 = vtanh.pop %v4164
        %v4239 = vtanh.pop %v3481
        %v4240 = vtanh.pop %v3579
        %v4241 = vtanh.pop %v3677
        %v4242 = vtanh.pop %v3775
        %v4243 = vtanh.pop %v3873
        %v4244 = vtanh.pop %v3971
        %v4245 = vtanh.pop %v4069
        %v4246 = vtanh.pop %v4167
        %v4247 = vtanh.pop %v3483
        %v4248 = vtanh.pop %v3581
        %v4249 = vtanh.pop %v3679
        %v4250 = vtanh.pop %v3777
        %v4251 = vtanh.pop %v3875
        %v4252 = vtanh.pop %v3973
        %v4253 = vtanh.pop %v4071
        %v4254 = vtanh.pop %v4169
        %v4255 = vtanh.pop %v3486
        %v4256 = vtanh.pop %v3584
        %v4257 = vtanh.pop %v3682
        %v4258 = vtanh.pop %v3780
        %v4259 = vtanh.pop %v3878
        %v4260 = vtanh.pop %v3976
        %v4261 = vtanh.pop %v4074
        %v4262 = vtanh.pop %v4172
        %v4263 = vtanh.pop %v3488
        %v4264 = vtanh.pop %v3586
        %v4265 = vtanh.pop %v3684
        %v4266 = vtanh.pop %v3782
        %v4267 = vtanh.pop %v3880
        %v4268 = vtanh.pop %v3978
        %v4269 = vtanh.pop %v4076
        %v4270 = vtanh.pop %v4174
        %v4271 = vtanh.pop %v3491
        %v4272 = vtanh.pop %v3589
        %v4273 = vtanh.pop %v3687
        %v4274 = vtanh.pop %v3785
        %v4275 = vtanh.pop %v3883
        %v4276 = vtanh.pop %v3981
        %v4277 = vtanh.pop %v4079
        %v4278 = vtanh.pop %v4177
        %v4279 = vtanh.pop %v3493
        %v4280 = vtanh.pop %v3591
        %v4281 = vtanh.pop %v3689
        %v4282 = vtanh.pop %v3787
        %v4283 = vtanh.pop %v3885
        %v4284 = vtanh.pop %v3983
        %v4285 = vtanh.pop %v4081
        %v4286 = vtanh.pop %v4179
        %v4287 = vtanh.pop %v3496
        %v4288 = vtanh.pop %v3594
        %v4289 = vtanh.pop %v3692
        %v4290 = vtanh.pop %v3790
        %v4291 = vtanh.pop %v3888
        %v4292 = vtanh.pop %v3986
        %v4293 = vtanh.pop %v4084
        %v4294 = vtanh.pop %v4182
        %v4295 = vtanh.pop %v3498
        %v4296 = vtanh.pop %v3596
        %v4297 = vtanh.pop %v3694
        %v4298 = vtanh.pop %v3792
        %v4299 = vtanh.pop %v3890
        %v4300 = vtanh.pop %v3988
        %v4301 = vtanh.pop %v4086
        %v4302 = vtanh.pop %v4184
        %v4303 = vtanh.pop %v3501
        %v4304 = vtanh.pop %v3599
        %v4305 = vtanh.pop %v3697
        %v4306 = vtanh.pop %v3795
        %v4307 = vtanh.pop %v3893
        %v4308 = vtanh.pop %v3991
        %v4309 = vtanh.pop %v4089
        %v4310 = vtanh.pop %v4187
        %v4311 = vtanh.pop %v3503
        %v4312 = vtanh.pop %v3601
        %v4313 = vtanh.pop %v3699
        %v4314 = vtanh.pop %v3797
        %v4315 = vtanh.pop %v3895
        %v4316 = vtanh.pop %v3993
        %v4317 = vtanh.pop %v4091
        %v4318 = vtanh.pop %v4189
        %v4319 = vmul.f32 %v4191, 2.0
        %v4320 = vmul.f32 %v4192, 2.0
        %v4321 = vmul.f32 %v4193, 2.0
        %v4322 = vmul.f32 %v4194, 2.0
        %v4323 = vmul.f32 %v4195, 2.0
        %v4324 = vmul.f32 %v4196, 2.0
        %v4325 = vmul.f32 %v4197, 2.0
        %v4326 = vmul.f32 %v4198, 2.0
        %v4327 = vmul.f32 %v4199, 2.0
        %v4328 = vmul.f32 %v4200, 2.0
        %v4329 = vmul.f32 %v4201, 2.0
        %v4330 = vmul.f32 %v4202, 2.0
        %v4331 = vmul.f32 %v4203, 2.0
        %v4332 = vmul.f32 %v4204, 2.0
        %v4333 = vmul.f32 %v4205, 2.0
        %v4334 = vmul.f32 %v4206, 2.0
        %v4335 = vmul.f32 %v4207, 2.0
        %v4336 = vmul.f32 %v4208, 2.0
        %v4337 = vmul.f32 %v4209, 2.0
        %v4338 = vmul.f32 %v4210, 2.0
        %v4339 = vmul.f32 %v4211, 2.0
        %v4340 = vmul.f32 %v4212, 2.0
        %v4341 = vmul.f32 %v4213, 2.0
        %v4342 = vmul.f32 %v4214, 2.0
        %v4343 = vmul.f32 %v4215, 2.0
        %v4344 = vmul.f32 %v4216, 2.0
        %v4345 = vmul.f32 %v4217, 2.0
        %v4346 = vmul.f32 %v4218, 2.0
        %v4347 = vmul.f32 %v4219, 2.0
        %v4348 = vmul.f32 %v4220, 2.0
        %v4349 = vmul.f32 %v4221, 2.0
        %v4350 = vmul.f32 %v4222, 2.0
        %v4351 = vmul.f32 %v4223, 2.0
        %v4352 = vmul.f32 %v4224, 2.0
        %v4353 = vmul.f32 %v4225, 2.0
        %v4354 = vmul.f32 %v4226, 2.0
        %v4355 = vmul.f32 %v4227, 2.0
        %v4356 = vmul.f32 %v4228, 2.0
        %v4357 = vmul.f32 %v4229, 2.0
        %v4358 = vmul.f32 %v4230, 2.0
        %v4359 = vmul.f32 %v4231, 2.0
        %v4360 = vmul.f32 %v4232, 2.0
        %v4361 = vmul.f32 %v4233, 2.0
        %v4362 = vmul.f32 %v4234, 2.0
        %v4363 = vmul.f32 %v4235, 2.0
        %v4364 = vmul.f32 %v4236, 2.0
        %v4365 = vmul.f32 %v4237, 2.0
        %v4366 = vmul.f32 %v4238, 2.0
        %v4367 = vmul.f32 %v4239, 2.0
        %v4368 = vmul.f32 %v4240, 2.0
        %v4369 = vmul.f32 %v4241, 2.0
        %v4370 = vmul.f32 %v4242, 2.0
        %v4371 = vmul.f32 %v4243, 2.0
        %v4372 = vmul.f32 %v4244, 2.0
        %v4373 = vmul.f32 %v4245, 2.0
        %v4374 = vmul.f32 %v4246, 2.0
        %v4375 = vmul.f32 %v4247, 2.0
        %v4376 = vmul.f32 %v4248, 2.0
        %v4377 = vmul.f32 %v4249, 2.0
        %v4378 = vmul.f32 %v4250, 2.0
        %v4379 = vmul.f32 %v4251, 2.0
        %v4380 = vmul.f32 %v4252, 2.0
        %v4381 = vmul.f32 %v4253, 2.0
        %v4382 = vmul.f32 %v4254, 2.0
        %v4383 = vmul.f32 %v4255, 2.0
        %v4384 = vmul.f32 %v4256, 2.0
        %v4385 = vmul.f32 %v4257, 2.0
        %v4386 = vmul.f32 %v4258, 2.0
        %v4387 = vmul.f32 %v4259, 2.0
        %v4388 = vmul.f32 %v4260, 2.0
        %v4389 = vmul.f32 %v4261, 2.0
        %v4390 = vmul.f32 %v4262, 2.0
        %v4391 = vmul.f32 %v4263, 2.0
        %v4392 = vmul.f32 %v4264, 2.0
        %v4393 = vmul.f32 %v4265, 2.0
        %v4394 = vmul.f32 %v4266, 2.0
        %v4395 = vmul.f32 %v4267, 2.0
        %v4396 = vmul.f32 %v4268, 2.0
        %v4397 = vmul.f32 %v4269, 2.0
        %v4398 = vmul.f32 %v4270, 2.0
        %v4399 = vmul.f32 %v4271, 2.0
        %v4400 = vmul.f32 %v4272, 2.0
        %v4401 = vmul.f32 %v4273, 2.0
        %v4402 = vmul.f32 %v4274, 2.0
        %v4403 = vmul.f32 %v4275, 2.0
        %v4404 = vmul.f32 %v4276, 2.0
        %v4405 = vmul.f32 %v4277, 2.0
        %v4406 = vmul.f32 %v4278, 2.0
        %v4407 = vmul.f32 %v4279, 2.0
        %v4408 = vmul.f32 %v4280, 2.0
        %v4409 = vmul.f32 %v4281, 2.0
        %v4410 = vmul.f32 %v4282, 2.0
        %v4411 = vmul.f32 %v4283, 2.0
        %v4412 = vmul.f32 %v4284, 2.0
        %v4413 = vmul.f32 %v4285, 2.0
        %v4414 = vmul.f32 %v4286, 2.0
        %v4415 = vmul.f32 %v4287, 2.0
        %v4416 = vmul.f32 %v4288, 2.0
        %v4417 = vmul.f32 %v4289, 2.0
        %v4418 = vmul.f32 %v4290, 2.0
        %v4419 = vmul.f32 %v4291, 2.0
        %v4420 = vmul.f32 %v4292, 2.0
        %v4421 = vmul.f32 %v4293, 2.0
        %v4422 = vmul.f32 %v4294, 2.0
        %v4423 = vmul.f32 %v4295, 2.0
        %v4424 = vmul.f32 %v4296, 2.0
        %v4425 = vmul.f32 %v4297, 2.0
        %v4426 = vmul.f32 %v4298, 2.0
        %v4427 = vmul.f32 %v4299, 2.0
        %v4428 = vmul.f32 %v4300, 2.0
        %v4429 = vmul.f32 %v4301, 2.0
        %v4430 = vmul.f32 %v4302, 2.0
        %v4431 = vmul.f32 %v4303, 2.0
        %v4432 = vmul.f32 %v4304, 2.0
        %v4433 = vmul.f32 %v4305, 2.0
        %v4434 = vmul.f32 %v4306, 2.0
        %v4435 = vmul.f32 %v4307, 2.0
        %v4436 = vmul.f32 %v4308, 2.0
        %v4437 = vmul.f32 %v4309, 2.0
        %v4438 = vmul.f32 %v4310, 2.0
        %v4439 = vmul.f32 %v4311, 2.0
        %v4440 = vmul.f32 %v4312, 2.0
        %v4441 = vmul.f32 %v4313, 2.0
        %v4442 = vmul.f32 %v4314, 2.0
        %v4443 = vmul.f32 %v4315, 2.0
        %v4444 = vmul.f32 %v4316, 2.0
        %v4445 = vmul.f32 %v4317, 2.0
        %v4446 = vmul.f32 %v4318, 2.0
        %v4447 = vmax.f32 %v381, -1.0
        %v4448 = vmax.f32 %v382, -1.0
        %v4449 = vmax.f32 %v383, -1.0
        %v4450 = vmax.f32 %v384, -1.0
        %v4451 = vmax.f32 %v385, -1.0
        %v4452 = vmax.f32 %v386, -1.0
        %v4453 = vmax.f32 %v387, -1.0
        %v4454 = vmax.f32 %v388, -1.0
        %v4455 = vmax.f32 %v389, -1.0
        %v4456 = vmax.f32 %v390, -1.0
        %v4457 = vmax.f32 %v391, -1.0
        %v4458 = vmax.f32 %v392, -1.0
        %v4459 = vmax.f32 %v393, -1.0
        %v4460 = vmax.f32 %v394, -1.0
        %v4461 = vmax.f32 %v395, -1.0
        %v4462 = vmax.f32 %v396, -1.0
        %v4463 = vmax.f32 %v397, -1.0
        %v4464 = vmax.f32 %v398, -1.0
        %v4465 = vmax.f32 %v399, -1.0
        %v4466 = vmax.f32 %v400, -1.0
        %v4467 = vmax.f32 %v401, -1.0
        %v4468 = vmax.f32 %v402, -1.0
        %v4469 = vmax.f32 %v403, -1.0
        %v4470 = vmax.f32 %v404, -1.0
        %v4471 = vmax.f32 %v405, -1.0
        %v4472 = vmax.f32 %v406, -1.0
        %v4473 = vmax.f32 %v407, -1.0
        %v4474 = vmax.f32 %v408, -1.0
        %v4475 = vmax.f32 %v409, -1.0
        %v4476 = vmax.f32 %v410, -1.0
        %v4477 = vmax.f32 %v411, -1.0
        %v4478 = vmax.f32 %v412, -1.0
        %v4479 = vmax.f32 %v413, -1.0
        %v4480 = vmax.f32 %v414, -1.0
        %v4481 = vmax.f32 %v415, -1.0
        %v4482 = vmax.f32 %v416, -1.0
        %v4483 = vmax.f32 %v417, -1.0
        %v4484 = vmax.f32 %v418, -1.0
        %v4485 = vmax.f32 %v419, -1.0
        %v4486 = vmax.f32 %v420, -1.0
        %v4487 = vmax.f32 %v421, -1.0
        %v4488 = vmax.f32 %v422, -1.0
        %v4489 = vmax.f32 %v423, -1.0
        %v4490 = vmax.f32 %v424, -1.0
        %v4491 = vmax.f32 %v425, -1.0
        %v4492 = vmax.f32 %v426, -1.0
        %v4493 = vmax.f32 %v427, -1.0
        %v4494 = vmax.f32 %v428, -1.0
        %v4495 = vmax.f32 %v429, -1.0
        %v4496 = vmax.f32 %v430, -1.0
        %v4497 = vmax.f32 %v431, -1.0
        %v4498 = vmax.f32 %v432, -1.0
        %v4499 = vmax.f32 %v433, -1.0
        %v4500 = vmax.f32 %v434, -1.0
        %v4501 = vmax.f32 %v435, -1.0
        %v4502 = vmax.f32 %v436, -1.0
        %v4503 = vmax.f32 %v437, -1.0
        %v4504 = vmax.f32 %v438, -1.0
        %v4505 = vmax.f32 %v439, -1.0
        %v4506 = vmax.f32 %v440, -1.0
        %v4507 = vmax.f32 %v441, -1.0
        %v4508 = vmax.f32 %v442, -1.0
        %v4509 = vmax.f32 %v443, -1.0
        %v4510 = vmax.f32 %v444, -1.0
        %v4511 = vmax.f32 %v445, -1.0
        %v4512 = vmax.f32 %v446, -1.0
        %v4513 = vmax.f32 %v447, -1.0
        %v4514 = vmax.f32 %v448, -1.0
        %v4515 = vmax.f32 %v449, -1.0
        %v4516 = vmax.f32 %v450, -1.0
        %v4517 = vmax.f32 %v451, -1.0
        %v4518 = vmax.f32 %v452, -1.0
        %v4519 = vmax.f32 %v453, -1.0
        %v4520 = vmax.f32 %v454, -1.0
        %v4521 = vmax.f32 %v455, -1.0
        %v4522 = vmax.f32 %v456, -1.0
        %v4523 = vmax.f32 %v457, -1.0
        %v4524 = vmax.f32 %v458, -1.0
        %v4525 = vmax.f32 %v459, -1.0
        %v4526 = vmax.f32 %v460, -1.0
        %v4527 = vmax.f32 %v461, -1.0
        %v4528 = vmax.f32 %v462, -1.0
        %v4529 = vmax.f32 %v463, -1.0
        %v4530 = vmax.f32 %v464, -1.0
        %v4531 = vmax.f32 %v465, -1.0
        %v4532 = vmax.f32 %v466, -1.0
        %v4533 = vmax.f32 %v467, -1.0
        %v4534 = vmax.f32 %v468, -1.0
        %v4535 = vmax.f32 %v469, -1.0
        %v4536 = vmax.f32 %v470, -1.0
        %v4537 = vmax.f32 %v471, -1.0
        %v4538 = vmax.f32 %v472, -1.0
        %v4539 = vmax.f32 %v473, -1.0
        %v4540 = vmax.f32 %v474, -1.0
        %v4541 = vmax.f32 %v475, -1.0
        %v4542 = vmax.f32 %v476, -1.0
        %v4543 = vmax.f32 %v477, -1.0
        %v4544 = vmax.f32 %v478, -1.0
        %v4545 = vmax.f32 %v479, -1.0
        %v4546 = vmax.f32 %v480, -1.0
        %v4547 = vmax.f32 %v481, -1.0
        %v4548 = vmax.f32 %v482, -1.0
        %v4549 = vmax.f32 %v483, -1.0
        %v4550 = vmax.f32 %v484, -1.0
        %v4551 = vmax.f32 %v485, -1.0
        %v4552 = vmax.f32 %v486, -1.0
        %v4553 = vmax.f32 %v487, -1.0
        %v4554 = vmax.f32 %v488, -1.0
        %v4555 = vmax.f32 %v489, -1.0
        %v4556 = vmax.f32 %v490, -1.0
        %v4557 = vmax.f32 %v491, -1.0
        %v4558 = vmax.f32 %v492, -1.0
        %v4559 = vmax.f32 %v493, -1.0
        %v4560 = vmax.f32 %v494, -1.0
        %v4561 = vmax.f32 %v495, -1.0
        %v4562 = vmax.f32 %v496, -1.0
        %v4563 = vmax.f32 %v497, -1.0
        %v4564 = vmax.f32 %v498, -1.0
        %v4565 = vmax.f32 %v499, -1.0
        %v4566 = vmax.f32 %v500, -1.0
        %v4567 = vmax.f32 %v501, -1.0
        %v4568 = vmax.f32 %v502, -1.0
        %v4569 = vmax.f32 %v503, -1.0
        %v4570 = vmax.f32 %v504, -1.0
        %v4571 = vmax.f32 %v505, -1.0
        %v4572 = vmax.f32 %v506, -1.0
        %v4573 = vmax.f32 %v507, -1.0
        %v4574 = vmax.f32 %v508, -1.0
        %v4575 = vmin.f32 %v4447, 1.0
        %v4576 = vmin.f32 %v4448, 1.0
        %v4577 = vmin.f32 %v4449, 1.0
        %v4578 = vmin.f32 %v4450, 1.0
        %v4579 = vmin.f32 %v4451, 1.0
        %v4580 = vmin.f32 %v4452, 1.0
        %v4581 = vmin.f32 %v4453, 1.0
        %v4582 = vmin.f32 %v4454, 1.0
        %v4583 = vmin.f32 %v4455, 1.0
        %v4584 = vmin.f32 %v4456, 1.0
        %v4585 = vmin.f32 %v4457, 1.0
        %v4586 = vmin.f32 %v4458, 1.0
        %v4587 = vmin.f32 %v4459, 1.0
        %v4588 = vmin.f32 %v4460, 1.0
        %v4589 = vmin.f32 %v4461, 1.0
        %v4590 = vmin.f32 %v4462, 1.0
        %v4591 = vmin.f32 %v4463, 1.0
        %v4592 = vmin.f32 %v4464, 1.0
        %v4593 = vmin.f32 %v4465, 1.0
        %v4594 = vmin.f32 %v4466, 1.0
        %v4595 = vmin.f32 %v4467, 1.0
        %v4596 = vmin.f32 %v4468, 1.0
        %v4597 = vmin.f32 %v4469, 1.0
        %v4598 = vmin.f32 %v4470, 1.0
        %v4599 = vmin.f32 %v4471, 1.0
        %v4600 = vmin.f32 %v4472, 1.0
        %v4601 = vmin.f32 %v4473, 1.0
        %v4602 = vmin.f32 %v4474, 1.0
        %v4603 = vmin.f32 %v4475, 1.0
        %v4604 = vmin.f32 %v4476, 1.0
        %v4605 = vmin.f32 %v4477, 1.0
        %v4606 = vmin.f32 %v4478, 1.0
        %v4607 = vmin.f32 %v4479, 1.0
        %v4608 = vmin.f32 %v4480, 1.0
        %v4609 = vmin.f32 %v4481, 1.0
        %v4610 = vmin.f32 %v4482, 1.0
        %v4611 = vmin.f32 %v4483, 1.0
        %v4612 = vmin.f32 %v4484, 1.0
        %v4613 = vmin.f32 %v4485, 1.0
        %v4614 = vmin.f32 %v4486, 1.0
        %v4615 = vmin.f32 %v4487, 1.0
        %v4616 = vmin.f32 %v4488, 1.0
        %v4617 = vmin.f32 %v4489, 1.0
        %v4618 = vmin.f32 %v4490, 1.0
        %v4619 = vmin.f32 %v4491, 1.0
        %v4620 = vmin.f32 %v4492, 1.0
        %v4621 = vmin.f32 %v4493, 1.0
        %v4622 = vmin.f32 %v4494, 1.0
        %v4623 = vmin.f32 %v4495, 1.0
        %v4624 = vmin.f32 %v4496, 1.0
        %v4625 = vmin.f32 %v4497, 1.0
        %v4626 = vmin.f32 %v4498, 1.0
        %v4627 = vmin.f32 %v4499, 1.0
        %v4628 = vmin.f32 %v4500, 1.0
        %v4629 = vmin.f32 %v4501, 1.0
        %v4630 = vmin.f32 %v4502, 1.0
        %v4631 = vmin.f32 %v4503, 1.0
        %v4632 = vmin.f32 %v4504, 1.0
        %v4633 = vmin.f32 %v4505, 1.0
        %v4634 = vmin.f32 %v4506, 1.0
        %v4635 = vmin.f32 %v4507, 1.0
        %v4636 = vmin.f32 %v4508, 1.0
        %v4637 = vmin.f32 %v4509, 1.0
        %v4638 = vmin.f32 %v4510, 1.0
        %v4639 = vmin.f32 %v4511, 1.0
        %v4640 = vmin.f32 %v4512, 1.0
        %v4641 = vmin.f32 %v4513, 1.0
        %v4642 = vmin.f32 %v4514, 1.0
        %v4643 = vmin.f32 %v4515, 1.0
        %v4644 = vmin.f32 %v4516, 1.0
        %v4645 = vmin.f32 %v4517, 1.0
        %v4646 = vmin.f32 %v4518, 1.0
        %v4647 = vmin.f32 %v4519, 1.0
        %v4648 = vmin.f32 %v4520, 1.0
        %v4649 = vmin.f32 %v4521, 1.0
        %v4650 = vmin.f32 %v4522, 1.0
        %v4651 = vmin.f32 %v4523, 1.0
        %v4652 = vmin.f32 %v4524, 1.0
        %v4653 = vmin.f32 %v4525, 1.0
        %v4654 = vmin.f32 %v4526, 1.0
        %v4655 = vmin.f32 %v4527, 1.0
        %v4656 = vmin.f32 %v4528, 1.0
        %v4657 = vmin.f32 %v4529, 1.0
        %v4658 = vmin.f32 %v4530, 1.0
        %v4659 = vmin.f32 %v4531, 1.0
        %v4660 = vmin.f32 %v4532, 1.0
        %v4661 = vmin.f32 %v4533, 1.0
        %v4662 = vmin.f32 %v4534, 1.0
        %v4663 = vmin.f32 %v4535, 1.0
        %v4664 = vmin.f32 %v4536, 1.0
        %v4665 = vmin.f32 %v4537, 1.0
        %v4666 = vmin.f32 %v4538, 1.0
        %v4667 = vmin.f32 %v4539, 1.0
        %v4668 = vmin.f32 %v4540, 1.0
        %v4669 = vmin.f32 %v4541, 1.0
        %v4670 = vmin.f32 %v4542, 1.0
        %v4671 = vmin.f32 %v4543, 1.0
        %v4672 = vmin.f32 %v4544, 1.0
        %v4673 = vmin.f32 %v4545, 1.0
        %v4674 = vmin.f32 %v4546, 1.0
        %v4675 = vmin.f32 %v4547, 1.0
        %v4676 = vmin.f32 %v4548, 1.0
        %v4677 = vmin.f32 %v4549, 1.0
        %v4678 = vmin.f32 %v4550, 1.0
        %v4679 = vmin.f32 %v4551, 1.0
        %v4680 = vmin.f32 %v4552, 1.0
        %v4681 = vmin.f32 %v4553, 1.0
        %v4682 = vmin.f32 %v4554, 1.0
        %v4683 = vmin.f32 %v4555, 1.0
        %v4684 = vmin.f32 %v4556, 1.0
        %v4685 = vmin.f32 %v4557, 1.0
        %v4686 = vmin.f32 %v4558, 1.0
        %v4687 = vmin.f32 %v4559, 1.0
        %v4688 = vmin.f32 %v4560, 1.0
        %v4689 = vmin.f32 %v4561, 1.0
        %v4690 = vmin.f32 %v4562, 1.0
        %v4691 = vmin.f32 %v4563, 1.0
        %v4692 = vmin.f32 %v4564, 1.0
        %v4693 = vmin.f32 %v4565, 1.0
        %v4694 = vmin.f32 %v4566, 1.0
        %v4695 = vmin.f32 %v4567, 1.0
        %v4696 = vmin.f32 %v4568, 1.0
        %v4697 = vmin.f32 %v4569, 1.0
        %v4698 = vmin.f32 %v4570, 1.0
        %v4699 = vmin.f32 %v4571, 1.0
        %v4700 = vmin.f32 %v4572, 1.0
        %v4701 = vmin.f32 %v4573, 1.0
        %v4702 = vmin.f32 %v4574, 1.0
        %v4703 = vadd.f32 %v4319, %v4575
        %v4704 = vadd.f32 %v4320, %v4576
        %v4705 = vadd.f32 %v4321, %v4577
        %v4706 = vadd.f32 %v4322, %v4578
        %v4707 = vadd.f32 %v4323, %v4579
        %v4708 = vadd.f32 %v4324, %v4580
        %v4709 = vadd.f32 %v4325, %v4581
        %v4710 = vadd.f32 %v4326, %v4582
        %v4711 = vadd.f32 %v4327, %v4583
        %v4712 = vadd.f32 %v4328, %v4584
        %v4713 = vadd.f32 %v4329, %v4585
        %v4714 = vadd.f32 %v4330, %v4586
        %v4715 = vadd.f32 %v4331, %v4587
        %v4716 = vadd.f32 %v4332, %v4588
        %v4717 = vadd.f32 %v4333, %v4589
        %v4718 = vadd.f32 %v4334, %v4590
        %v4719 = vadd.f32 %v4335, %v4591
        %v4720 = vadd.f32 %v4336, %v4592
        %v4721 = vadd.f32 %v4337, %v4593
        %v4722 = vadd.f32 %v4338, %v4594
        %v4723 = vadd.f32 %v4339, %v4595
        %v4724 = vadd.f32 %v4340, %v4596
        %v4725 = vadd.f32 %v4341, %v4597
        %v4726 = vadd.f32 %v4342, %v4598
        %v4727 = vadd.f32 %v4343, %v4599
        %v4728 = vadd.f32 %v4344, %v4600
        %v4729 = vadd.f32 %v4345, %v4601
        %v4730 = vadd.f32 %v4346, %v4602
        %v4731 = vadd.f32 %v4347, %v4603
        %v4732 = vadd.f32 %v4348, %v4604
        %v4733 = vadd.f32 %v4349, %v4605
        %v4734 = vadd.f32 %v4350, %v4606
        %v4735 = vadd.f32 %v4351, %v4607
        %v4736 = vadd.f32 %v4352, %v4608
        %v4737 = vadd.f32 %v4353, %v4609
        %v4738 = vadd.f32 %v4354, %v4610
        %v4739 = vadd.f32 %v4355, %v4611
        %v4740 = vadd.f32 %v4356, %v4612
        %v4741 = vadd.f32 %v4357, %v4613
        %v4742 = vadd.f32 %v4358, %v4614
        %v4743 = vadd.f32 %v4359, %v4615
        %v4744 = vadd.f32 %v4360, %v4616
        %v4745 = vadd.f32 %v4361, %v4617
        %v4746 = vadd.f32 %v4362, %v4618
        %v4747 = vadd.f32 %v4363, %v4619
        %v4748 = vadd.f32 %v4364, %v4620
        %v4749 = vadd.f32 %v4365, %v4621
        %v4750 = vadd.f32 %v4366, %v4622
        %v4751 = vadd.f32 %v4367, %v4623
        %v4752 = vadd.f32 %v4368, %v4624
        %v4753 = vadd.f32 %v4369, %v4625
        %v4754 = vadd.f32 %v4370, %v4626
        %v4755 = vadd.f32 %v4371, %v4627
        %v4756 = vadd.f32 %v4372, %v4628
        %v4757 = vadd.f32 %v4373, %v4629
        %v4758 = vadd.f32 %v4374, %v4630
        %v4759 = vadd.f32 %v4375, %v4631
        %v4760 = vadd.f32 %v4376, %v4632
        %v4761 = vadd.f32 %v4377, %v4633
        %v4762 = vadd.f32 %v4378, %v4634
        %v4763 = vadd.f32 %v4379, %v4635
        %v4764 = vadd.f32 %v4380, %v4636
        %v4765 = vadd.f32 %v4381, %v4637
        %v4766 = vadd.f32 %v4382, %v4638
        %v4767 = vadd.f32 %v4383, %v4639
        %v4768 = vadd.f32 %v4384, %v4640
        %v4769 = vadd.f32 %v4385, %v4641
        %v4770 = vadd.f32 %v4386, %v4642
        %v4771 = vadd.f32 %v4387, %v4643
        %v4772 = vadd.f32 %v4388, %v4644
        %v4773 = vadd.f32 %v4389, %v4645
        %v4774 = vadd.f32 %v4390, %v4646
        %v4775 = vadd.f32 %v4391, %v4647
        %v4776 = vadd.f32 %v4392, %v4648
        %v4777 = vadd.f32 %v4393, %v4649
        %v4778 = vadd.f32 %v4394, %v4650
        %v4779 = vadd.f32 %v4395, %v4651
        %v4780 = vadd.f32 %v4396, %v4652
        %v4781 = vadd.f32 %v4397, %v4653
        %v4782 = vadd.f32 %v4398, %v4654
        %v4783 = vadd.f32 %v4399, %v4655
        %v4784 = vadd.f32 %v4400, %v4656
        %v4785 = vadd.f32 %v4401, %v4657
        %v4786 = vadd.f32 %v4402, %v4658
        %v4787 = vadd.f32 %v4403, %v4659
        %v4788 = vadd.f32 %v4404, %v4660
        %v4789 = vadd.f32 %v4405, %v4661
        %v4790 = vadd.f32 %v4406, %v4662
        %v4791 = vadd.f32 %v4407, %v4663
        %v4792 = vadd.f32 %v4408, %v4664
        %v4793 = vadd.f32 %v4409, %v4665
        %v4794 = vadd.f32 %v4410, %v4666
        %v4795 = vadd.f32 %v4411, %v4667
        %v4796 = vadd.f32 %v4412, %v4668
        %v4797 = vadd.f32 %v4413, %v4669
        %v4798 = vadd.f32 %v4414, %v4670
        %v4799 = vadd.f32 %v4415, %v4671
        %v4800 = vadd.f32 %v4416, %v4672
        %v4801 = vadd.f32 %v4417, %v4673
        %v4802 = vadd.f32 %v4418, %v4674
        %v4803 = vadd.f32 %v4419, %v4675
        %v4804 = vadd.f32 %v4420, %v4676
        %v4805 = vadd.f32 %v4421, %v4677
        %v4806 = vadd.f32 %v4422, %v4678
        %v4807 = vadd.f32 %v4423, %v4679
        %v4808 = vadd.f32 %v4424, %v4680
        %v4809 = vadd.f32 %v4425, %v4681
        %v4810 = vadd.f32 %v4426, %v4682
        %v4811 = vadd.f32 %v4427, %v4683
        %v4812 = vadd.f32 %v4428, %v4684
        %v4813 = vadd.f32 %v4429, %v4685
        %v4814 = vadd.f32 %v4430, %v4686
        %v4815 = vadd.f32 %v4431, %v4687
        %v4816 = vadd.f32 %v4432, %v4688
        %v4817 = vadd.f32 %v4433, %v4689
        %v4818 = vadd.f32 %v4434, %v4690
        %v4819 = vadd.f32 %v4435, %v4691
        %v4820 = vadd.f32 %v4436, %v4692
        %v4821 = vadd.f32 %v4437, %v4693
        %v4822 = vadd.f32 %v4438, %v4694
        %v4823 = vadd.f32 %v4439, %v4695
        %v4824 = vadd.f32 %v4440, %v4696
        %v4825 = vadd.f32 %v4441, %v4697
        %v4826 = vadd.f32 %v4442, %v4698
        %v4827 = vadd.f32 %v4443, %v4699
        %v4828 = vadd.f32 %v4444, %v4700
        %v4829 = vadd.f32 %v4445, %v4701
        %v4830 = vadd.f32 %v4446, %v4702
        %4831 = vst [vmem:[%s378] sm:$0xff] %v4703
        %4832 = vst [vmem:[%s378 + $0x8] sm:$0xff] %v4704
        %4833 = vst [vmem:[%s378 + $0x10] sm:$0xff] %v4705
        %4834 = vst [vmem:[%s378 + $0x18] sm:$0xff] %v4706
        %4835 = vst [vmem:[%s378 + $0x20] sm:$0xff] %v4707
        %4836 = vst [vmem:[%s378 + $0x28] sm:$0xff] %v4708
        %4837 = vst [vmem:[%s378 + $0x30] sm:$0xff] %v4709
        %4838 = vst [vmem:[%s378 + $0x38] sm:$0xff] %v4710
        %4839 = vst [vmem:[%s378 + $0x40] sm:$0xff] %v4711
        %4840 = vst [vmem:[%s378 + $0x48] sm:$0xff] %v4712
        %4841 = vst [vmem:[%s378 + $0x50] sm:$0xff] %v4713
        %4842 = vst [vmem:[%s378 + $0x58] sm:$0xff] %v4714
        %4843 = vst [vmem:[%s378 + $0x60] sm:$0xff] %v4715
        %4844 = vst [vmem:[%s378 + $0x68] sm:$0xff] %v4716
        %4845 = vst [vmem:[%s378 + $0x70] sm:$0xff] %v4717
        %4846 = vst [vmem:[%s378 + $0x78] sm:$0xff] %v4718
        %4847 = vst [vmem:[%s378 + $0x80] sm:$0xff] %v4719
        %4848 = vst [vmem:[%s378 + $0x88] sm:$0xff] %v4720
        %4849 = vst [vmem:[%s378 + $0x90] sm:$0xff] %v4721
        %4850 = vst [vmem:[%s378 + $0x98] sm:$0xff] %v4722
        %4851 = vst [vmem:[%s378 + $0xa0] sm:$0xff] %v4723
        %4852 = vst [vmem:[%s378 + $0xa8] sm:$0xff] %v4724
        %4853 = vst [vmem:[%s378 + $0xb0] sm:$0xff] %v4725
        %4854 = vst [vmem:[%s378 + $0xb8] sm:$0xff] %v4726
        %4855 = vst [vmem:[%s378 + $0xc0] sm:$0xff] %v4727
        %4856 = vst [vmem:[%s378 + $0xc8] sm:$0xff] %v4728
        %4857 = vst [vmem:[%s378 + $0xd0] sm:$0xff] %v4729
        %4858 = vst [vmem:[%s378 + $0xd8] sm:$0xff] %v4730
        %4859 = vst [vmem:[%s378 + $0xe0] sm:$0xff] %v4731
        %4860 = vst [vmem:[%s378 + $0xe8] sm:$0xff] %v4732
        %4861 = vst [vmem:[%s378 + $0xf0] sm:$0xff] %v4733
        %4862 = vst [vmem:[%s378 + $0xf8] sm:$0xff] %v4734
        %4863 = vst [vmem:[%s378 + $0x100] sm:$0xff] %v4735
        %4864 = vst [vmem:[%s378 + $0x108] sm:$0xff] %v4736
        %4865 = vst [vmem:[%s378 + $0x110] sm:$0xff] %v4737
        %4866 = vst [vmem:[%s378 + $0x118] sm:$0xff] %v4738
        %4867 = vst [vmem:[%s378 + $0x120] sm:$0xff] %v4739
        %4868 = vst [vmem:[%s378 + $0x128] sm:$0xff] %v4740
        %4869 = vst [vmem:[%s378 + $0x130] sm:$0xff] %v4741
        %4870 = vst [vmem:[%s378 + $0x138] sm:$0xff] %v4742
        %4871 = vst [vmem:[%s378 + $0x140] sm:$0xff] %v4743
        %4872 = vst [vmem:[%s378 + $0x148] sm:$0xff] %v4744
        %4873 = vst [vmem:[%s378 + $0x150] sm:$0xff] %v4745
        %4874 = vst [vmem:[%s378 + $0x158] sm:$0xff] %v4746
        %4875 = vst [vmem:[%s378 + $0x160] sm:$0xff] %v4747
        %4876 = vst [vmem:[%s378 + $0x168] sm:$0xff] %v4748
        %4877 = vst [vmem:[%s378 + $0x170] sm:$0xff] %v4749
        %4878 = vst [vmem:[%s378 + $0x178] sm:$0xff] %v4750
        %4879 = vst [vmem:[%s378 + $0x180] sm:$0xff] %v4751
        %4880 = vst [vmem:[%s378 + $0x188] sm:$0xff] %v4752
        %4881 = vst [vmem:[%s378 + $0x190] sm:$0xff] %v4753
        %4882 = vst [vmem:[%s378 + $0x198] sm:$0xff] %v4754
        %4883 = vst [vmem:[%s378 + $0x1a0] sm:$0xff] %v4755
        %4884 = vst [vmem:[%s378 + $0x1a8] sm:$0xff] %v4756
        %4885 = vst [vmem:[%s378 + $0x1b0] sm:$0xff] %v4757
        %4886 = vst [vmem:[%s378 + $0x1b8] sm:$0xff] %v4758
        %4887 = vst [vmem:[%s378 + $0x1c0] sm:$0xff] %v4759
        %4888 = vst [vmem:[%s378 + $0x1c8] sm:$0xff] %v4760
        %4889 = vst [vmem:[%s378 + $0x1d0] sm:$0xff] %v4761
        %4890 = vst [vmem:[%s378 + $0x1d8] sm:$0xff] %v4762
        %4891 = vst [vmem:[%s378 + $0x1e0] sm:$0xff] %v4763
        %4892 = vst [vmem:[%s378 + $0x1e8] sm:$0xff] %v4764
        %4893 = vst [vmem:[%s378 + $0x1f0] sm:$0xff] %v4765
        %4894 = vst [vmem:[%s378 + $0x1f8] sm:$0xff] %v4766
        %4895 = vst [vmem:[%s378 + $0x200] sm:$0xff] %v4767
        %4896 = vst [vmem:[%s378 + $0x208] sm:$0xff] %v4768
        %4897 = vst [vmem:[%s378 + $0x210] sm:$0xff] %v4769
        %4898 = vst [vmem:[%s378 + $0x218] sm:$0xff] %v4770
        %4899 = vst [vmem:[%s378 + $0x220] sm:$0xff] %v4771
        %4900 = vst [vmem:[%s378 + $0x228] sm:$0xff] %v4772
        %4901 = vst [vmem:[%s378 + $0x230] sm:$0xff] %v4773
        %4902 = vst [vmem:[%s378 + $0x238] sm:$0xff] %v4774
        %4903 = vst [vmem:[%s378 + $0x240] sm:$0xff] %v4775
        %4904 = vst [vmem:[%s378 + $0x248] sm:$0xff] %v4776
        %4905 = vst [vmem:[%s378 + $0x250] sm:$0xff] %v4777
        %4906 = vst [vmem:[%s378 + $0x258] sm:$0xff] %v4778
        %4907 = vst [vmem:[%s378 + $0x260] sm:$0xff] %v4779
        %4908 = vst [vmem:[%s378 + $0x268] sm:$0xff] %v4780
        %4909 = vst [vmem:[%s378 + $0x270] sm:$0xff] %v4781
        %4910 = vst [vmem:[%s378 + $0x278] sm:$0xff] %v4782
        %4911 = vst [vmem:[%s378 + $0x280] sm:$0xff] %v4783
        %4912 = vst [vmem:[%s378 + $0x288] sm:$0xff] %v4784
        %4913 = vst [vmem:[%s378 + $0x290] sm:$0xff] %v4785
        %4914 = vst [vmem:[%s378 + $0x298] sm:$0xff] %v4786
        %4915 = vst [vmem:[%s378 + $0x2a0] sm:$0xff] %v4787
        %4916 = vst [vmem:[%s378 + $0x2a8] sm:$0xff] %v4788
        %4917 = vst [vmem:[%s378 + $0x2b0] sm:$0xff] %v4789
        %4918 = vst [vmem:[%s378 + $0x2b8] sm:$0xff] %v4790
        %4919 = vst [vmem:[%s378 + $0x2c0] sm:$0xff] %v4791
        %4920 = vst [vmem:[%s378 + $0x2c8] sm:$0xff] %v4792
        %4921 = vst [vmem:[%s378 + $0x2d0] sm:$0xff] %v4793
        %4922 = vst [vmem:[%s378 + $0x2d8] sm:$0xff] %v4794
        %4923 = vst [vmem:[%s378 + $0x2e0] sm:$0xff] %v4795
        %4924 = vst [vmem:[%s378 + $0x2e8] sm:$0xff] %v4796
        %4925 = vst [vmem:[%s378 + $0x2f0] sm:$0xff] %v4797
        %4926 = vst [vmem:[%s378 + $0x2f8] sm:$0xff] %v4798
        %4927 = vst [vmem:[%s378 + $0x300] sm:$0xff] %v4799
        %4928 = vst [vmem:[%s378 + $0x308] sm:$0xff] %v4800
        %4929 = vst [vmem:[%s378 + $0x310] sm:$0xff] %v4801
        %4930 = vst [vmem:[%s378 + $0x318] sm:$0xff] %v4802
        %4931 = vst [vmem:[%s378 + $0x320] sm:$0xff] %v4803
        %4932 = vst [vmem:[%s378 + $0x328] sm:$0xff] %v4804
        %4933 = vst [vmem:[%s378 + $0x330] sm:$0xff] %v4805
        %4934 = vst [vmem:[%s378 + $0x338] sm:$0xff] %v4806
        %4935 = vst [vmem:[%s378 + $0x340] sm:$0xff] %v4807
        %4936 = vst [vmem:[%s378 + $0x348] sm:$0xff] %v4808
        %4937 = vst [vmem:[%s378 + $0x350] sm:$0xff] %v4809
        %4938 = vst [vmem:[%s378 + $0x358] sm:$0xff] %v4810
        %4939 = vst [vmem:[%s378 + $0x360] sm:$0xff] %v4811
        %4940 = vst [vmem:[%s378 + $0x368] sm:$0xff] %v4812
        %4941 = vst [vmem:[%s378 + $0x370] sm:$0xff] %v4813
        %4942 = vst [vmem:[%s378 + $0x378] sm:$0xff] %v4814
        %4943 = vst [vmem:[%s378 + $0x380] sm:$0xff] %v4815
        %4944 = vst [vmem:[%s378 + $0x388] sm:$0xff] %v4816
        %4945 = vst [vmem:[%s378 + $0x390] sm:$0xff] %v4817
        %4946 = vst [vmem:[%s378 + $0x398] sm:$0xff] %v4818
        %4947 = vst [vmem:[%s378 + $0x3a0] sm:$0xff] %v4819
        %4948 = vst [vmem:[%s378 + $0x3a8] sm:$0xff] %v4820
        %4949 = vst [vmem:[%s378 + $0x3b0] sm:$0xff] %v4821
        %4950 = vst [vmem:[%s378 + $0x3b8] sm:$0xff] %v4822
        %4951 = vst [vmem:[%s378 + $0x3c0] sm:$0xff] %v4823
        %4952 = vst [vmem:[%s378 + $0x3c8] sm:$0xff] %v4824
        %4953 = vst [vmem:[%s378 + $0x3d0] sm:$0xff] %v4825
        %4954 = vst [vmem:[%s378 + $0x3d8] sm:$0xff] %v4826
        %4955 = vst [vmem:[%s378 + $0x3e0] sm:$0xff] %v4827
        %4956 = vst [vmem:[%s378 + $0x3e8] sm:$0xff] %v4828
        %4957 = vst [vmem:[%s378 + $0x3f0] sm:$0xff] %v4829
        %4958 = vst [vmem:[%s378 + $0x3f8] sm:$0xff] %v4830
        %s4959 = sand.u32 %s187, 1
        %s4960 = scalar_lea.sflag [#allocation4], %s4959
        %s4961 = sand.u32 %s187, 1
        %s4962 = smul.addr %s4961, 1024
        %s4963 = scalar_lea.vmem [#allocation13], %s4962
        // Predicated region
        $region73: #{tpu_custom_call.1} parent=47 // pred_check
          %p4964 = pneg %p197
        $region74: #{tpu_custom_call.1} parent=47 // pred_check_branch
          %4966 = sbr.rel (%p4964) target = $region76
        $region75: #{tpu_custom_call.1} parent=47 // pred_region
          %s4967 = smul.u32 16, %s27
          %4969 = vsyncadd %s4960, 0
          %s4970 = smul.addr %s4967, 8
          %s4971 = smul.addr %s4970, 8
          %s4972 = scalar_lea.hbm %s7, %s4971
          %s4973 = sshll.u32 %s4963, 4
          %s4974 = int_to_ptr.vmem [resolvable:$true] %s4973
          %s4975 = sshll.u32 %s4972, 4
          %s4976 = int_to_ptr.hbm [resolvable:$true] %s4975
          %4981 = dma.vmem_to_hbm [thread:$0]  %s4974, 16384, %s4976, %s4960, 1024, 1024, 64
        $region76: #{tpu_custom_call.1} parent=47 // pred_fallthru
          _
      $region48: #{tpu_custom_call.1} parent=5 // pred_fallthru
        _
      %p4982 = scmp.le.s32.totalorder 2, %s22
      // Predicated region
      $region77: #{tpu_custom_call.1} parent=5 // pred_check
        %p4983 = pneg %p4982
      $region78: #{tpu_custom_call.1} parent=5 // pred_check_branch
        %4985 = sbr.rel (%p4983) target = $region80
      $region79: #{tpu_custom_call.1} parent=5 // pred_region
        %s4986 = ssub.s32 %s22, 2
        // Predicated region
        $region81: #{tpu_custom_call.1} parent=79 // pred_check
          %p4987 = pneg %p203
        $region82: #{tpu_custom_call.1} parent=79 // pred_check_branch
          %4989 = sbr.rel (%p4987) target = $region84
        $region83: #{tpu_custom_call.1} parent=79 // pred_region
          %s4990 = sand.u32 %s188, 1
          %s4991 = scalar_lea.sflag [#allocation4], %s4990
          %s4992 = sand.u32 %s188, 1
          %s4993 = smul.addr %s4992, 1024
          %s4994 = scalar_lea.vmem [#allocation13], %s4993
          %4996 = dma.done %s4991, 16384
        $region84: #{tpu_custom_call.1} parent=79 // pred_fallthru
          _
      $region80: #{tpu_custom_call.1} parent=5 // pred_fallthru
        _
    $region6: #{tpu_custom_call.1} parent=1 // loop_footer
      %s26 = sadd.s32 1, %s22
    $region7: #{tpu_custom_call.1} parent=1 // loop_footer_branch
      %21 = sbr.rel target = $region3
    $region8: #{tpu_custom_call.1} parent=1 // loop_exit
      _
    %4997 = vsyncpa [#allocation3], 1
    %s4998 = scalar_lea.sflag [#allocation3], 1
    %4999 = vsyncpa %s4998, 1
    %5000 = vsyncpa [#allocation6], 1
    %5001 = vsyncpa [#allocation9], 1
    %5002 = vsyncpa [#allocation12], 1
    %5003 = vsyncpa [#allocation4], 1
    %s5004 = scalar_lea.sflag [#allocation4], 1
    %5005 = vsyncpa %s5004, 1

</llo_original>
